<compile_context>
chip_gen: v7x
topology: tpu7x:2x2x1
jax: 0.10.0
libtpu: 0.0.40
codegen_flags: <defaults>
</compile_context>

<pallas_src>
import functools

import jax
import jax.numpy as jnp
from jax.experimental import pallas as pl
from jax.experimental.pallas import tpu as pltpu


# ----------------------------------------------------------------------------
# Plain-JAX glue: sinusoidal timestep embedding + label-embedding gather.
# ----------------------------------------------------------------------------
def get_timestep_embedding(timesteps, embedding_dim, max_period):
    # TODO(synk): sin/cos ordering of the reference repo's helper is unknown;
    # this uses the OpenAI improved-diffusion (cos|sin) convention.
    half = embedding_dim // 2
    freqs = jnp.exp(
        -jnp.log(jnp.float32(max_period))
        * jnp.arange(half, dtype=jnp.float32) / jnp.float32(half))
    args = timesteps.astype(jnp.float32)[:, None] * freqs[None, :]
    emb = jnp.concatenate([jnp.cos(args), jnp.sin(args)], axis=-1)
    if embedding_dim % 2:
        emb = jnp.pad(emb, ((0, 0), (0, 1)))
    return emb  # (B, E)


# ----------------------------------------------------------------------------
# Fused kernel: folded input/gate projection -> LSTM recurrence -> out proj
# + interleaved activation.  All weights arrive pre-transposed to (in, out)
# and gate columns pre-permuted to [i | f | o | g].
# ----------------------------------------------------------------------------
def fused_lstm_kernel(x_ref, yemb_ref, temb_ref,
                      wl_ref, ws_ref, bin_ref,
                      wih_ref, wcomb_ref, whh_ref, blstm_ref,
                      wout_ref, bout_ref,
                      o_ref,
                      *, apply_act, compute_dtype):
    bb, S, F = x_ref.shape
    H = whh_ref.shape[0]
    cd = compute_dtype

    # --- sequence-invariant per-batch gate bias (computed once) ------------
    #   bias_in   = y_emb @ Wl^T + t_emb @ Ws^T + (bf + bl + bs)      (bb, E)
    #   gate_bias = bias_in @ Wih^T + (b_ih + b_hh)                   (bb, 4H)
    bias_in = (
        jnp.dot(yemb_ref[...].astype(cd), wl_ref[...],
                preferred_element_type=jnp.float32)
        + jnp.dot(temb_ref[...].astype(cd), ws_ref[...],
                  preferred_element_type=jnp.float32)
        + bin_ref[...])
    gate_bias = (
        jnp.dot(bias_in.astype(cd), wih_ref[...],
                preferred_element_type=jnp.float32)
        + blstm_ref[...])                                   # (bb, 4H) f32

    # --- x-side gate matmul hoisted out of the recurrence ------------------
    # feature_fc folded into the gate projection: W_comb = Wf^T @ Wih^T, so a
    # single big-M GEMM replaces S tiny M=bb matmuls and the (bb,S,E) f32
    # intermediate disappears.
    x_flat = x_ref[...].reshape(bb * S, F).astype(cd)
    gates_x = jnp.dot(x_flat, wcomb_ref[...],
                      preferred_element_type=jnp.float32)   # (bb*S, 4H)
    gates_x = gates_x.reshape(bb, S, 4 * H) + gate_bias[:, None, :]

    whh = whh_ref[...]                                      # (H, 4H), [i|f|o|g]

    # --- serial recurrence: only h @ W_hh + nonlinearities per step --------
    # TODO(synk): for long sequences switch to lax.fori_loop(unroll=True) +
    # a time-major VMEM scratch to bound unrolled code size / live ranges.
    h = jnp.zeros((bb, H), jnp.float32)
    c = jnp.zeros((bb, H), jnp.float32)
    hs = []
    for s in range(S):
        gates = gates_x[:, s, :] + jnp.dot(
            h.astype(cd), whh, preferred_element_type=jnp.float32)  # (bb, 4H)
        sig = jax.nn.sigmoid(gates[:, :3 * H])              # one wide EUP push
        i_g = sig[:, 0 * H:1 * H]
        f_g = sig[:, 1 * H:2 * H]
        o_g = sig[:, 2 * H:3 * H]
        g_g = jnp.tanh(gates[:, 3 * H:])
        c = f_g * c + i_g * g_g
        h = o_g * jnp.tanh(c)
        hs.append(h)

    # --- output projection on the whole (S*bb, H) slab ---------------------
    # Sublane-tile-aligned concat (bb % 8 == 0): no masked scratch stores and
    # no VMEM read-after-write before the output GEMM; rows are time-major.
    h_all = jnp.concatenate(hs, axis=0)                     # (S*bb, H)
    out = jnp.dot(h_all.astype(cd), wout_ref[...],
                  preferred_element_type=jnp.float32) + bout_ref[...]  # (S*bb, F)

    if apply_act:
        # tanh on even feature columns, sigmoid on odd -- single sigmoid pass
        # via tanh(x) = 2*sigmoid(2x) - 1.
        col = jax.lax.broadcasted_iota(jnp.int32, out.shape, 1)
        even = (col % 2) == 0
        sg = jax.nn.sigmoid(jnp.where(even, 2.0 * out, out))
        out = jnp.where(even, 2.0 * sg - 1.0, sg)

    # Store time-major (S, bb, F); leading-dim split only (sublane-safe).
    o_ref[...] = out.reshape(S, bb, F).astype(o_ref.dtype)


# ----------------------------------------------------------------------------
# Wrapper implementing ModifiedLSTM.forward
# ----------------------------------------------------------------------------
def _permute_gate_cols(w):
    """Reorder gate columns from PyTorch's [i|f|g|o] to [i|f|o|g]."""
    H = w.shape[-1] // 4
    return jnp.concatenate(
        [w[..., :2 * H], w[..., 3 * H:], w[..., 2 * H:3 * H]], axis=-1)


def modified_lstm_forward(params, x_t, y, t, *, emb_dim, hid_dim, max_steps,
                          apply_act=True, compute_dtype=jnp.float32,
                          batch_block=None):
    B, S, F = x_t.shape
    E, H = emb_dim, hid_dim
    cd = compute_dtype
    f32 = jnp.float32

    # --- plain-JAX glue: timestep embedding + label embedding lookup -------
    t_emb = get_timestep_embedding(t, E, max_steps)         # (B, E)
    y_emb = params["label_emb"][y]                          # (B, E) gather

    # --- parameter prep: (in,out) layout, gate reorder, bias/weight folding
    wih_t = _permute_gate_cols(params["lstm_w_ih"].T.astype(f32))   # (E, 4H)
    whh_t = _permute_gate_cols(params["lstm_w_hh"].T.astype(f32))   # (H, 4H)
    b_lstm = _permute_gate_cols(
        (params["lstm_b_ih"] + params["lstm_b_hh"]).astype(f32).reshape(1, 4 * H))
    wl_t = params["label_fc_w"].T.astype(cd)                        # (E, E)
    ws_t = params["step_fc_w"].T.astype(cd)                         # (E, E)
    bin_comb = (params["feature_fc_b"] + params["label_fc_b"]
                + params["step_fc_b"]).reshape(1, E).astype(f32)
    # feature_fc folded into the gate projection (single hop K: F -> 4H).
    w_comb = (params["feature_fc_w"].T.astype(f32) @ wih_t).astype(cd)  # (F, 4H)
    wout_t = params["out_fc_w"].T.astype(cd)                            # (H, F)
    bout = params["out_fc_b"].reshape(1, F).astype(f32)
    wih_cd = wih_t.astype(cd)
    whh_cd = whh_t.astype(cd)

    # --- pad batch to a multiple of 8 (f32 sublane alignment) --------------
    B_pad = ((B + 7) // 8) * 8
    x_t = x_t.astype(f32)
    if B_pad != B:
        p = B_pad - B
        x_t = jnp.pad(x_t, ((0, p), (0, 0), (0, 0)))
        y_emb = jnp.pad(y_emb, ((0, p), (0, 0)))
        t_emb = jnp.pad(t_emb, ((0, p), (0, 0)))

    # Batch grid axis ("parallel").  One block covers the small demo batch;
    # at larger B on v7x pass batch_block = B_pad // 2 (multiple of 8) so the
    # grid has >= 2 parallel steps and both TensorCores are used.
    bb = B_pad if batch_block is None else min(batch_block, B_pad)
    assert bb % 8 == 0 and B_pad % bb == 0, (B_pad, bb)
    grid = (B_pad // bb,)

    kernel = functools.partial(fused_lstm_kernel,
                               apply_act=apply_act, compute_dtype=cd)

    # Output is time-major (S, B, F) so the in-kernel store is a full-tile,
    # sublane-aligned write; transposed back in the wrapper (tiny tensor).
    # TODO(synk): a lane-dense (B, S*F) output (S*F == 128 here) would avoid
    # the F=16 masked stores entirely but needs a minor-dim relayout reshape;
    # skipped for lowering safety at these tiny shapes.
    out_sm = pl.pallas_call(
        kernel,
        out_shape=jax.ShapeDtypeStruct((S, B_pad, F), jnp.float32),
        grid=grid,
        in_specs=[
            pl.BlockSpec((bb, S, F), lambda b: (b, 0, 0)),   # x_t
            pl.BlockSpec((bb, E),    lambda b: (b, 0)),      # y_emb
            pl.BlockSpec((bb, E),    lambda b: (b, 0)),      # t_emb
            pl.BlockSpec((E, E),     lambda b: (0, 0)),      # label_fc  W^T
            pl.BlockSpec((E, E),     lambda b: (0, 0)),      # step_fc   W^T
            pl.BlockSpec((1, E),     lambda b: (0, 0)),      # combined input bias
            pl.BlockSpec((E, 4 * H), lambda b: (0, 0)),      # lstm W_ih^T (permuted)
            pl.BlockSpec((F, 4 * H), lambda b: (0, 0)),      # folded Wf^T @ W_ih^T
            pl.BlockSpec((H, 4 * H), lambda b: (0, 0)),      # lstm W_hh^T (permuted)
            pl.BlockSpec((1, 4 * H), lambda b: (0, 0)),      # lstm bias (permuted)
            pl.BlockSpec((H, F),     lambda b: (0, 0)),      # out_fc W^T
            pl.BlockSpec((1, F),     lambda b: (0, 0)),      # out_fc bias
        ],
        out_specs=pl.BlockSpec((S, bb, F), lambda b: (0, b, 0)),
        compiler_params=pltpu.CompilerParams(
            dimension_semantics=("parallel",),
            vmem_limit_bytes=32 * 1024 * 1024),
    )(x_t, y_emb, t_emb, wl_t, ws_t, bin_comb,
      wih_cd, w_comb, whh_cd, b_lstm, wout_t, bout)

    out = jnp.transpose(out_sm, (1, 0, 2))[:B]               # (B, S, F)
    return out


# ----------------------------------------------------------------------------
# Deterministic parameter construction (synthetic, not a checkpoint load).
# ----------------------------------------------------------------------------
def make_params(key, *, num_cls, feature_dim, emb_dim, hid_dim):
    ks = jax.random.split(key, 12)
    u = lambda k, shape, s=0.1: jax.random.uniform(k, shape, jnp.float32, -s, s)
    return {
        "label_emb":    u(ks[0], (num_cls, emb_dim)),
        "feature_fc_w": u(ks[1], (emb_dim, feature_dim)),
        "feature_fc_b": u(ks[2], (emb_dim,)),
        "label_fc_w":   u(ks[3], (emb_dim, emb_dim)),
        "label_fc_b":   u(ks[4], (emb_dim,)),
        "step_fc_w":    u(ks[5], (emb_dim, emb_dim)),
        "step_fc_b":    u(ks[6], (emb_dim,)),
        "lstm_w_ih":    u(ks[7], (4 * hid_dim, emb_dim)),
        "lstm_w_hh":    u(ks[8], (4 * hid_dim, hid_dim)),
        "lstm_b_ih":    u(ks[9], (4 * hid_dim,)),
        "lstm_b_hh":    u(ks[10], (4 * hid_dim,)),
        "out_fc_w":     u(ks[11], (feature_dim, hid_dim)),
        "out_fc_b":     jnp.zeros((feature_dim,), jnp.float32),
    }


if __name__ == "__main__":
    # Small config consistent with the module.
    B, S = 2, 8
    FEATURE_DIM = 16
    EMB_DIM = 32
    HID_DIM = 32       # 4*H = 128 -> lane-dense gate matmuls
    NUM_CLS = 4
    MAX_STEPS = 1000
    # num_layers=1, bidirectional=False, predict_noise=False, preprocess=False
    # TODO(synk): bidirectional / multi-layer LSTM variants are not
    # instantiated; the fused kernel implements the single-layer
    # unidirectional case used by this configuration.

    key = jax.random.PRNGKey(0)
    k_params, k_x, k_y, k_t = jax.random.split(key, 4)

    params = make_params(k_params, num_cls=NUM_CLS, feature_dim=FEATURE_DIM,
                         emb_dim=EMB_DIM, hid_dim=HID_DIM)

    x_t = jax.random.normal(k_x, (B, S, FEATURE_DIM), jnp.float32)
    y = jax.random.randint(k_y, (B,), 0, NUM_CLS, jnp.int32)
    t = jax.random.randint(k_t, (B,), 0, MAX_STEPS, jnp.int32)

    fwd = jax.jit(functools.partial(
        modified_lstm_forward,
        emb_dim=EMB_DIM, hid_dim=HID_DIM, max_steps=MAX_STEPS,
        apply_act=True, compute_dtype=jnp.float32))

    out = fwd(params, x_t, y, t)
    jax.block_until_ready(out)
    assert out.shape == (B, S, FEATURE_DIM), out.shape
    assert bool(jnp.all(jnp.isfinite(out)))
    print("KERNEL_OK")
</pallas_src>

<mosaic_0001>
module attributes {stable_mosaic.version = 11 : i64} {
  func.func @fused_lstm_kernel(%arg0: i32, %arg1: memref<8x8x16xf32, #tpu.memory_space<vmem>>, %arg2: memref<8x32xf32, #tpu.memory_space<vmem>>, %arg3: memref<8x32xf32, #tpu.memory_space<vmem>>, %arg4: memref<32x32xf32, #tpu.memory_space<vmem>>, %arg5: memref<32x32xf32, #tpu.memory_space<vmem>>, %arg6: memref<1x32xf32, #tpu.memory_space<vmem>>, %arg7: memref<32x128xf32, #tpu.memory_space<vmem>>, %arg8: memref<16x128xf32, #tpu.memory_space<vmem>>, %arg9: memref<32x128xf32, #tpu.memory_space<vmem>>, %arg10: memref<1x128xf32, #tpu.memory_space<vmem>>, %arg11: memref<32x16xf32, #tpu.memory_space<vmem>>, %arg12: memref<1x16xf32, #tpu.memory_space<vmem>>, %arg13: memref<8x8x16xf32, #tpu.memory_space<vmem>>) attributes {dimension_semantics = [#tpu.dimension_semantics<parallel>], iteration_bounds = array<i64: 1>, scalar_prefetch = 0 : i64, scratch_operands = 0 : i64, tpu.core_type = #tpu.core_type<tc>, window_params = [{transform_indices = @transform_0, window_bounds = array<i64: 8, 8, 16>}, {transform_indices = @transform_1, window_bounds = array<i64: 8, 32>}, {transform_indices = @transform_2, window_bounds = array<i64: 8, 32>}, {pipeline_mode = #tpu.pipeline_mode<synchronous>, transform_indices = @transform_3, window_bounds = array<i64: 32, 32>}, {pipeline_mode = #tpu.pipeline_mode<synchronous>, transform_indices = @transform_4, window_bounds = array<i64: 32, 32>}, {pipeline_mode = #tpu.pipeline_mode<synchronous>, transform_indices = @transform_5, window_bounds = array<i64: 1, 32>}, {pipeline_mode = #tpu.pipeline_mode<synchronous>, transform_indices = @transform_6, window_bounds = array<i64: 32, 128>}, {pipeline_mode = #tpu.pipeline_mode<synchronous>, transform_indices = @transform_7, window_bounds = array<i64: 16, 128>}, {pipeline_mode = #tpu.pipeline_mode<synchronous>, transform_indices = @transform_8, window_bounds = array<i64: 32, 128>}, {pipeline_mode = #tpu.pipeline_mode<synchronous>, transform_indices = @transform_9, window_bounds = array<i64: 1, 128>}, {pipeline_mode = #tpu.pipeline_mode<synchronous>, transform_indices = @transform_10, window_bounds = array<i64: 32, 16>}, {pipeline_mode = #tpu.pipeline_mode<synchronous>, transform_indices = @transform_11, window_bounds = array<i64: 1, 16>}, {transform_indices = @transform_12, window_bounds = array<i64: 8, 8, 16>}]} {
    %c0 = arith.constant 0 : index
    %c0_0 = arith.constant 0 : index
    %0 = vector.load %arg2[%c0, %c0_0] : memref<8x32xf32, #tpu.memory_space<vmem>>, vector<8x32xf32>
    %c0_1 = arith.constant 0 : index
    %c0_2 = arith.constant 0 : index
    %1 = vector.load %arg4[%c0_1, %c0_2] : memref<32x32xf32, #tpu.memory_space<vmem>>, vector<32x32xf32>
    %cst = arith.constant dense<0.000000e+00> : vector<8x32xf32>
    %2 = tpu.matmul %0, %1, %cst {dimension_numbers = #tpu.dot_dimension_numbers<[1], [0], [0], [1], [0, 0, 1, 1], [], []>} : vector<8x32xf32>, vector<32x32xf32>, vector<8x32xf32> -> vector<8x32xf32>
    %c0_3 = arith.constant 0 : index
    %c0_4 = arith.constant 0 : index
    %3 = vector.load %arg3[%c0_3, %c0_4] : memref<8x32xf32, #tpu.memory_space<vmem>>, vector<8x32xf32>
    %c0_5 = arith.constant 0 : index
    %c0_6 = arith.constant 0 : index
    %4 = vector.load %arg5[%c0_5, %c0_6] : memref<32x32xf32, #tpu.memory_space<vmem>>, vector<32x32xf32>
    %cst_7 = arith.constant dense<0.000000e+00> : vector<8x32xf32>
    %5 = tpu.matmul %3, %4, %cst_7 {dimension_numbers = #tpu.dot_dimension_numbers<[1], [0], [0], [1], [0, 0, 1, 1], [], []>} : vector<8x32xf32>, vector<32x32xf32>, vector<8x32xf32> -> vector<8x32xf32>
    %6 = arith.addf %2, %5 : vector<8x32xf32>
    %c0_8 = arith.constant 0 : index
    %c0_9 = arith.constant 0 : index
    %7 = vector.load %arg6[%c0_8, %c0_9] : memref<1x32xf32, #tpu.memory_space<vmem>>, vector<1x32xf32>
    %8 = vector.broadcast %7 : vector<1x32xf32> to vector<8x32xf32>
    %9 = arith.addf %6, %8 : vector<8x32xf32>
    %c0_10 = arith.constant 0 : index
    %c0_11 = arith.constant 0 : index
    %10 = vector.load %arg7[%c0_10, %c0_11] : memref<32x128xf32, #tpu.memory_space<vmem>>, vector<32x128xf32>
    %cst_12 = arith.constant dense<0.000000e+00> : vector<8x128xf32>
    %11 = tpu.matmul %9, %10, %cst_12 {dimension_numbers = #tpu.dot_dimension_numbers<[1], [0], [0], [1], [0, 0, 1, 1], [], []>} : vector<8x32xf32>, vector<32x128xf32>, vector<8x128xf32> -> vector<8x128xf32>
    %c0_13 = arith.constant 0 : index
    %c0_14 = arith.constant 0 : index
    %12 = vector.load %arg10[%c0_13, %c0_14] : memref<1x128xf32, #tpu.memory_space<vmem>>, vector<1x128xf32>
    %13 = vector.broadcast %12 : vector<1x128xf32> to vector<8x128xf32>
    %14 = arith.addf %11, %13 : vector<8x128xf32>
    %c0_15 = arith.constant 0 : index
    %c0_16 = arith.constant 0 : index
    %c0_17 = arith.constant 0 : index
    %15 = vector.load %arg1[%c0_15, %c0_16, %c0_17] : memref<8x8x16xf32, #tpu.memory_space<vmem>>, vector<8x8x16xf32>
    %16 = vector.shape_cast %15 : vector<8x8x16xf32> to vector<64x16xf32>
    %c0_18 = arith.constant 0 : index
    %c0_19 = arith.constant 0 : index
    %17 = vector.load %arg8[%c0_18, %c0_19] : memref<16x128xf32, #tpu.memory_space<vmem>>, vector<16x128xf32>
    %cst_20 = arith.constant dense<0.000000e+00> : vector<64x128xf32>
    %18 = tpu.matmul %16, %17, %cst_20 {dimension_numbers = #tpu.dot_dimension_numbers<[1], [0], [0], [1], [0, 0, 1, 1], [], []>} : vector<64x16xf32>, vector<16x128xf32>, vector<64x128xf32> -> vector<64x128xf32>
    %19 = vector.shape_cast %18 : vector<64x128xf32> to vector<8x8x128xf32>
    %20 = vector.shape_cast %14 : vector<8x128xf32> to vector<8x1x128xf32>
    %21 = vector.broadcast %20 : vector<8x1x128xf32> to vector<8x8x128xf32>
    %22 = arith.addf %19, %21 : vector<8x8x128xf32>
    %c0_21 = arith.constant 0 : index
    %c0_22 = arith.constant 0 : index
    %23 = vector.load %arg9[%c0_21, %c0_22] : memref<32x128xf32, #tpu.memory_space<vmem>>, vector<32x128xf32>
    %cst_23 = arith.constant 0.000000e+00 : f32
    %24 = vector.broadcast %cst_23 : f32 to vector<8x32xf32>
    %cst_24 = arith.constant 0.000000e+00 : f32
    %25 = vector.broadcast %cst_24 : f32 to vector<8x32xf32>
    %26 = vector.extract_strided_slice %22 {offsets = [0, 0, 0], sizes = [8, 1, 128], strides = [1, 1, 1]} : vector<8x8x128xf32> to vector<8x1x128xf32>
    %27 = vector.shape_cast %26 : vector<8x1x128xf32> to vector<8x128xf32>
    %cst_25 = arith.constant dense<0.000000e+00> : vector<8x128xf32>
    %28 = tpu.matmul %24, %23, %cst_25 {dimension_numbers = #tpu.dot_dimension_numbers<[1], [0], [0], [1], [0, 0, 1, 1], [], []>} : vector<8x32xf32>, vector<32x128xf32>, vector<8x128xf32> -> vector<8x128xf32>
    %29 = arith.addf %27, %28 : vector<8x128xf32>
    %30 = vector.extract_strided_slice %29 {offsets = [0, 0], sizes = [8, 96], strides = [1, 1]} : vector<8x128xf32> to vector<8x96xf32>
    %31 = arith.negf %30 : vector<8x96xf32>
    %32 = math.exp %31 : vector<8x96xf32>
    %cst_26 = arith.constant 1.000000e+00 : f32
    %33 = vector.broadcast %cst_26 : f32 to vector<8x96xf32>
    %34 = arith.addf %33, %32 : vector<8x96xf32>
    %35 = arith.divf %33, %34 : vector<8x96xf32>
    %36 = vector.extract_strided_slice %35 {offsets = [0, 0], sizes = [8, 32], strides = [1, 1]} : vector<8x96xf32> to vector<8x32xf32>
    %37 = vector.extract_strided_slice %35 {offsets = [0, 32], sizes = [8, 32], strides = [1, 1]} : vector<8x96xf32> to vector<8x32xf32>
    %38 = vector.extract_strided_slice %35 {offsets = [0, 64], sizes = [8, 32], strides = [1, 1]} : vector<8x96xf32> to vector<8x32xf32>
    %39 = vector.extract_strided_slice %29 {offsets = [0, 96], sizes = [8, 32], strides = [1, 1]} : vector<8x128xf32> to vector<8x32xf32>
    %40 = math.tanh %39 : vector<8x32xf32>
    %41 = arith.mulf %37, %25 : vector<8x32xf32>
    %42 = arith.mulf %36, %40 : vector<8x32xf32>
    %43 = arith.addf %41, %42 : vector<8x32xf32>
    %44 = math.tanh %43 : vector<8x32xf32>
    %45 = arith.mulf %38, %44 : vector<8x32xf32>
    %46 = vector.extract_strided_slice %22 {offsets = [0, 1, 0], sizes = [8, 1, 128], strides = [1, 1, 1]} : vector<8x8x128xf32> to vector<8x1x128xf32>
    %47 = vector.shape_cast %46 : vector<8x1x128xf32> to vector<8x128xf32>
    %cst_27 = arith.constant dense<0.000000e+00> : vector<8x128xf32>
    %48 = tpu.matmul %45, %23, %cst_27 {dimension_numbers = #tpu.dot_dimension_numbers<[1], [0], [0], [1], [0, 0, 1, 1], [], []>} : vector<8x32xf32>, vector<32x128xf32>, vector<8x128xf32> -> vector<8x128xf32>
    %49 = arith.addf %47, %48 : vector<8x128xf32>
    %50 = vector.extract_strided_slice %49 {offsets = [0, 0], sizes = [8, 96], strides = [1, 1]} : vector<8x128xf32> to vector<8x96xf32>
    %51 = arith.negf %50 : vector<8x96xf32>
    %52 = math.exp %51 : vector<8x96xf32>
    %cst_28 = arith.constant 1.000000e+00 : f32
    %53 = vector.broadcast %cst_28 : f32 to vector<8x96xf32>
    %54 = arith.addf %53, %52 : vector<8x96xf32>
    %55 = arith.divf %53, %54 : vector<8x96xf32>
    %56 = vector.extract_strided_slice %55 {offsets = [0, 0], sizes = [8, 32], strides = [1, 1]} : vector<8x96xf32> to vector<8x32xf32>
    %57 = vector.extract_strided_slice %55 {offsets = [0, 32], sizes = [8, 32], strides = [1, 1]} : vector<8x96xf32> to vector<8x32xf32>
    %58 = vector.extract_strided_slice %55 {offsets = [0, 64], sizes = [8, 32], strides = [1, 1]} : vector<8x96xf32> to vector<8x32xf32>
    %59 = vector.extract_strided_slice %49 {offsets = [0, 96], sizes = [8, 32], strides = [1, 1]} : vector<8x128xf32> to vector<8x32xf32>
    %60 = math.tanh %59 : vector<8x32xf32>
    %61 = arith.mulf %57, %43 : vector<8x32xf32>
    %62 = arith.mulf %56, %60 : vector<8x32xf32>
    %63 = arith.addf %61, %62 : vector<8x32xf32>
    %64 = math.tanh %63 : vector<8x32xf32>
    %65 = arith.mulf %58, %64 : vector<8x32xf32>
    %66 = vector.extract_strided_slice %22 {offsets = [0, 2, 0], sizes = [8, 1, 128], strides = [1, 1, 1]} : vector<8x8x128xf32> to vector<8x1x128xf32>
    %67 = vector.shape_cast %66 : vector<8x1x128xf32> to vector<8x128xf32>
    %cst_29 = arith.constant dense<0.000000e+00> : vector<8x128xf32>
    %68 = tpu.matmul %65, %23, %cst_29 {dimension_numbers = #tpu.dot_dimension_numbers<[1], [0], [0], [1], [0, 0, 1, 1], [], []>} : vector<8x32xf32>, vector<32x128xf32>, vector<8x128xf32> -> vector<8x128xf32>
    %69 = arith.addf %67, %68 : vector<8x128xf32>
    %70 = vector.extract_strided_slice %69 {offsets = [0, 0], sizes = [8, 96], strides = [1, 1]} : vector<8x128xf32> to vector<8x96xf32>
    %71 = arith.negf %70 : vector<8x96xf32>
    %72 = math.exp %71 : vector<8x96xf32>
    %cst_30 = arith.constant 1.000000e+00 : f32
    %73 = vector.broadcast %cst_30 : f32 to vector<8x96xf32>
    %74 = arith.addf %73, %72 : vector<8x96xf32>
    %75 = arith.divf %73, %74 : vector<8x96xf32>
    %76 = vector.extract_strided_slice %75 {offsets = [0, 0], sizes = [8, 32], strides = [1, 1]} : vector<8x96xf32> to vector<8x32xf32>
    %77 = vector.extract_strided_slice %75 {offsets = [0, 32], sizes = [8, 32], strides = [1, 1]} : vector<8x96xf32> to vector<8x32xf32>
    %78 = vector.extract_strided_slice %75 {offsets = [0, 64], sizes = [8, 32], strides = [1, 1]} : vector<8x96xf32> to vector<8x32xf32>
    %79 = vector.extract_strided_slice %69 {offsets = [0, 96], sizes = [8, 32], strides = [1, 1]} : vector<8x128xf32> to vector<8x32xf32>
    %80 = math.tanh %79 : vector<8x32xf32>
    %81 = arith.mulf %77, %63 : vector<8x32xf32>
    %82 = arith.mulf %76, %80 : vector<8x32xf32>
    %83 = arith.addf %81, %82 : vector<8x32xf32>
    %84 = math.tanh %83 : vector<8x32xf32>
    %85 = arith.mulf %78, %84 : vector<8x32xf32>
    %86 = vector.extract_strided_slice %22 {offsets = [0, 3, 0], sizes = [8, 1, 128], strides = [1, 1, 1]} : vector<8x8x128xf32> to vector<8x1x128xf32>
    %87 = vector.shape_cast %86 : vector<8x1x128xf32> to vector<8x128xf32>
    %cst_31 = arith.constant dense<0.000000e+00> : vector<8x128xf32>
    %88 = tpu.matmul %85, %23, %cst_31 {dimension_numbers = #tpu.dot_dimension_numbers<[1], [0], [0], [1], [0, 0, 1, 1], [], []>} : vector<8x32xf32>, vector<32x128xf32>, vector<8x128xf32> -> vector<8x128xf32>
    %89 = arith.addf %87, %88 : vector<8x128xf32>
    %90 = vector.extract_strided_slice %89 {offsets = [0, 0], sizes = [8, 96], strides = [1, 1]} : vector<8x128xf32> to vector<8x96xf32>
    %91 = arith.negf %90 : vector<8x96xf32>
    %92 = math.exp %91 : vector<8x96xf32>
    %cst_32 = arith.constant 1.000000e+00 : f32
    %93 = vector.broadcast %cst_32 : f32 to vector<8x96xf32>
    %94 = arith.addf %93, %92 : vector<8x96xf32>
    %95 = arith.divf %93, %94 : vector<8x96xf32>
    %96 = vector.extract_strided_slice %95 {offsets = [0, 0], sizes = [8, 32], strides = [1, 1]} : vector<8x96xf32> to vector<8x32xf32>
    %97 = vector.extract_strided_slice %95 {offsets = [0, 32], sizes = [8, 32], strides = [1, 1]} : vector<8x96xf32> to vector<8x32xf32>
    %98 = vector.extract_strided_slice %95 {offsets = [0, 64], sizes = [8, 32], strides = [1, 1]} : vector<8x96xf32> to vector<8x32xf32>
    %99 = vector.extract_strided_slice %89 {offsets = [0, 96], sizes = [8, 32], strides = [1, 1]} : vector<8x128xf32> to vector<8x32xf32>
    %100 = math.tanh %99 : vector<8x32xf32>
    %101 = arith.mulf %97, %83 : vector<8x32xf32>
    %102 = arith.mulf %96, %100 : vector<8x32xf32>
    %103 = arith.addf %101, %102 : vector<8x32xf32>
    %104 = math.tanh %103 : vector<8x32xf32>
    %105 = arith.mulf %98, %104 : vector<8x32xf32>
    %106 = vector.extract_strided_slice %22 {offsets = [0, 4, 0], sizes = [8, 1, 128], strides = [1, 1, 1]} : vector<8x8x128xf32> to vector<8x1x128xf32>
    %107 = vector.shape_cast %106 : vector<8x1x128xf32> to vector<8x128xf32>
    %cst_33 = arith.constant dense<0.000000e+00> : vector<8x128xf32>
    %108 = tpu.matmul %105, %23, %cst_33 {dimension_numbers = #tpu.dot_dimension_numbers<[1], [0], [0], [1], [0, 0, 1, 1], [], []>} : vector<8x32xf32>, vector<32x128xf32>, vector<8x128xf32> -> vector<8x128xf32>
    %109 = arith.addf %107, %108 : vector<8x128xf32>
    %110 = vector.extract_strided_slice %109 {offsets = [0, 0], sizes = [8, 96], strides = [1, 1]} : vector<8x128xf32> to vector<8x96xf32>
    %111 = arith.negf %110 : vector<8x96xf32>
    %112 = math.exp %111 : vector<8x96xf32>
    %cst_34 = arith.constant 1.000000e+00 : f32
    %113 = vector.broadcast %cst_34 : f32 to vector<8x96xf32>
    %114 = arith.addf %113, %112 : vector<8x96xf32>
    %115 = arith.divf %113, %114 : vector<8x96xf32>
    %116 = vector.extract_strided_slice %115 {offsets = [0, 0], sizes = [8, 32], strides = [1, 1]} : vector<8x96xf32> to vector<8x32xf32>
    %117 = vector.extract_strided_slice %115 {offsets = [0, 32], sizes = [8, 32], strides = [1, 1]} : vector<8x96xf32> to vector<8x32xf32>
    %118 = vector.extract_strided_slice %115 {offsets = [0, 64], sizes = [8, 32], strides = [1, 1]} : vector<8x96xf32> to vector<8x32xf32>
    %119 = vector.extract_strided_slice %109 {offsets = [0, 96], sizes = [8, 32], strides = [1, 1]} : vector<8x128xf32> to vector<8x32xf32>
    %120 = math.tanh %119 : vector<8x32xf32>
    %121 = arith.mulf %117, %103 : vector<8x32xf32>
    %122 = arith.mulf %116, %120 : vector<8x32xf32>
    %123 = arith.addf %121, %122 : vector<8x32xf32>
    %124 = math.tanh %123 : vector<8x32xf32>
    %125 = arith.mulf %118, %124 : vector<8x32xf32>
    %126 = vector.extract_strided_slice %22 {offsets = [0, 5, 0], sizes = [8, 1, 128], strides = [1, 1, 1]} : vector<8x8x128xf32> to vector<8x1x128xf32>
    %127 = vector.shape_cast %126 : vector<8x1x128xf32> to vector<8x128xf32>
    %cst_35 = arith.constant dense<0.000000e+00> : vector<8x128xf32>
    %128 = tpu.matmul %125, %23, %cst_35 {dimension_numbers = #tpu.dot_dimension_numbers<[1], [0], [0], [1], [0, 0, 1, 1], [], []>} : vector<8x32xf32>, vector<32x128xf32>, vector<8x128xf32> -> vector<8x128xf32>
    %129 = arith.addf %127, %128 : vector<8x128xf32>
    %130 = vector.extract_strided_slice %129 {offsets = [0, 0], sizes = [8, 96], strides = [1, 1]} : vector<8x128xf32> to vector<8x96xf32>
    %131 = arith.negf %130 : vector<8x96xf32>
    %132 = math.exp %131 : vector<8x96xf32>
    %cst_36 = arith.constant 1.000000e+00 : f32
    %133 = vector.broadcast %cst_36 : f32 to vector<8x96xf32>
    %134 = arith.addf %133, %132 : vector<8x96xf32>
    %135 = arith.divf %133, %134 : vector<8x96xf32>
    %136 = vector.extract_strided_slice %135 {offsets = [0, 0], sizes = [8, 32], strides = [1, 1]} : vector<8x96xf32> to vector<8x32xf32>
    %137 = vector.extract_strided_slice %135 {offsets = [0, 32], sizes = [8, 32], strides = [1, 1]} : vector<8x96xf32> to vector<8x32xf32>
    %138 = vector.extract_strided_slice %135 {offsets = [0, 64], sizes = [8, 32], strides = [1, 1]} : vector<8x96xf32> to vector<8x32xf32>
    %139 = vector.extract_strided_slice %129 {offsets = [0, 96], sizes = [8, 32], strides = [1, 1]} : vector<8x128xf32> to vector<8x32xf32>
    %140 = math.tanh %139 : vector<8x32xf32>
    %141 = arith.mulf %137, %123 : vector<8x32xf32>
    %142 = arith.mulf %136, %140 : vector<8x32xf32>
    %143 = arith.addf %141, %142 : vector<8x32xf32>
    %144 = math.tanh %143 : vector<8x32xf32>
    %145 = arith.mulf %138, %144 : vector<8x32xf32>
    %146 = vector.extract_strided_slice %22 {offsets = [0, 6, 0], sizes = [8, 1, 128], strides = [1, 1, 1]} : vector<8x8x128xf32> to vector<8x1x128xf32>
    %147 = vector.shape_cast %146 : vector<8x1x128xf32> to vector<8x128xf32>
    %cst_37 = arith.constant dense<0.000000e+00> : vector<8x128xf32>
    %148 = tpu.matmul %145, %23, %cst_37 {dimension_numbers = #tpu.dot_dimension_numbers<[1], [0], [0], [1], [0, 0, 1, 1], [], []>} : vector<8x32xf32>, vector<32x128xf32>, vector<8x128xf32> -> vector<8x128xf32>
    %149 = arith.addf %147, %148 : vector<8x128xf32>
    %150 = vector.extract_strided_slice %149 {offsets = [0, 0], sizes = [8, 96], strides = [1, 1]} : vector<8x128xf32> to vector<8x96xf32>
    %151 = arith.negf %150 : vector<8x96xf32>
    %152 = math.exp %151 : vector<8x96xf32>
    %cst_38 = arith.constant 1.000000e+00 : f32
    %153 = vector.broadcast %cst_38 : f32 to vector<8x96xf32>
    %154 = arith.addf %153, %152 : vector<8x96xf32>
    %155 = arith.divf %153, %154 : vector<8x96xf32>
    %156 = vector.extract_strided_slice %155 {offsets = [0, 0], sizes = [8, 32], strides = [1, 1]} : vector<8x96xf32> to vector<8x32xf32>
    %157 = vector.extract_strided_slice %155 {offsets = [0, 32], sizes = [8, 32], strides = [1, 1]} : vector<8x96xf32> to vector<8x32xf32>
    %158 = vector.extract_strided_slice %155 {offsets = [0, 64], sizes = [8, 32], strides = [1, 1]} : vector<8x96xf32> to vector<8x32xf32>
    %159 = vector.extract_strided_slice %149 {offsets = [0, 96], sizes = [8, 32], strides = [1, 1]} : vector<8x128xf32> to vector<8x32xf32>
    %160 = math.tanh %159 : vector<8x32xf32>
    %161 = arith.mulf %157, %143 : vector<8x32xf32>
    %162 = arith.mulf %156, %160 : vector<8x32xf32>
    %163 = arith.addf %161, %162 : vector<8x32xf32>
    %164 = math.tanh %163 : vector<8x32xf32>
    %165 = arith.mulf %158, %164 : vector<8x32xf32>
    %166 = vector.extract_strided_slice %22 {offsets = [0, 7, 0], sizes = [8, 1, 128], strides = [1, 1, 1]} : vector<8x8x128xf32> to vector<8x1x128xf32>
    %167 = vector.shape_cast %166 : vector<8x1x128xf32> to vector<8x128xf32>
    %cst_39 = arith.constant dense<0.000000e+00> : vector<8x128xf32>
    %168 = tpu.matmul %165, %23, %cst_39 {dimension_numbers = #tpu.dot_dimension_numbers<[1], [0], [0], [1], [0, 0, 1, 1], [], []>} : vector<8x32xf32>, vector<32x128xf32>, vector<8x128xf32> -> vector<8x128xf32>
    %169 = arith.addf %167, %168 : vector<8x128xf32>
    %170 = vector.extract_strided_slice %169 {offsets = [0, 0], sizes = [8, 96], strides = [1, 1]} : vector<8x128xf32> to vector<8x96xf32>
    %171 = arith.negf %170 : vector<8x96xf32>
    %172 = math.exp %171 : vector<8x96xf32>
    %cst_40 = arith.constant 1.000000e+00 : f32
    %173 = vector.broadcast %cst_40 : f32 to vector<8x96xf32>
    %174 = arith.addf %173, %172 : vector<8x96xf32>
    %175 = arith.divf %173, %174 : vector<8x96xf32>
    %176 = vector.extract_strided_slice %175 {offsets = [0, 0], sizes = [8, 32], strides = [1, 1]} : vector<8x96xf32> to vector<8x32xf32>
    %177 = vector.extract_strided_slice %175 {offsets = [0, 32], sizes = [8, 32], strides = [1, 1]} : vector<8x96xf32> to vector<8x32xf32>
    %178 = vector.extract_strided_slice %175 {offsets = [0, 64], sizes = [8, 32], strides = [1, 1]} : vector<8x96xf32> to vector<8x32xf32>
    %179 = vector.extract_strided_slice %169 {offsets = [0, 96], sizes = [8, 32], strides = [1, 1]} : vector<8x128xf32> to vector<8x32xf32>
    %180 = math.tanh %179 : vector<8x32xf32>
    %181 = arith.mulf %177, %163 : vector<8x32xf32>
    %182 = arith.mulf %176, %180 : vector<8x32xf32>
    %183 = arith.addf %181, %182 : vector<8x32xf32>
    %184 = math.tanh %183 : vector<8x32xf32>
    %185 = arith.mulf %178, %184 : vector<8x32xf32>
    %186 = tpu.concatenate %45, %65, %85, %105, %125, %145, %165, %185 in 0 : vector<8x32xf32>, vector<8x32xf32>, vector<8x32xf32>, vector<8x32xf32>, vector<8x32xf32>, vector<8x32xf32>, vector<8x32xf32>, vector<8x32xf32> -> vector<64x32xf32>
    %c0_41 = arith.constant 0 : index
    %c0_42 = arith.constant 0 : index
    %187 = vector.load %arg11[%c0_41, %c0_42] : memref<32x16xf32, #tpu.memory_space<vmem>>, vector<32x16xf32>
    %cst_43 = arith.constant dense<0.000000e+00> : vector<64x16xf32>
    %188 = tpu.matmul %186, %187, %cst_43 {dimension_numbers = #tpu.dot_dimension_numbers<[1], [0], [0], [1], [0, 0, 1, 1], [], []>} : vector<64x32xf32>, vector<32x16xf32>, vector<64x16xf32> -> vector<64x16xf32>
    %c0_44 = arith.constant 0 : index
    %c0_45 = arith.constant 0 : index
    %189 = vector.load %arg12[%c0_44, %c0_45] : memref<1x16xf32, #tpu.memory_space<vmem>>, vector<1x16xf32>
    %190 = vector.broadcast %189 : vector<1x16xf32> to vector<64x16xf32>
    %191 = arith.addf %188, %190 : vector<64x16xf32>
    %192 = tpu.iota {dimensions = array<i32: 1>} : vector<64x16xi32>
    %c2_i32 = arith.constant 2 : i32
    %c0_i32 = arith.constant 0 : i32
    %193 = arith.cmpi eq, %c2_i32, %c0_i32 : i32
    %c1_i32 = arith.constant 1 : i32
    %194 = arith.select %193, %c1_i32, %c2_i32 : i32
    %195 = vector.broadcast %194 : i32 to vector<64x16xi32>
    %196 = arith.remsi %192, %195 : vector<64x16xi32>
    %c0_i32_46 = arith.constant 0 : i32
    %197 = vector.broadcast %c0_i32_46 : i32 to vector<64x16xi32>
    %198 = arith.cmpi ne, %196, %197 : vector<64x16xi32>
    %c0_i32_47 = arith.constant 0 : i32
    %199 = vector.broadcast %c0_i32_47 : i32 to vector<64x16xi32>
    %200 = arith.cmpi slt, %196, %199 : vector<64x16xi32>
    %c0_i32_48 = arith.constant 0 : i32
    %201 = arith.cmpi slt, %194, %c0_i32_48 : i32
    %202 = vector.broadcast %201 : i1 to vector<64x16xi1>
    %203 = vector.broadcast %202 : vector<64x16xi1> to vector<64x16xi1>
    %204 = arith.xori %200, %203 : vector<64x16xi1>
    %205 = arith.andi %204, %198 : vector<64x16xi1>
    %206 = vector.broadcast %194 : i32 to vector<64x16xi32>
    %207 = arith.addi %196, %206 : vector<64x16xi32>
    %208 = arith.select %205, %207, %196 : vector<64x16xi1>, vector<64x16xi32>
    %c0_i32_49 = arith.constant 0 : i32
    %209 = vector.broadcast %c0_i32_49 : i32 to vector<64x16xi32>
    %210 = arith.cmpi eq, %208, %209 : vector<64x16xi32>
    %cst_50 = arith.constant 2.000000e+00 : f32
    %211 = vector.broadcast %cst_50 : f32 to vector<64x16xf32>
    %212 = arith.mulf %211, %191 : vector<64x16xf32>
    %213 = arith.select %210, %212, %191 : vector<64x16xi1>, vector<64x16xf32>
    %214 = arith.negf %213 : vector<64x16xf32>
    %215 = math.exp %214 : vector<64x16xf32>
    %cst_51 = arith.constant 1.000000e+00 : f32
    %216 = vector.broadcast %cst_51 : f32 to vector<64x16xf32>
    %217 = arith.addf %216, %215 : vector<64x16xf32>
    %218 = arith.divf %216, %217 : vector<64x16xf32>
    %cst_52 = arith.constant 2.000000e+00 : f32
    %219 = vector.broadcast %cst_52 : f32 to vector<64x16xf32>
    %220 = arith.mulf %219, %218 : vector<64x16xf32>
    %cst_53 = arith.constant 1.000000e+00 : f32
    %221 = vector.broadcast %cst_53 : f32 to vector<64x16xf32>
    %222 = arith.subf %220, %221 : vector<64x16xf32>
    %223 = arith.select %210, %222, %218 : vector<64x16xi1>, vector<64x16xf32>
    %224 = vector.shape_cast %223 : vector<64x16xf32> to vector<8x8x16xf32>
    %c0_54 = arith.constant 0 : index
    %c0_55 = arith.constant 0 : index
    %c0_56 = arith.constant 0 : index
    %225 = vector.load %arg13[%c0_54, %c0_55, %c0_56] : memref<8x8x16xf32, #tpu.memory_space<vmem>>, vector<8x8x16xf32>
    tpu.vector_store %arg13[%c0_54, %c0_55, %c0_56], %224 {strides = array<i32>} : memref<8x8x16xf32, #tpu.memory_space<vmem>>, vector<8x8x16xf32>,
    return
  }
  func.func @transform_0(%arg0: i32) -> (i32, i32, i32) {
    %c0_i32 = arith.constant 0 : i32
    %c0_i32_0 = arith.constant 0 : i32
    %c0_i32_1 = arith.constant 0 : i32
    return %arg0, %c0_i32, %c0_i32_0 : i32, i32, i32
  }
  func.func @transform_1(%arg0: i32) -> (i32, i32) {
    %c0_i32 = arith.constant 0 : i32
    %c0_i32_0 = arith.constant 0 : i32
    return %arg0, %c0_i32 : i32, i32
  }
  func.func @transform_2(%arg0: i32) -> (i32, i32) {
    %c0_i32 = arith.constant 0 : i32
    %c0_i32_0 = arith.constant 0 : i32
    return %arg0, %c0_i32 : i32, i32
  }
  func.func @transform_3(%arg0: i32) -> (i32, i32) {
    %c0_i32 = arith.constant 0 : i32
    %c0_i32_0 = arith.constant 0 : i32
    %c0_i32_1 = arith.constant 0 : i32
    return %c0_i32, %c0_i32_0 : i32, i32
  }
  func.func @transform_4(%arg0: i32) -> (i32, i32) {
    %c0_i32 = arith.constant 0 : i32
    %c0_i32_0 = arith.constant 0 : i32
    %c0_i32_1 = arith.constant 0 : i32
    return %c0_i32, %c0_i32_0 : i32, i32
  }
  func.func @transform_5(%arg0: i32) -> (i32, i32) {
    %c0_i32 = arith.constant 0 : i32
    %c0_i32_0 = arith.constant 0 : i32
    %c0_i32_1 = arith.constant 0 : i32
    return %c0_i32, %c0_i32_0 : i32, i32
  }
  func.func @transform_6(%arg0: i32) -> (i32, i32) {
    %c0_i32 = arith.constant 0 : i32
    %c0_i32_0 = arith.constant 0 : i32
    %c0_i32_1 = arith.constant 0 : i32
    return %c0_i32, %c0_i32_0 : i32, i32
  }
  func.func @transform_7(%arg0: i32) -> (i32, i32) {
    %c0_i32 = arith.constant 0 : i32
    %c0_i32_0 = arith.constant 0 : i32
    %c0_i32_1 = arith.constant 0 : i32
    return %c0_i32, %c0_i32_0 : i32, i32
  }
  func.func @transform_8(%arg0: i32) -> (i32, i32) {
    %c0_i32 = arith.constant 0 : i32
    %c0_i32_0 = arith.constant 0 : i32
    %c0_i32_1 = arith.constant 0 : i32
    return %c0_i32, %c0_i32_0 : i32, i32
  }
  func.func @transform_9(%arg0: i32) -> (i32, i32) {
    %c0_i32 = arith.constant 0 : i32
    %c0_i32_0 = arith.constant 0 : i32
    %c0_i32_1 = arith.constant 0 : i32
    return %c0_i32, %c0_i32_0 : i32, i32
  }
  func.func @transform_10(%arg0: i32) -> (i32, i32) {
    %c0_i32 = arith.constant 0 : i32
    %c0_i32_0 = arith.constant 0 : i32
    %c0_i32_1 = arith.constant 0 : i32
    return %c0_i32, %c0_i32_0 : i32, i32
  }
  func.func @transform_11(%arg0: i32) -> (i32, i32) {
    %c0_i32 = arith.constant 0 : i32
    %c0_i32_0 = arith.constant 0 : i32
    %c0_i32_1 = arith.constant 0 : i32
    return %c0_i32, %c0_i32_0 : i32, i32
  }
  func.func @transform_12(%arg0: i32) -> (i32, i32, i32) {
    %c0_i32 = arith.constant 0 : i32
    %c0_i32_0 = arith.constant 0 : i32
    %c0_i32_1 = arith.constant 0 : i32
    return %c0_i32, %arg0, %c0_i32_0 : i32, i32, i32
  }
}

</mosaic_0001>

<llo_original>
// kernel: modified_lstm_forward.1
$region0: #{modified_lstm_forward.1}
  #allocation0 [shape = 'u32[]', space=smem, size = 0x4, offset = 0x4, fixed_abs, tag = 'smem constant byte address 0x4 - core index']
  #allocation1 [shape = 'u32[144,128]{1,0:T(1,128)}', space=vmem, size = 0x12000, scoped, tag = 'internal scratch']
  %s0 = inlined_call_operand.vmem [shape: f32[8,8,16], index: 0, kind: input, shape index: {}]
  %s1 = inlined_call_operand.vmem [shape: f32[8,32], index: 1, kind: input, shape index: {}]
  %s2 = inlined_call_operand.vmem [shape: f32[8,32], index: 2, kind: input, shape index: {}]
  %s3 = inlined_call_operand.vmem [shape: f32[32,32], index: 3, kind: input, shape index: {}]
  %s4 = inlined_call_operand.vmem [shape: f32[32,32], index: 4, kind: input, shape index: {}]
  %s5 = inlined_call_operand.vmem [shape: f32[1,32], index: 5, kind: input, shape index: {}]
  %s6 = inlined_call_operand.vmem [shape: f32[32,128], index: 6, kind: input, shape index: {}]
  %s7 = inlined_call_operand.vmem [shape: f32[16,128], index: 7, kind: input, shape index: {}]
  %s8 = inlined_call_operand.vmem [shape: f32[32,128], index: 8, kind: input, shape index: {}]
  %s9 = inlined_call_operand.vmem [shape: f32[1,128], index: 9, kind: input, shape index: {}]
  %s10 = inlined_call_operand.vmem [shape: f32[32,16], index: 10, kind: input, shape index: {}]
  %s11 = inlined_call_operand.vmem [shape: f32[1,16], index: 11, kind: input, shape index: {}]
  %s12 = inlined_call_operand.vmem [shape: f32[8,8,16], index: 12, kind: output, shape index: {}]
  %s13 = sld [smem:[#allocation0]]
  $region58: #{modified_lstm_forward.1} parent=0
    _
  %s15 = ssub.s32 1, %s13
  %s16 = scalar_select 0, %s15, %s13
  // Predicated region
  $region2: #{modified_lstm_forward.1} parent=0 // pred_check
    _
  $region3: #{modified_lstm_forward.1} parent=0 // pred_check_branch
    %18 = sbr.rel (0) target = $region5
  $region4: #{modified_lstm_forward.1} parent=0 // pred_region
    _
  $region5: #{modified_lstm_forward.1} parent=0 // pred_fallthru
    _
  // Predicated region
  $region6: #{modified_lstm_forward.1} parent=0 // pred_check
    _
  $region7: #{modified_lstm_forward.1} parent=0 // pred_check_branch
    %20 = sbr.rel (0) target = $region9
  $region8: #{modified_lstm_forward.1} parent=0 // pred_region
    _
  $region9: #{modified_lstm_forward.1} parent=0 // pred_fallthru
    _
  // Predicated region
  $region10: #{modified_lstm_forward.1} parent=0 // pred_check
    _
  $region11: #{modified_lstm_forward.1} parent=0 // pred_check_branch
    %22 = sbr.rel (0) target = $region13
  $region12: #{modified_lstm_forward.1} parent=0 // pred_region
    _
  $region13: #{modified_lstm_forward.1} parent=0 // pred_fallthru
    _
  // Predicated region
  $region14: #{modified_lstm_forward.1} parent=0 // pred_check
    _
  $region15: #{modified_lstm_forward.1} parent=0 // pred_check_branch
    %24 = sbr.rel (0) target = $region17
  $region16: #{modified_lstm_forward.1} parent=0 // pred_region
    _
  $region17: #{modified_lstm_forward.1} parent=0 // pred_fallthru
    _
  // Predicated region
  $region18: #{modified_lstm_forward.1} parent=0 // pred_check
    _
  $region19: #{modified_lstm_forward.1} parent=0 // pred_check_branch
    %26 = sbr.rel (0) target = $region21
  $region20: #{modified_lstm_forward.1} parent=0 // pred_region
    _
  $region21: #{modified_lstm_forward.1} parent=0 // pred_fallthru
    _
  // Predicated region
  $region22: #{modified_lstm_forward.1} parent=0 // pred_check
    _
  $region23: #{modified_lstm_forward.1} parent=0 // pred_check_branch
    %28 = sbr.rel (0) target = $region25
  $region24: #{modified_lstm_forward.1} parent=0 // pred_region
    _
  $region25: #{modified_lstm_forward.1} parent=0 // pred_fallthru
    _
  // Predicated region
  $region26: #{modified_lstm_forward.1} parent=0 // pred_check
    _
  $region27: #{modified_lstm_forward.1} parent=0 // pred_check_branch
    %30 = sbr.rel (0) target = $region29
  $region28: #{modified_lstm_forward.1} parent=0 // pred_region
    _
  $region29: #{modified_lstm_forward.1} parent=0 // pred_fallthru
    _
  // Predicated region
  $region30: #{modified_lstm_forward.1} parent=0 // pred_check
    _
  $region31: #{modified_lstm_forward.1} parent=0 // pred_check_branch
    %32 = sbr.rel (0) target = $region33
  $region32: #{modified_lstm_forward.1} parent=0 // pred_region
    _
  $region33: #{modified_lstm_forward.1} parent=0 // pred_fallthru
    _
  // Predicated region
  $region34: #{modified_lstm_forward.1} parent=0 // pred_check
    _
  $region35: #{modified_lstm_forward.1} parent=0 // pred_check_branch
    %34 = sbr.rel (0) target = $region37
  $region36: #{modified_lstm_forward.1} parent=0 // pred_region
    _
  $region37: #{modified_lstm_forward.1} parent=0 // pred_fallthru
    _
  // Predicated region
  $region38: #{modified_lstm_forward.1} parent=0 // pred_check
    _
  $region39: #{modified_lstm_forward.1} parent=0 // pred_check_branch
    %36 = sbr.rel (0) target = $region41
  $region40: #{modified_lstm_forward.1} parent=0 // pred_region
    _
  $region41: #{modified_lstm_forward.1} parent=0 // pred_fallthru
    _
  // Predicated region
  $region42: #{modified_lstm_forward.1} parent=0 // pred_check
    _
  $region43: #{modified_lstm_forward.1} parent=0 // pred_check_branch
    %38 = sbr.rel (0) target = $region45
  $region44: #{modified_lstm_forward.1} parent=0 // pred_region
    _
  $region45: #{modified_lstm_forward.1} parent=0 // pred_fallthru
    _
  // Predicated region
  $region46: #{modified_lstm_forward.1} parent=0 // pred_check
    _
  $region47: #{modified_lstm_forward.1} parent=0 // pred_check_branch
    %40 = sbr.rel (0) target = $region49
  $region48: #{modified_lstm_forward.1} parent=0 // pred_region
    _
  $region49: #{modified_lstm_forward.1} parent=0 // pred_fallthru
    _
  %v41 = vld [vmem:[%s1] sm:$0xff]
  %v42 = vld [vmem:[%s3] sm:$0xff]
  %v43 = vld [vmem:[%s3 + $0x8] sm:$0xff]
  %v44 = vld [vmem:[%s3 + $0x10] sm:$0xff]
  %v45 = vld [vmem:[%s3 + $0x18] sm:$0xff]
  %v46 = vld [vmem:[%s2] sm:$0xff]
  %v47 = vld [vmem:[%s4] sm:$0xff]
  %v48 = vld [vmem:[%s4 + $0x8] sm:$0xff]
  %v49 = vld [vmem:[%s4 + $0x10] sm:$0xff]
  %v50 = vld [vmem:[%s4 + $0x18] sm:$0xff]
  %vm51 = vcmask 261120
  %v53 = vsel %vm51, %v46, 0
  %55 = vmatprep.subr.mxu0 0.0
  %56 = vmatpush1.msra.mxu0 %v47
  %57 = vmatprep.subr.mxu0 0.0
  %58 = vmatpush1.msra.mxu0 %v48
  %59 = vmatprep.subr.mxu0 0.0
  %60 = vmatpush1.msra.mxu0 %v49
  %61 = vmatprep.subr.mxu0 0.0
  %62 = vmatpush1.msra.mxu0 %v50
  %63 = vmatprep.subr.mxu0 0.0
  %64 = vmatpush1.msra.mxu0 0.0
  %65 = vmatprep.subr.mxu0 0.0
  %66 = vmatpush1.msra.mxu0 0.0
  %67 = vmatprep.subr.mxu0 0.0
  %68 = vmatpush1.msra.mxu0 0.0
  %69 = vmatprep.subr.mxu0 0.0
  %70 = vmatpush1.msra.mxu0 0.0
  %71 = vmatprep.subr.mxu0 0.0
  %72 = vmatpush1.msra.mxu0 0.0
  %73 = vmatprep.subr.mxu0 0.0
  %74 = vmatpush1.msra.mxu0 0.0
  %75 = vmatprep.subr.mxu0 0.0
  %76 = vmatpush1.msra.mxu0 0.0
  %77 = vmatprep.subr.mxu0 0.0
  %78 = vmatpush1.msra.mxu0 0.0
  %79 = vmatprep.subr.mxu0 0.0
  %80 = vmatpush1.msra.mxu0 0.0
  %81 = vmatprep.subr.mxu0 0.0
  %82 = vmatpush1.msra.mxu0 0.0
  %83 = vmatprep.subr.mxu0 0.0
  %84 = vmatpush1.msra.mxu0 0.0
  %85 = vmatprep.subr.mxu0 0.0
  %86 = vmatpush1.msra.mxu0 0.0
  %87 = vmatprep.subr.mxu0 0.0
  %88 = vmatpush1.msra.mxu0 0.0
  %89 = vmatprep.subr.mxu0 0.0
  %90 = vmatpush1.msra.mxu0 0.0
  %91 = vmatprep.subr.mxu0 0.0
  %92 = vmatpush1.msra.mxu0 0.0
  %93 = vmatprep.subr.mxu0 0.0
  %94 = vmatpush1.msra.mxu0 0.0
  %95 = vmatprep.subr.mxu0 0.0
  %96 = vmatpush1.msra.mxu0 0.0
  %97 = vmatprep.subr.mxu0 0.0
  %98 = vmatpush1.msra.mxu0 0.0
  %99 = vmatprep.subr.mxu0 0.0
  %100 = vmatpush1.msra.mxu0 0.0
  %101 = vmatprep.subr.mxu0 0.0
  %102 = vmatpush1.msra.mxu0 0.0
  %103 = vmatprep.subr.mxu0 0.0
  %104 = vmatpush1.msra.mxu0 0.0
  %105 = vmatprep.subr.mxu0 0.0
  %106 = vmatpush1.msra.mxu0 0.0
  %107 = vmatprep.subr.mxu0 0.0
  %108 = vmatpush1.msra.mxu0 0.0
  %109 = vmatprep.subr.mxu0 0.0
  %110 = vmatpush1.msra.mxu0 0.0
  %111 = vmatprep.subr.mxu0 0.0
  %112 = vmatpush1.msra.mxu0 0.0
  %113 = vmatprep.subr.mxu0 0.0
  %114 = vmatpush1.msra.mxu0 0.0
  %115 = vmatprep.subr.mxu0 0.0
  %116 = vmatpush1.msra.mxu0 0.0
  %117 = vmatprep.subr.mxu0 0.0
  %118 = vmatpush1.msra.mxu0 0.0
  %119 = vmatprep.mubr.f32.mxu0 0.0
  %120 = vmatmul.mubr.f32.gmra.mrb[0].mxu0 %v53
  %v121 = vpop.f32.mrb[0].mxu0
  %v122 = vadd.f32 0.0, %v121
  %v123 = vpop.f32.mrb[0].mxu0
  %124 = vdwg.mxu0
  %v126 = vsel %vm51, %v41, 0
  %128 = vmatprep.subr.mxu0 0.0
  %129 = vmatpush1.msra.mxu0 %v42
  %130 = vmatprep.subr.mxu0 0.0
  %131 = vmatpush1.msra.mxu0 %v43
  %132 = vmatprep.subr.mxu0 0.0
  %133 = vmatpush1.msra.mxu0 %v44
  %134 = vmatprep.subr.mxu0 0.0
  %135 = vmatpush1.msra.mxu0 %v45
  %136 = vmatprep.subr.mxu0 0.0
  %137 = vmatpush1.msra.mxu0 0.0
  %138 = vmatprep.subr.mxu0 0.0
  %139 = vmatpush1.msra.mxu0 0.0
  %140 = vmatprep.subr.mxu0 0.0
  %141 = vmatpush1.msra.mxu0 0.0
  %142 = vmatprep.subr.mxu0 0.0
  %143 = vmatpush1.msra.mxu0 0.0
  %144 = vmatprep.subr.mxu0 0.0
  %145 = vmatpush1.msra.mxu0 0.0
  %146 = vmatprep.subr.mxu0 0.0
  %147 = vmatpush1.msra.mxu0 0.0
  %148 = vmatprep.subr.mxu0 0.0
  %149 = vmatpush1.msra.mxu0 0.0
  %150 = vmatprep.subr.mxu0 0.0
  %151 = vmatpush1.msra.mxu0 0.0
  %152 = vmatprep.subr.mxu0 0.0
  %153 = vmatpush1.msra.mxu0 0.0
  %154 = vmatprep.subr.mxu0 0.0
  %155 = vmatpush1.msra.mxu0 0.0
  %156 = vmatprep.subr.mxu0 0.0
  %157 = vmatpush1.msra.mxu0 0.0
  %158 = vmatprep.subr.mxu0 0.0
  %159 = vmatpush1.msra.mxu0 0.0
  %160 = vmatprep.subr.mxu0 0.0
  %161 = vmatpush1.msra.mxu0 0.0
  %162 = vmatprep.subr.mxu0 0.0
  %163 = vmatpush1.msra.mxu0 0.0
  %164 = vmatprep.subr.mxu0 0.0
  %165 = vmatpush1.msra.mxu0 0.0
  %166 = vmatprep.subr.mxu0 0.0
  %167 = vmatpush1.msra.mxu0 0.0
  %168 = vmatprep.subr.mxu0 0.0
  %169 = vmatpush1.msra.mxu0 0.0
  %170 = vmatprep.subr.mxu0 0.0
  %171 = vmatpush1.msra.mxu0 0.0
  %172 = vmatprep.subr.mxu0 0.0
  %173 = vmatpush1.msra.mxu0 0.0
  %174 = vmatprep.subr.mxu0 0.0
  %175 = vmatpush1.msra.mxu0 0.0
  %176 = vmatprep.subr.mxu0 0.0
  %177 = vmatpush1.msra.mxu0 0.0
  %178 = vmatprep.subr.mxu0 0.0
  %179 = vmatpush1.msra.mxu0 0.0
  %180 = vmatprep.subr.mxu0 0.0
  %181 = vmatpush1.msra.mxu0 0.0
  %182 = vmatprep.subr.mxu0 0.0
  %183 = vmatpush1.msra.mxu0 0.0
  %184 = vmatprep.subr.mxu0 0.0
  %185 = vmatpush1.msra.mxu0 0.0
  %186 = vmatprep.subr.mxu0 0.0
  %187 = vmatpush1.msra.mxu0 0.0
  %188 = vmatprep.subr.mxu0 0.0
  %189 = vmatpush1.msra.mxu0 0.0
  %190 = vmatprep.subr.mxu0 0.0
  %191 = vmatpush1.msra.mxu0 0.0
  %192 = vmatprep.mubr.f32.mxu0 0.0
  %193 = vmatmul.mubr.f32.gmra.mrb[0].mxu0 %v126
  %v194 = vpop.f32.mrb[0].mxu0
  %v195 = vadd.f32 %v122, %v194
  %v196 = vpop.f32.mrb[0].mxu0
  %197 = vdwg.mxu0
  %v198 = vld [vmem:[%s5] sm:$0x1]
  %v200 = vlaneseq
  %v201 = vshrl.u32 %v200, 7
  %v202 = vsub.s32 0, %v201
  %v203 = vrot.slane %v198, %v202
  %v205 = vadd.f32 %v195, %v203
  %v206 = vld [vmem:[%s6] sm:$0xff]
  %v207 = vld [vmem:[%s6 + $0x8] sm:$0xff]
  %v208 = vld [vmem:[%s6 + $0x10] sm:$0xff]
  %v209 = vld [vmem:[%s6 + $0x18] sm:$0xff]
  %v210 = vld [vmem:[%s9] sm:$0x1]
  %v212 = vlaneseq
  %v213 = vshrl.u32 %v212, 7
  %v214 = vsub.s32 0, %v213
  %v215 = vrot.slane %v210, %v214
  %v218 = vsel %vm51, %v205, 0
  %220 = vmatprep.subr.mxu0 0.0
  %221 = vmatpush1.msra.mxu0 %v206
  %222 = vmatprep.subr.mxu0 0.0
  %223 = vmatpush1.msra.mxu0 %v207
  %224 = vmatprep.subr.mxu0 0.0
  %225 = vmatpush1.msra.mxu0 %v208
  %226 = vmatprep.subr.mxu0 0.0
  %227 = vmatpush1.msra.mxu0 %v209
  %228 = vmatprep.subr.mxu0 0.0
  %229 = vmatpush1.msra.mxu0 0.0
  %230 = vmatprep.subr.mxu0 0.0
  %231 = vmatpush1.msra.mxu0 0.0
  %232 = vmatprep.subr.mxu0 0.0
  %233 = vmatpush1.msra.mxu0 0.0
  %234 = vmatprep.subr.mxu0 0.0
  %235 = vmatpush1.msra.mxu0 0.0
  %236 = vmatprep.subr.mxu0 0.0
  %237 = vmatpush1.msra.mxu0 0.0
  %238 = vmatprep.subr.mxu0 0.0
  %239 = vmatpush1.msra.mxu0 0.0
  %240 = vmatprep.subr.mxu0 0.0
  %241 = vmatpush1.msra.mxu0 0.0
  %242 = vmatprep.subr.mxu0 0.0
  %243 = vmatpush1.msra.mxu0 0.0
  %244 = vmatprep.subr.mxu0 0.0
  %245 = vmatpush1.msra.mxu0 0.0
  %246 = vmatprep.subr.mxu0 0.0
  %247 = vmatpush1.msra.mxu0 0.0
  %248 = vmatprep.subr.mxu0 0.0
  %249 = vmatpush1.msra.mxu0 0.0
  %250 = vmatprep.subr.mxu0 0.0
  %251 = vmatpush1.msra.mxu0 0.0
  %252 = vmatprep.subr.mxu0 0.0
  %253 = vmatpush1.msra.mxu0 0.0
  %254 = vmatprep.subr.mxu0 0.0
  %255 = vmatpush1.msra.mxu0 0.0
  %256 = vmatprep.subr.mxu0 0.0
  %257 = vmatpush1.msra.mxu0 0.0
  %258 = vmatprep.subr.mxu0 0.0
  %259 = vmatpush1.msra.mxu0 0.0
  %260 = vmatprep.subr.mxu0 0.0
  %261 = vmatpush1.msra.mxu0 0.0
  %262 = vmatprep.subr.mxu0 0.0
  %263 = vmatpush1.msra.mxu0 0.0
  %264 = vmatprep.subr.mxu0 0.0
  %265 = vmatpush1.msra.mxu0 0.0
  %266 = vmatprep.subr.mxu0 0.0
  %267 = vmatpush1.msra.mxu0 0.0
  %268 = vmatprep.subr.mxu0 0.0
  %269 = vmatpush1.msra.mxu0 0.0
  %270 = vmatprep.subr.mxu0 0.0
  %271 = vmatpush1.msra.mxu0 0.0
  %272 = vmatprep.subr.mxu0 0.0
  %273 = vmatpush1.msra.mxu0 0.0
  %274 = vmatprep.subr.mxu0 0.0
  %275 = vmatpush1.msra.mxu0 0.0
  %276 = vmatprep.subr.mxu0 0.0
  %277 = vmatpush1.msra.mxu0 0.0
  %278 = vmatprep.subr.mxu0 0.0
  %279 = vmatpush1.msra.mxu0 0.0
  %280 = vmatprep.subr.mxu0 0.0
  %281 = vmatpush1.msra.mxu0 0.0
  %282 = vmatprep.subr.mxu0 0.0
  %283 = vmatpush1.msra.mxu0 0.0
  %284 = vmatprep.mubr.f32.mxu0 0.0
  %285 = vmatmul.mubr.f32.gmra.mrb[0].mxu0 %v218
  %v286 = vpop.f32.mrb[0].mxu0
  %v287 = vadd.f32 %v215, %v286
  %v288 = vpop.f32.mrb[0].mxu0
  %289 = vdwg.mxu0
  %v290 = vld [vmem:[%s0] sm:$0xff]
  %v291 = vld [vmem:[%s0 + $0x8] sm:$0xff]
  %v292 = vld [vmem:[%s0 + $0x10] sm:$0xff]
  %v293 = vld [vmem:[%s0 + $0x18] sm:$0xff]
  %v294 = vld [vmem:[%s0 + $0x20] sm:$0xff]
  %v295 = vld [vmem:[%s0 + $0x28] sm:$0xff]
  %v296 = vld [vmem:[%s0 + $0x30] sm:$0xff]
  %v297 = vld [vmem:[%s0 + $0x38] sm:$0xff]
  %v298 = vld [vmem:[%s7] sm:$0xff]
  %v299 = vld [vmem:[%s7 + $0x8] sm:$0xff]
  %vm300 = vcmask 130048
  %v302 = vsel %vm300, %v290, 0
  %v305 = vsel %vm300, %v291, 0
  %v308 = vsel %vm300, %v292, 0
  %v311 = vsel %vm300, %v293, 0
  %v314 = vsel %vm300, %v294, 0
  %v317 = vsel %vm300, %v295, 0
  %v320 = vsel %vm300, %v296, 0
  %v323 = vsel %vm300, %v297, 0
  %325 = vmatprep.subr.mxu0 0.0
  %326 = vmatpush1.msra.mxu0 %v298
  %327 = vmatprep.subr.mxu0 0.0
  %328 = vmatpush1.msra.mxu0 %v299
  %329 = vmatprep.subr.mxu0 0.0
  %330 = vmatpush1.msra.mxu0 0.0
  %331 = vmatprep.subr.mxu0 0.0
  %332 = vmatpush1.msra.mxu0 0.0
  %333 = vmatprep.subr.mxu0 0.0
  %334 = vmatpush1.msra.mxu0 0.0
  %335 = vmatprep.subr.mxu0 0.0
  %336 = vmatpush1.msra.mxu0 0.0
  %337 = vmatprep.subr.mxu0 0.0
  %338 = vmatpush1.msra.mxu0 0.0
  %339 = vmatprep.subr.mxu0 0.0
  %340 = vmatpush1.msra.mxu0 0.0
  %341 = vmatprep.subr.mxu0 0.0
  %342 = vmatpush1.msra.mxu0 0.0
  %343 = vmatprep.subr.mxu0 0.0
  %344 = vmatpush1.msra.mxu0 0.0
  %345 = vmatprep.subr.mxu0 0.0
  %346 = vmatpush1.msra.mxu0 0.0
  %347 = vmatprep.subr.mxu0 0.0
  %348 = vmatpush1.msra.mxu0 0.0
  %349 = vmatprep.subr.mxu0 0.0
  %350 = vmatpush1.msra.mxu0 0.0
  %351 = vmatprep.subr.mxu0 0.0
  %352 = vmatpush1.msra.mxu0 0.0
  %353 = vmatprep.subr.mxu0 0.0
  %354 = vmatpush1.msra.mxu0 0.0
  %355 = vmatprep.subr.mxu0 0.0
  %356 = vmatpush1.msra.mxu0 0.0
  %357 = vmatprep.subr.mxu0 0.0
  %358 = vmatpush1.msra.mxu0 0.0
  %359 = vmatprep.subr.mxu0 0.0
  %360 = vmatpush1.msra.mxu0 0.0
  %361 = vmatprep.subr.mxu0 0.0
  %362 = vmatpush1.msra.mxu0 0.0
  %363 = vmatprep.subr.mxu0 0.0
  %364 = vmatpush1.msra.mxu0 0.0
  %365 = vmatprep.subr.mxu0 0.0
  %366 = vmatpush1.msra.mxu0 0.0
  %367 = vmatprep.subr.mxu0 0.0
  %368 = vmatpush1.msra.mxu0 0.0
  %369 = vmatprep.subr.mxu0 0.0
  %370 = vmatpush1.msra.mxu0 0.0
  %371 = vmatprep.subr.mxu0 0.0
  %372 = vmatpush1.msra.mxu0 0.0
  %373 = vmatprep.subr.mxu0 0.0
  %374 = vmatpush1.msra.mxu0 0.0
  %375 = vmatprep.subr.mxu0 0.0
  %376 = vmatpush1.msra.mxu0 0.0
  %377 = vmatprep.subr.mxu0 0.0
  %378 = vmatpush1.msra.mxu0 0.0
  %379 = vmatprep.subr.mxu0 0.0
  %380 = vmatpush1.msra.mxu0 0.0
  %381 = vmatprep.subr.mxu0 0.0
  %382 = vmatpush1.msra.mxu0 0.0
  %383 = vmatprep.subr.mxu0 0.0
  %384 = vmatpush1.msra.mxu0 0.0
  %385 = vmatprep.subr.mxu0 0.0
  %386 = vmatpush1.msra.mxu0 0.0
  %387 = vmatprep.subr.mxu0 0.0
  %388 = vmatpush1.msra.mxu0 0.0
  %389 = vmatprep.mubr.f32.mxu0 0.0
  %390 = vmatmul.mubr.f32.gmra.mrb[0].mxu0 %v302
  %v391 = vpop.f32.mrb[0].mxu0
  %v392 = vadd.f32 0.0, %v391
  %v393 = vpop.f32.mrb[0].mxu0
  %394 = vmatprep.mubr.f32.mxu0 0.0
  %395 = vmatmul.mubr.f32.gmra.mrb[0].mxu0 %v305
  %v396 = vpop.f32.mrb[0].mxu0
  %v397 = vadd.f32 0.0, %v396
  %v398 = vpop.f32.mrb[0].mxu0
  %399 = vmatprep.mubr.f32.mxu0 0.0
  %400 = vmatmul.mubr.f32.gmra.mrb[0].mxu0 %v308
  %v401 = vpop.f32.mrb[0].mxu0
  %v402 = vadd.f32 0.0, %v401
  %v403 = vpop.f32.mrb[0].mxu0
  %404 = vmatprep.mubr.f32.mxu0 0.0
  %405 = vmatmul.mubr.f32.gmra.mrb[0].mxu0 %v311
  %v406 = vpop.f32.mrb[0].mxu0
  %v407 = vadd.f32 0.0, %v406
  %v408 = vpop.f32.mrb[0].mxu0
  %409 = vmatprep.mubr.f32.mxu0 0.0
  %410 = vmatmul.mubr.f32.gmra.mrb[0].mxu0 %v314
  %v411 = vpop.f32.mrb[0].mxu0
  %v412 = vadd.f32 0.0, %v411
  %v413 = vpop.f32.mrb[0].mxu0
  %414 = vmatprep.mubr.f32.mxu0 0.0
  %415 = vmatmul.mubr.f32.gmra.mrb[0].mxu0 %v317
  %v416 = vpop.f32.mrb[0].mxu0
  %v417 = vadd.f32 0.0, %v416
  %v418 = vpop.f32.mrb[0].mxu0
  %419 = vmatprep.mubr.f32.mxu0 0.0
  %420 = vmatmul.mubr.f32.gmra.mrb[0].mxu0 %v320
  %v421 = vpop.f32.mrb[0].mxu0
  %v422 = vadd.f32 0.0, %v421
  %v423 = vpop.f32.mrb[0].mxu0
  %424 = vmatprep.mubr.f32.mxu0 0.0
  %425 = vmatmul.mubr.f32.gmra.mrb[0].mxu0 %v323
  %v426 = vpop.f32.mrb[0].mxu0
  %v427 = vadd.f32 0.0, %v426
  %v428 = vpop.f32.mrb[0].mxu0
  %429 = vdwg.mxu0
  %v431 = vcombine.high %v287, %v287
  %v433 = vunpack.c.l.s4 1966171168
  %v434 = vunpack.c.0.s8 %v433
  %v435 = vlaneseq
  %v436 = vshrl.u32 %v435, 7
  %v437 = vsub.s32 %v434, %v436
  %v438 = vrot.slane %v287, %v437
  %v440 = vunpack.c.l.s4 1966171168
  %v441 = vunpack.c.0.s8 %v440
  %v442 = vlaneseq
  %v443 = vshrl.u32 %v442, 7
  %v444 = vsub.s32 %v441, %v443
  %v445 = vrot.slane %v431, %v444
  %v446 = vcombine.high %v438, %v438
  %v447 = vcombine.high %v445, %v445
  %v449 = vunpack.c.l.s4 1966171168
  %v450 = vunpack.c.0.s8 %v449
  %v451 = vlaneseq
  %v452 = vshrl.u32 %v451, 7
  %v453 = vsub.s32 %v450, %v452
  %v454 = vrot.slane %v438, %v453
  %v456 = vunpack.c.l.s4 1966171168
  %v457 = vunpack.c.0.s8 %v456
  %v458 = vlaneseq
  %v459 = vshrl.u32 %v458, 7
  %v460 = vsub.s32 %v457, %v459
  %v461 = vrot.slane %v445, %v460
  %v463 = vunpack.c.l.s4 1966171168
  %v464 = vunpack.c.0.s8 %v463
  %v465 = vlaneseq
  %v466 = vshrl.u32 %v465, 7
  %v467 = vsub.s32 %v464, %v466
  %v468 = vrot.slane %v446, %v467
  %v470 = vunpack.c.l.s4 1966171168
  %v471 = vunpack.c.0.s8 %v470
  %v472 = vlaneseq
  %v473 = vshrl.u32 %v472, 7
  %v474 = vsub.s32 %v471, %v473
  %v475 = vrot.slane %v447, %v474
  %v476 = vcombine.high %v454, %v454
  %v477 = vcombine.high %v461, %v461
  %v478 = vcombine.high %v468, %v468
  %v479 = vcombine.high %v475, %v475
  %v480 = vlaneseq
  %v481 = vshrl.u32 %v480, 7
  %v482 = vsub.s32 0, %v481
  %v483 = vrot.slane %v454, %v482
  %v484 = vlaneseq
  %v485 = vshrl.u32 %v484, 7
  %v486 = vsub.s32 0, %v485
  %v487 = vrot.slane %v468, %v486
  %v488 = vlaneseq
  %v489 = vshrl.u32 %v488, 7
  %v490 = vsub.s32 0, %v489
  %v491 = vrot.slane %v476, %v490
  %v492 = vlaneseq
  %v493 = vshrl.u32 %v492, 7
  %v494 = vsub.s32 0, %v493
  %v495 = vrot.slane %v478, %v494
  %v496 = vlaneseq
  %v497 = vshrl.u32 %v496, 7
  %v498 = vsub.s32 0, %v497
  %v499 = vrot.slane %v461, %v498
  %v500 = vlaneseq
  %v501 = vshrl.u32 %v500, 7
  %v502 = vsub.s32 0, %v501
  %v503 = vrot.slane %v475, %v502
  %v504 = vlaneseq
  %v505 = vshrl.u32 %v504, 7
  %v506 = vsub.s32 0, %v505
  %v507 = vrot.slane %v477, %v506
  %v508 = vlaneseq
  %v509 = vshrl.u32 %v508, 7
  %v510 = vsub.s32 0, %v509
  %v511 = vrot.slane %v479, %v510
  %v520 = vadd.f32 %v392, %v483
  %v521 = vadd.f32 %v397, %v487
  %v522 = vadd.f32 %v402, %v491
  %v523 = vadd.f32 %v407, %v495
  %v524 = vadd.f32 %v412, %v499
  %v525 = vadd.f32 %v417, %v503
  %v526 = vadd.f32 %v422, %v507
  %v527 = vadd.f32 %v427, %v511
  %v528 = vld [vmem:[%s8] sm:$0xff]
  %v529 = vld [vmem:[%s8 + $0x8] sm:$0xff]
  %v530 = vld [vmem:[%s8 + $0x10] sm:$0xff]
  %v531 = vld [vmem:[%s8 + $0x18] sm:$0xff]
  %v533 = vsel %vm51, 0.0, 0
  %535 = vmatprep.subr.mxu0 0.0
  %536 = vmatpush1.msra.mxu0 %v528
  %537 = vmatprep.subr.mxu0 0.0
  %538 = vmatpush1.msra.mxu0 %v529
  %539 = vmatprep.subr.mxu0 0.0
  %540 = vmatpush1.msra.mxu0 %v530
  %541 = vmatprep.subr.mxu0 0.0
  %542 = vmatpush1.msra.mxu0 %v531
  %543 = vmatprep.subr.mxu0 0.0
  %544 = vmatpush1.msra.mxu0 0.0
  %545 = vmatprep.subr.mxu0 0.0
  %546 = vmatpush1.msra.mxu0 0.0
  %547 = vmatprep.subr.mxu0 0.0
  %548 = vmatpush1.msra.mxu0 0.0
  %549 = vmatprep.subr.mxu0 0.0
  %550 = vmatpush1.msra.mxu0 0.0
  %551 = vmatprep.subr.mxu0 0.0
  %552 = vmatpush1.msra.mxu0 0.0
  %553 = vmatprep.subr.mxu0 0.0
  %554 = vmatpush1.msra.mxu0 0.0
  %555 = vmatprep.subr.mxu0 0.0
  %556 = vmatpush1.msra.mxu0 0.0
  %557 = vmatprep.subr.mxu0 0.0
  %558 = vmatpush1.msra.mxu0 0.0
  %559 = vmatprep.subr.mxu0 0.0
  %560 = vmatpush1.msra.mxu0 0.0
  %561 = vmatprep.subr.mxu0 0.0
  %562 = vmatpush1.msra.mxu0 0.0
  %563 = vmatprep.subr.mxu0 0.0
  %564 = vmatpush1.msra.mxu0 0.0
  %565 = vmatprep.subr.mxu0 0.0
  %566 = vmatpush1.msra.mxu0 0.0
  %567 = vmatprep.subr.mxu0 0.0
  %568 = vmatpush1.msra.mxu0 0.0
  %569 = vmatprep.subr.mxu0 0.0
  %570 = vmatpush1.msra.mxu0 0.0
  %571 = vmatprep.subr.mxu0 0.0
  %572 = vmatpush1.msra.mxu0 0.0
  %573 = vmatprep.subr.mxu0 0.0
  %574 = vmatpush1.msra.mxu0 0.0
  %575 = vmatprep.subr.mxu0 0.0
  %576 = vmatpush1.msra.mxu0 0.0
  %577 = vmatprep.subr.mxu0 0.0
  %578 = vmatpush1.msra.mxu0 0.0
  %579 = vmatprep.subr.mxu0 0.0
  %580 = vmatpush1.msra.mxu0 0.0
  %581 = vmatprep.subr.mxu0 0.0
  %582 = vmatpush1.msra.mxu0 0.0
  %583 = vmatprep.subr.mxu0 0.0
  %584 = vmatpush1.msra.mxu0 0.0
  %585 = vmatprep.subr.mxu0 0.0
  %586 = vmatpush1.msra.mxu0 0.0
  %587 = vmatprep.subr.mxu0 0.0
  %588 = vmatpush1.msra.mxu0 0.0
  %589 = vmatprep.subr.mxu0 0.0
  %590 = vmatpush1.msra.mxu0 0.0
  %591 = vmatprep.subr.mxu0 0.0
  %592 = vmatpush1.msra.mxu0 0.0
  %593 = vmatprep.subr.mxu0 0.0
  %594 = vmatpush1.msra.mxu0 0.0
  %595 = vmatprep.subr.mxu0 0.0
  %596 = vmatpush1.msra.mxu0 0.0
  %597 = vmatprep.subr.mxu0 0.0
  %598 = vmatpush1.msra.mxu0 0.0
  %599 = vmatprep.mubr.f32.mxu0 0.0
  %600 = vmatmul.mubr.f32.gmra.mrb[0].mxu0 %v533
  %v601 = vpop.f32.mrb[0].mxu0
  %v602 = vadd.f32 0.0, %v601
  %v603 = vpop.f32.mrb[0].mxu0
  %604 = vdwg.mxu0
  %v606 = vrot.slane %v602, 1
  %v607 = vrot.slane %v602, 2
  %v608 = vrot.slane %v602, 3
  %v609 = vrot.slane %v602, 4
  %v610 = vrot.slane %v602, 5
  %v611 = vrot.slane %v602, 6
  %v612 = vrot.slane %v602, 7
  %v621 = vadd.f32 %v520, %v602
  %v622 = vadd.f32 %v521, %v606
  %v623 = vadd.f32 %v522, %v607
  %v624 = vadd.f32 %v523, %v608
  %v625 = vadd.f32 %v524, %v609
  %v626 = vadd.f32 %v525, %v610
  %v627 = vadd.f32 %v526, %v611
  %v628 = vadd.f32 %v527, %v612
  %v629 = vxor.u32 %v621, 2147483648
  %v630 = vxor.u32 %v622, 2147483648
  %v631 = vxor.u32 %v623, 2147483648
  %v632 = vxor.u32 %v624, 2147483648
  %v633 = vxor.u32 %v625, 2147483648
  %v634 = vxor.u32 %v626, 2147483648
  %v635 = vxor.u32 %v627, 2147483648
  %v636 = vxor.u32 %v628, 2147483648
  %v637 = vmul.f32 %v629, 1.442695
  %v638 = vpow.pop %v637
  %v639 = vmul.f32 %v630, 1.442695
  %v640 = vpow.pop %v639
  %v641 = vmul.f32 %v631, 1.442695
  %v642 = vpow.pop %v641
  %v643 = vmul.f32 %v632, 1.442695
  %v644 = vpow.pop %v643
  %v645 = vmul.f32 %v633, 1.442695
  %v646 = vpow.pop %v645
  %v647 = vmul.f32 %v634, 1.442695
  %v648 = vpow.pop %v647
  %v649 = vmul.f32 %v635, 1.442695
  %v650 = vpow.pop %v649
  %v651 = vmul.f32 %v636, 1.442695
  %v652 = vpow.pop %v651
  %v653 = vadd.f32 %v638, 1.0
  %v654 = vadd.f32 %v640, 1.0
  %v655 = vadd.f32 %v642, 1.0
  %v656 = vadd.f32 %v644, 1.0
  %v657 = vadd.f32 %v646, 1.0
  %v658 = vadd.f32 %v648, 1.0
  %v659 = vadd.f32 %v650, 1.0
  %v660 = vadd.f32 %v652, 1.0
  %v661 = vrcp.pop %v653
  %v662 = vmul.f32 1.0, %v661
  %v663 = vrcp.pop %v654
  %v664 = vmul.f32 1.0, %v663
  %v665 = vrcp.pop %v655
  %v666 = vmul.f32 1.0, %v665
  %v667 = vrcp.pop %v656
  %v668 = vmul.f32 1.0, %v667
  %v669 = vrcp.pop %v657
  %v670 = vmul.f32 1.0, %v669
  %v671 = vrcp.pop %v658
  %v672 = vmul.f32 1.0, %v671
  %v673 = vrcp.pop %v659
  %v674 = vmul.f32 1.0, %v673
  %v675 = vrcp.pop %v660
  %v676 = vmul.f32 1.0, %v675
  %v677 = vtanh.pop %v621
  %v678 = vtanh.pop %v622
  %v679 = vtanh.pop %v623
  %v680 = vtanh.pop %v624
  %v681 = vtanh.pop %v625
  %v682 = vtanh.pop %v626
  %v683 = vtanh.pop %v627
  %v684 = vtanh.pop %v628
  %v685 = vmul.f32 %v662, 0.0
  %v686 = vmul.f32 %v664, 0.0
  %v687 = vmul.f32 %v666, 0.0
  %v688 = vmul.f32 %v668, 0.0
  %v689 = vmul.f32 %v670, 0.0
  %v690 = vmul.f32 %v672, 0.0
  %v691 = vmul.f32 %v674, 0.0
  %v692 = vmul.f32 %v676, 0.0
  %701 = vrot.lane.b32.xlu0 %v677, 32
  %v702 = vpop.permute.xlu0 %701
  %703 = vrot.lane.b32.xlu0 %v678, 32
  %v704 = vpop.permute.xlu0 %703
  %705 = vrot.lane.b32.xlu0 %v679, 32
  %v706 = vpop.permute.xlu0 %705
  %707 = vrot.lane.b32.xlu0 %v680, 32
  %v708 = vpop.permute.xlu0 %707
  %709 = vrot.lane.b32.xlu0 %v681, 32
  %v710 = vpop.permute.xlu0 %709
  %711 = vrot.lane.b32.xlu0 %v682, 32
  %v712 = vpop.permute.xlu0 %711
  %713 = vrot.lane.b32.xlu0 %v683, 32
  %v714 = vpop.permute.xlu0 %713
  %715 = vrot.lane.b32.xlu0 %v684, 32
  %v716 = vpop.permute.xlu0 %715
  %v725 = vmul.f32 %v662, %v702
  %v726 = vmul.f32 %v664, %v704
  %v727 = vmul.f32 %v666, %v706
  %v728 = vmul.f32 %v668, %v708
  %v729 = vmul.f32 %v670, %v710
  %v730 = vmul.f32 %v672, %v712
  %v731 = vmul.f32 %v674, %v714
  %v732 = vmul.f32 %v676, %v716
  %741 = vrot.lane.b32.xlu0 %v725, 32
  %v742 = vpop.permute.xlu0 %741
  %743 = vrot.lane.b32.xlu0 %v726, 32
  %v744 = vpop.permute.xlu0 %743
  %745 = vrot.lane.b32.xlu0 %v727, 32
  %v746 = vpop.permute.xlu0 %745
  %747 = vrot.lane.b32.xlu0 %v728, 32
  %v748 = vpop.permute.xlu0 %747
  %749 = vrot.lane.b32.xlu0 %v729, 32
  %v750 = vpop.permute.xlu0 %749
  %751 = vrot.lane.b32.xlu0 %v730, 32
  %v752 = vpop.permute.xlu0 %751
  %753 = vrot.lane.b32.xlu0 %v731, 32
  %v754 = vpop.permute.xlu0 %753
  %755 = vrot.lane.b32.xlu0 %v732, 32
  %v756 = vpop.permute.xlu0 %755
  %v765 = vadd.f32 %v685, %v742
  %v766 = vadd.f32 %v686, %v744
  %v767 = vadd.f32 %v687, %v746
  %v768 = vadd.f32 %v688, %v748
  %v769 = vadd.f32 %v689, %v750
  %v770 = vadd.f32 %v690, %v752
  %v771 = vadd.f32 %v691, %v754
  %v772 = vadd.f32 %v692, %v756
  %v773 = vtanh.pop %v765
  %v774 = vtanh.pop %v766
  %v775 = vtanh.pop %v767
  %v776 = vtanh.pop %v768
  %v777 = vtanh.pop %v769
  %v778 = vtanh.pop %v770
  %v779 = vtanh.pop %v771
  %v780 = vtanh.pop %v772
  %789 = vrot.lane.b32.xlu0 %v773, 32
  %v790 = vpop.permute.xlu0 %789
  %791 = vrot.lane.b32.xlu0 %v774, 32
  %v792 = vpop.permute.xlu0 %791
  %793 = vrot.lane.b32.xlu0 %v775, 32
  %v794 = vpop.permute.xlu0 %793
  %795 = vrot.lane.b32.xlu0 %v776, 32
  %v796 = vpop.permute.xlu0 %795
  %797 = vrot.lane.b32.xlu0 %v777, 32
  %v798 = vpop.permute.xlu0 %797
  %799 = vrot.lane.b32.xlu0 %v778, 32
  %v800 = vpop.permute.xlu0 %799
  %801 = vrot.lane.b32.xlu0 %v779, 32
  %v802 = vpop.permute.xlu0 %801
  %803 = vrot.lane.b32.xlu0 %v780, 32
  %v804 = vpop.permute.xlu0 %803
  %v813 = vmul.f32 %v662, %v790
  %v814 = vmul.f32 %v664, %v792
  %v815 = vmul.f32 %v666, %v794
  %v816 = vmul.f32 %v668, %v796
  %v817 = vmul.f32 %v670, %v798
  %v818 = vmul.f32 %v672, %v800
  %v819 = vmul.f32 %v674, %v802
  %v820 = vmul.f32 %v676, %v804
  %v829 = vrot.slane %v814, 7
  %vm830 = vcmask 1041409
  %v831 = vsel %vm830, %v829, %v813
  %v832 = vrot.slane %v815, 6
  %vm833 = vcmask 1042434
  %v834 = vsel %vm833, %v832, %v831
  %v835 = vrot.slane %v816, 5
  %vm836 = vcmask 1043459
  %v837 = vsel %vm836, %v835, %v834
  %v838 = vrot.slane %v817, 4
  %vm839 = vcmask 1044484
  %v840 = vsel %vm839, %v838, %v837
  %v841 = vrot.slane %v818, 3
  %vm842 = vcmask 1045509
  %v843 = vsel %vm842, %v841, %v840
  %v844 = vrot.slane %v819, 2
  %vm845 = vcmask 1046534
  %v846 = vsel %vm845, %v844, %v843
  %v847 = vrot.slane %v820, 1
  %vm848 = vcmask 1047559
  %v849 = vsel %vm848, %v847, %v846
  %850 = vrot.lane.b32.xlu0 %v849, 64
  %v851 = vpop.permute.xlu0 %850
  %v852 = vsel %vm51, %v851, 0
  %854 = vmatprep.subr.mxu0 0.0
  %855 = vmatpush1.msra.mxu0 %v528
  %856 = vmatprep.subr.mxu0 0.0
  %857 = vmatpush1.msra.mxu0 %v529
  %858 = vmatprep.subr.mxu0 0.0
  %859 = vmatpush1.msra.mxu0 %v530
  %860 = vmatprep.subr.mxu0 0.0
  %861 = vmatpush1.msra.mxu0 %v531
  %862 = vmatprep.subr.mxu0 0.0
  %863 = vmatpush1.msra.mxu0 0.0
  %864 = vmatprep.subr.mxu0 0.0
  %865 = vmatpush1.msra.mxu0 0.0
  %866 = vmatprep.subr.mxu0 0.0
  %867 = vmatpush1.msra.mxu0 0.0
  %868 = vmatprep.subr.mxu0 0.0
  %869 = vmatpush1.msra.mxu0 0.0
  %870 = vmatprep.subr.mxu0 0.0
  %871 = vmatpush1.msra.mxu0 0.0
  %872 = vmatprep.subr.mxu0 0.0
  %873 = vmatpush1.msra.mxu0 0.0
  %874 = vmatprep.subr.mxu0 0.0
  %875 = vmatpush1.msra.mxu0 0.0
  %876 = vmatprep.subr.mxu0 0.0
  %877 = vmatpush1.msra.mxu0 0.0
  %878 = vmatprep.subr.mxu0 0.0
  %879 = vmatpush1.msra.mxu0 0.0
  %880 = vmatprep.subr.mxu0 0.0
  %881 = vmatpush1.msra.mxu0 0.0
  %882 = vmatprep.subr.mxu0 0.0
  %883 = vmatpush1.msra.mxu0 0.0
  %884 = vmatprep.subr.mxu0 0.0
  %885 = vmatpush1.msra.mxu0 0.0
  %886 = vmatprep.subr.mxu0 0.0
  %887 = vmatpush1.msra.mxu0 0.0
  %888 = vmatprep.subr.mxu0 0.0
  %889 = vmatpush1.msra.mxu0 0.0
  %890 = vmatprep.subr.mxu0 0.0
  %891 = vmatpush1.msra.mxu0 0.0
  %892 = vmatprep.subr.mxu0 0.0
  %893 = vmatpush1.msra.mxu0 0.0
  %894 = vmatprep.subr.mxu0 0.0
  %895 = vmatpush1.msra.mxu0 0.0
  %896 = vmatprep.subr.mxu0 0.0
  %897 = vmatpush1.msra.mxu0 0.0
  %898 = vmatprep.subr.mxu0 0.0
  %899 = vmatpush1.msra.mxu0 0.0
  %900 = vmatprep.subr.mxu0 0.0
  %901 = vmatpush1.msra.mxu0 0.0
  %902 = vmatprep.subr.mxu0 0.0
  %903 = vmatpush1.msra.mxu0 0.0
  %904 = vmatprep.subr.mxu0 0.0
  %905 = vmatpush1.msra.mxu0 0.0
  %906 = vmatprep.subr.mxu0 0.0
  %907 = vmatpush1.msra.mxu0 0.0
  %908 = vmatprep.subr.mxu0 0.0
  %909 = vmatpush1.msra.mxu0 0.0
  %910 = vmatprep.subr.mxu0 0.0
  %911 = vmatpush1.msra.mxu0 0.0
  %912 = vmatprep.subr.mxu0 0.0
  %913 = vmatpush1.msra.mxu0 0.0
  %914 = vmatprep.subr.mxu0 0.0
  %915 = vmatpush1.msra.mxu0 0.0
  %916 = vmatprep.subr.mxu0 0.0
  %917 = vmatpush1.msra.mxu0 0.0
  %918 = vmatprep.mubr.f32.mxu0 0.0
  %919 = vmatmul.mubr.f32.gmra.mrb[0].mxu0 %v852
  %v920 = vpop.f32.mrb[0].mxu0
  %v921 = vadd.f32 0.0, %v920
  %v922 = vpop.f32.mrb[0].mxu0
  %923 = vdwg.mxu0
  %v925 = vrot.slane %v921, 7
  %v926 = vrot.slane %v921, 1
  %v927 = vrot.slane %v921, 2
  %v928 = vrot.slane %v921, 3
  %v929 = vrot.slane %v921, 4
  %v930 = vrot.slane %v921, 5
  %v931 = vrot.slane %v921, 6
  %v940 = vadd.f32 %v520, %v925
  %v941 = vadd.f32 %v521, %v921
  %v942 = vadd.f32 %v522, %v926
  %v943 = vadd.f32 %v523, %v927
  %v944 = vadd.f32 %v524, %v928
  %v945 = vadd.f32 %v525, %v929
  %v946 = vadd.f32 %v526, %v930
  %v947 = vadd.f32 %v527, %v931
  %v948 = vxor.u32 %v940, 2147483648
  %v949 = vxor.u32 %v941, 2147483648
  %v950 = vxor.u32 %v942, 2147483648
  %v951 = vxor.u32 %v943, 2147483648
  %v952 = vxor.u32 %v944, 2147483648
  %v953 = vxor.u32 %v945, 2147483648
  %v954 = vxor.u32 %v946, 2147483648
  %v955 = vxor.u32 %v947, 2147483648
  %v956 = vmul.f32 %v948, 1.442695
  %v957 = vpow.pop %v956
  %v958 = vmul.f32 %v949, 1.442695
  %v959 = vpow.pop %v958
  %v960 = vmul.f32 %v950, 1.442695
  %v961 = vpow.pop %v960
  %v962 = vmul.f32 %v951, 1.442695
  %v963 = vpow.pop %v962
  %v964 = vmul.f32 %v952, 1.442695
  %v965 = vpow.pop %v964
  %v966 = vmul.f32 %v953, 1.442695
  %v967 = vpow.pop %v966
  %v968 = vmul.f32 %v954, 1.442695
  %v969 = vpow.pop %v968
  %v970 = vmul.f32 %v955, 1.442695
  %v971 = vpow.pop %v970
  %v972 = vadd.f32 %v957, 1.0
  %v973 = vadd.f32 %v959, 1.0
  %v974 = vadd.f32 %v961, 1.0
  %v975 = vadd.f32 %v963, 1.0
  %v976 = vadd.f32 %v965, 1.0
  %v977 = vadd.f32 %v967, 1.0
  %v978 = vadd.f32 %v969, 1.0
  %v979 = vadd.f32 %v971, 1.0
  %v980 = vrcp.pop %v972
  %v981 = vmul.f32 1.0, %v980
  %v982 = vrcp.pop %v973
  %v983 = vmul.f32 1.0, %v982
  %v984 = vrcp.pop %v974
  %v985 = vmul.f32 1.0, %v984
  %v986 = vrcp.pop %v975
  %v987 = vmul.f32 1.0, %v986
  %v988 = vrcp.pop %v976
  %v989 = vmul.f32 1.0, %v988
  %v990 = vrcp.pop %v977
  %v991 = vmul.f32 1.0, %v990
  %v992 = vrcp.pop %v978
  %v993 = vmul.f32 1.0, %v992
  %v994 = vrcp.pop %v979
  %v995 = vmul.f32 1.0, %v994
  %v996 = vtanh.pop %v940
  %v997 = vtanh.pop %v941
  %v998 = vtanh.pop %v942
  %v999 = vtanh.pop %v943
  %v1000 = vtanh.pop %v944
  %v1001 = vtanh.pop %v945
  %v1002 = vtanh.pop %v946
  %v1003 = vtanh.pop %v947
  %v1012 = vrot.slane %v765, 7
  %v1013 = vrot.slane %v766, 7
  %v1014 = vrot.slane %v767, 7
  %v1015 = vrot.slane %v768, 7
  %v1016 = vrot.slane %v769, 7
  %v1017 = vrot.slane %v770, 7
  %v1018 = vrot.slane %v771, 7
  %v1019 = vrot.slane %v772, 7
  %v1028 = vmul.f32 %v981, %v1012
  %v1029 = vmul.f32 %v983, %v1013
  %v1030 = vmul.f32 %v985, %v1014
  %v1031 = vmul.f32 %v987, %v1015
  %v1032 = vmul.f32 %v989, %v1016
  %v1033 = vmul.f32 %v991, %v1017
  %v1034 = vmul.f32 %v993, %v1018
  %v1035 = vmul.f32 %v995, %v1019
  %1044 = vrot.lane.b32.xlu0 %v996, 32
  %v1045 = vpop.permute.xlu0 %1044
  %1046 = vrot.lane.b32.xlu0 %v997, 32
  %v1047 = vpop.permute.xlu0 %1046
  %1048 = vrot.lane.b32.xlu0 %v998, 32
  %v1049 = vpop.permute.xlu0 %1048
  %1050 = vrot.lane.b32.xlu0 %v999, 32
  %v1051 = vpop.permute.xlu0 %1050
  %1052 = vrot.lane.b32.xlu0 %v1000, 32
  %v1053 = vpop.permute.xlu0 %1052
  %1054 = vrot.lane.b32.xlu0 %v1001, 32
  %v1055 = vpop.permute.xlu0 %1054
  %1056 = vrot.lane.b32.xlu0 %v1002, 32
  %v1057 = vpop.permute.xlu0 %1056
  %1058 = vrot.lane.b32.xlu0 %v1003, 32
  %v1059 = vpop.permute.xlu0 %1058
  %v1068 = vmul.f32 %v981, %v1045
  %v1069 = vmul.f32 %v983, %v1047
  %v1070 = vmul.f32 %v985, %v1049
  %v1071 = vmul.f32 %v987, %v1051
  %v1072 = vmul.f32 %v989, %v1053
  %v1073 = vmul.f32 %v991, %v1055
  %v1074 = vmul.f32 %v993, %v1057
  %v1075 = vmul.f32 %v995, %v1059
  %1084 = vrot.lane.b32.xlu0 %v1068, 32
  %v1085 = vpop.permute.xlu0 %1084
  %1086 = vrot.lane.b32.xlu0 %v1069, 32
  %v1087 = vpop.permute.xlu0 %1086
  %1088 = vrot.lane.b32.xlu0 %v1070, 32
  %v1089 = vpop.permute.xlu0 %1088
  %1090 = vrot.lane.b32.xlu0 %v1071, 32
  %v1091 = vpop.permute.xlu0 %1090
  %1092 = vrot.lane.b32.xlu0 %v1072, 32
  %v1093 = vpop.permute.xlu0 %1092
  %1094 = vrot.lane.b32.xlu0 %v1073, 32
  %v1095 = vpop.permute.xlu0 %1094
  %1096 = vrot.lane.b32.xlu0 %v1074, 32
  %v1097 = vpop.permute.xlu0 %1096
  %1098 = vrot.lane.b32.xlu0 %v1075, 32
  %v1099 = vpop.permute.xlu0 %1098
  %v1108 = vadd.f32 %v1028, %v1085
  %v1109 = vadd.f32 %v1029, %v1087
  %v1110 = vadd.f32 %v1030, %v1089
  %v1111 = vadd.f32 %v1031, %v1091
  %v1112 = vadd.f32 %v1032, %v1093
  %v1113 = vadd.f32 %v1033, %v1095
  %v1114 = vadd.f32 %v1034, %v1097
  %v1115 = vadd.f32 %v1035, %v1099
  %v1116 = vtanh.pop %v1108
  %v1117 = vtanh.pop %v1109
  %v1118 = vtanh.pop %v1110
  %v1119 = vtanh.pop %v1111
  %v1120 = vtanh.pop %v1112
  %v1121 = vtanh.pop %v1113
  %v1122 = vtanh.pop %v1114
  %v1123 = vtanh.pop %v1115
  %1132 = vrot.lane.b32.xlu0 %v1116, 32
  %v1133 = vpop.permute.xlu0 %1132
  %1134 = vrot.lane.b32.xlu0 %v1117, 32
  %v1135 = vpop.permute.xlu0 %1134
  %1136 = vrot.lane.b32.xlu0 %v1118, 32
  %v1137 = vpop.permute.xlu0 %1136
  %1138 = vrot.lane.b32.xlu0 %v1119, 32
  %v1139 = vpop.permute.xlu0 %1138
  %1140 = vrot.lane.b32.xlu0 %v1120, 32
  %v1141 = vpop.permute.xlu0 %1140
  %1142 = vrot.lane.b32.xlu0 %v1121, 32
  %v1143 = vpop.permute.xlu0 %1142
  %1144 = vrot.lane.b32.xlu0 %v1122, 32
  %v1145 = vpop.permute.xlu0 %1144
  %1146 = vrot.lane.b32.xlu0 %v1123, 32
  %v1147 = vpop.permute.xlu0 %1146
  %v1156 = vmul.f32 %v981, %v1133
  %v1157 = vmul.f32 %v983, %v1135
  %v1158 = vmul.f32 %v985, %v1137
  %v1159 = vmul.f32 %v987, %v1139
  %v1160 = vmul.f32 %v989, %v1141
  %v1161 = vmul.f32 %v991, %v1143
  %v1162 = vmul.f32 %v993, %v1145
  %v1163 = vmul.f32 %v995, %v1147
  %v1172 = vrot.slane %v1156, 1
  %v1173 = vsel %vm830, %v1157, %v1172
  %v1174 = vrot.slane %v1158, 7
  %v1175 = vsel %vm833, %v1174, %v1173
  %v1176 = vrot.slane %v1159, 6
  %v1177 = vsel %vm836, %v1176, %v1175
  %v1178 = vrot.slane %v1160, 5
  %v1179 = vsel %vm839, %v1178, %v1177
  %v1180 = vrot.slane %v1161, 4
  %v1181 = vsel %vm842, %v1180, %v1179
  %v1182 = vrot.slane %v1162, 3
  %v1183 = vsel %vm845, %v1182, %v1181
  %v1184 = vrot.slane %v1163, 2
  %v1185 = vsel %vm848, %v1184, %v1183
  %1186 = vrot.lane.b32.xlu0 %v1185, 64
  %v1187 = vpop.permute.xlu0 %1186
  %v1188 = vsel %vm51, %v1187, 0
  %1190 = vmatprep.subr.mxu0 0.0
  %1191 = vmatpush1.msra.mxu0 %v528
  %1192 = vmatprep.subr.mxu0 0.0
  %1193 = vmatpush1.msra.mxu0 %v529
  %1194 = vmatprep.subr.mxu0 0.0
  %1195 = vmatpush1.msra.mxu0 %v530
  %1196 = vmatprep.subr.mxu0 0.0
  %1197 = vmatpush1.msra.mxu0 %v531
  %1198 = vmatprep.subr.mxu0 0.0
  %1199 = vmatpush1.msra.mxu0 0.0
  %1200 = vmatprep.subr.mxu0 0.0
  %1201 = vmatpush1.msra.mxu0 0.0
  %1202 = vmatprep.subr.mxu0 0.0
  %1203 = vmatpush1.msra.mxu0 0.0
  %1204 = vmatprep.subr.mxu0 0.0
  %1205 = vmatpush1.msra.mxu0 0.0
  %1206 = vmatprep.subr.mxu0 0.0
  %1207 = vmatpush1.msra.mxu0 0.0
  %1208 = vmatprep.subr.mxu0 0.0
  %1209 = vmatpush1.msra.mxu0 0.0
  %1210 = vmatprep.subr.mxu0 0.0
  %1211 = vmatpush1.msra.mxu0 0.0
  %1212 = vmatprep.subr.mxu0 0.0
  %1213 = vmatpush1.msra.mxu0 0.0
  %1214 = vmatprep.subr.mxu0 0.0
  %1215 = vmatpush1.msra.mxu0 0.0
  %1216 = vmatprep.subr.mxu0 0.0
  %1217 = vmatpush1.msra.mxu0 0.0
  %1218 = vmatprep.subr.mxu0 0.0
  %1219 = vmatpush1.msra.mxu0 0.0
  %1220 = vmatprep.subr.mxu0 0.0
  %1221 = vmatpush1.msra.mxu0 0.0
  %1222 = vmatprep.subr.mxu0 0.0
  %1223 = vmatpush1.msra.mxu0 0.0
  %1224 = vmatprep.subr.mxu0 0.0
  %1225 = vmatpush1.msra.mxu0 0.0
  %1226 = vmatprep.subr.mxu0 0.0
  %1227 = vmatpush1.msra.mxu0 0.0
  %1228 = vmatprep.subr.mxu0 0.0
  %1229 = vmatpush1.msra.mxu0 0.0
  %1230 = vmatprep.subr.mxu0 0.0
  %1231 = vmatpush1.msra.mxu0 0.0
  %1232 = vmatprep.subr.mxu0 0.0
  %1233 = vmatpush1.msra.mxu0 0.0
  %1234 = vmatprep.subr.mxu0 0.0
  %1235 = vmatpush1.msra.mxu0 0.0
  %1236 = vmatprep.subr.mxu0 0.0
  %1237 = vmatpush1.msra.mxu0 0.0
  %1238 = vmatprep.subr.mxu0 0.0
  %1239 = vmatpush1.msra.mxu0 0.0
  %1240 = vmatprep.subr.mxu0 0.0
  %1241 = vmatpush1.msra.mxu0 0.0
  %1242 = vmatprep.subr.mxu0 0.0
  %1243 = vmatpush1.msra.mxu0 0.0
  %1244 = vmatprep.subr.mxu0 0.0
  %1245 = vmatpush1.msra.mxu0 0.0
  %1246 = vmatprep.subr.mxu0 0.0
  %1247 = vmatpush1.msra.mxu0 0.0
  %1248 = vmatprep.subr.mxu0 0.0
  %1249 = vmatpush1.msra.mxu0 0.0
  %1250 = vmatprep.subr.mxu0 0.0
  %1251 = vmatpush1.msra.mxu0 0.0
  %1252 = vmatprep.subr.mxu0 0.0
  %1253 = vmatpush1.msra.mxu0 0.0
  %1254 = vmatprep.mubr.f32.mxu0 0.0
  %1255 = vmatmul.mubr.f32.gmra.mrb[0].mxu0 %v1188
  %v1256 = vpop.f32.mrb[0].mxu0
  %v1257 = vadd.f32 0.0, %v1256
  %v1258 = vpop.f32.mrb[0].mxu0
  %1259 = vdwg.mxu0
  %v1261 = vrot.slane %v1257, 6
  %v1262 = vrot.slane %v1257, 7
  %v1263 = vrot.slane %v1257, 1
  %v1264 = vrot.slane %v1257, 2
  %v1265 = vrot.slane %v1257, 3
  %v1266 = vrot.slane %v1257, 4
  %v1267 = vrot.slane %v1257, 5
  %v1276 = vadd.f32 %v520, %v1261
  %v1277 = vadd.f32 %v521, %v1262
  %v1278 = vadd.f32 %v522, %v1257
  %v1279 = vadd.f32 %v523, %v1263
  %v1280 = vadd.f32 %v524, %v1264
  %v1281 = vadd.f32 %v525, %v1265
  %v1282 = vadd.f32 %v526, %v1266
  %v1283 = vadd.f32 %v527, %v1267
  %v1284 = vxor.u32 %v1276, 2147483648
  %v1285 = vxor.u32 %v1277, 2147483648
  %v1286 = vxor.u32 %v1278, 2147483648
  %v1287 = vxor.u32 %v1279, 2147483648
  %v1288 = vxor.u32 %v1280, 2147483648
  %v1289 = vxor.u32 %v1281, 2147483648
  %v1290 = vxor.u32 %v1282, 2147483648
  %v1291 = vxor.u32 %v1283, 2147483648
  %v1292 = vmul.f32 %v1284, 1.442695
  %v1293 = vpow.pop %v1292
  %v1294 = vmul.f32 %v1285, 1.442695
  %v1295 = vpow.pop %v1294
  %v1296 = vmul.f32 %v1286, 1.442695
  %v1297 = vpow.pop %v1296
  %v1298 = vmul.f32 %v1287, 1.442695
  %v1299 = vpow.pop %v1298
  %v1300 = vmul.f32 %v1288, 1.442695
  %v1301 = vpow.pop %v1300
  %v1302 = vmul.f32 %v1289, 1.442695
  %v1303 = vpow.pop %v1302
  %v1304 = vmul.f32 %v1290, 1.442695
  %v1305 = vpow.pop %v1304
  %v1306 = vmul.f32 %v1291, 1.442695
  %v1307 = vpow.pop %v1306
  %v1308 = vadd.f32 %v1293, 1.0
  %v1309 = vadd.f32 %v1295, 1.0
  %v1310 = vadd.f32 %v1297, 1.0
  %v1311 = vadd.f32 %v1299, 1.0
  %v1312 = vadd.f32 %v1301, 1.0
  %v1313 = vadd.f32 %v1303, 1.0
  %v1314 = vadd.f32 %v1305, 1.0
  %v1315 = vadd.f32 %v1307, 1.0
  %v1316 = vrcp.pop %v1308
  %v1317 = vmul.f32 1.0, %v1316
  %v1318 = vrcp.pop %v1309
  %v1319 = vmul.f32 1.0, %v1318
  %v1320 = vrcp.pop %v1310
  %v1321 = vmul.f32 1.0, %v1320
  %v1322 = vrcp.pop %v1311
  %v1323 = vmul.f32 1.0, %v1322
  %v1324 = vrcp.pop %v1312
  %v1325 = vmul.f32 1.0, %v1324
  %v1326 = vrcp.pop %v1313
  %v1327 = vmul.f32 1.0, %v1326
  %v1328 = vrcp.pop %v1314
  %v1329 = vmul.f32 1.0, %v1328
  %v1330 = vrcp.pop %v1315
  %v1331 = vmul.f32 1.0, %v1330
  %v1332 = vtanh.pop %v1276
  %v1333 = vtanh.pop %v1277
  %v1334 = vtanh.pop %v1278
  %v1335 = vtanh.pop %v1279
  %v1336 = vtanh.pop %v1280
  %v1337 = vtanh.pop %v1281
  %v1338 = vtanh.pop %v1282
  %v1339 = vtanh.pop %v1283
  %v1348 = vrot.slane %v1108, 7
  %v1349 = vrot.slane %v1109, 7
  %v1350 = vrot.slane %v1110, 7
  %v1351 = vrot.slane %v1111, 7
  %v1352 = vrot.slane %v1112, 7
  %v1353 = vrot.slane %v1113, 7
  %v1354 = vrot.slane %v1114, 7
  %v1355 = vrot.slane %v1115, 7
  %v1364 = vmul.f32 %v1317, %v1348
  %v1365 = vmul.f32 %v1319, %v1349
  %v1366 = vmul.f32 %v1321, %v1350
  %v1367 = vmul.f32 %v1323, %v1351
  %v1368 = vmul.f32 %v1325, %v1352
  %v1369 = vmul.f32 %v1327, %v1353
  %v1370 = vmul.f32 %v1329, %v1354
  %v1371 = vmul.f32 %v1331, %v1355
  %1380 = vrot.lane.b32.xlu0 %v1332, 32
  %v1381 = vpop.permute.xlu0 %1380
  %1382 = vrot.lane.b32.xlu0 %v1333, 32
  %v1383 = vpop.permute.xlu0 %1382
  %1384 = vrot.lane.b32.xlu0 %v1334, 32
  %v1385 = vpop.permute.xlu0 %1384
  %1386 = vrot.lane.b32.xlu0 %v1335, 32
  %v1387 = vpop.permute.xlu0 %1386
  %1388 = vrot.lane.b32.xlu0 %v1336, 32
  %v1389 = vpop.permute.xlu0 %1388
  %1390 = vrot.lane.b32.xlu0 %v1337, 32
  %v1391 = vpop.permute.xlu0 %1390
  %1392 = vrot.lane.b32.xlu0 %v1338, 32
  %v1393 = vpop.permute.xlu0 %1392
  %1394 = vrot.lane.b32.xlu0 %v1339, 32
  %v1395 = vpop.permute.xlu0 %1394
  %v1404 = vmul.f32 %v1317, %v1381
  %v1405 = vmul.f32 %v1319, %v1383
  %v1406 = vmul.f32 %v1321, %v1385
  %v1407 = vmul.f32 %v1323, %v1387
  %v1408 = vmul.f32 %v1325, %v1389
  %v1409 = vmul.f32 %v1327, %v1391
  %v1410 = vmul.f32 %v1329, %v1393
  %v1411 = vmul.f32 %v1331, %v1395
  %1420 = vrot.lane.b32.xlu0 %v1404, 32
  %v1421 = vpop.permute.xlu0 %1420
  %1422 = vrot.lane.b32.xlu0 %v1405, 32
  %v1423 = vpop.permute.xlu0 %1422
  %1424 = vrot.lane.b32.xlu0 %v1406, 32
  %v1425 = vpop.permute.xlu0 %1424
  %1426 = vrot.lane.b32.xlu0 %v1407, 32
  %v1427 = vpop.permute.xlu0 %1426
  %1428 = vrot.lane.b32.xlu0 %v1408, 32
  %v1429 = vpop.permute.xlu0 %1428
  %1430 = vrot.lane.b32.xlu0 %v1409, 32
  %v1431 = vpop.permute.xlu0 %1430
  %1432 = vrot.lane.b32.xlu0 %v1410, 32
  %v1433 = vpop.permute.xlu0 %1432
  %1434 = vrot.lane.b32.xlu0 %v1411, 32
  %v1435 = vpop.permute.xlu0 %1434
  %v1444 = vadd.f32 %v1364, %v1421
  %v1445 = vadd.f32 %v1365, %v1423
  %v1446 = vadd.f32 %v1366, %v1425
  %v1447 = vadd.f32 %v1367, %v1427
  %v1448 = vadd.f32 %v1368, %v1429
  %v1449 = vadd.f32 %v1369, %v1431
  %v1450 = vadd.f32 %v1370, %v1433
  %v1451 = vadd.f32 %v1371, %v1435
  %v1452 = vtanh.pop %v1444
  %v1453 = vtanh.pop %v1445
  %v1454 = vtanh.pop %v1446
  %v1455 = vtanh.pop %v1447
  %v1456 = vtanh.pop %v1448
  %v1457 = vtanh.pop %v1449
  %v1458 = vtanh.pop %v1450
  %v1459 = vtanh.pop %v1451
  %1468 = vrot.lane.b32.xlu0 %v1452, 32
  %v1469 = vpop.permute.xlu0 %1468
  %1470 = vrot.lane.b32.xlu0 %v1453, 32
  %v1471 = vpop.permute.xlu0 %1470
  %1472 = vrot.lane.b32.xlu0 %v1454, 32
  %v1473 = vpop.permute.xlu0 %1472
  %1474 = vrot.lane.b32.xlu0 %v1455, 32
  %v1475 = vpop.permute.xlu0 %1474
  %1476 = vrot.lane.b32.xlu0 %v1456, 32
  %v1477 = vpop.permute.xlu0 %1476
  %1478 = vrot.lane.b32.xlu0 %v1457, 32
  %v1479 = vpop.permute.xlu0 %1478
  %1480 = vrot.lane.b32.xlu0 %v1458, 32
  %v1481 = vpop.permute.xlu0 %1480
  %1482 = vrot.lane.b32.xlu0 %v1459, 32
  %v1483 = vpop.permute.xlu0 %1482
  %v1492 = vmul.f32 %v1317, %v1469
  %v1493 = vmul.f32 %v1319, %v1471
  %v1494 = vmul.f32 %v1321, %v1473
  %v1495 = vmul.f32 %v1323, %v1475
  %v1496 = vmul.f32 %v1325, %v1477
  %v1497 = vmul.f32 %v1327, %v1479
  %v1498 = vmul.f32 %v1329, %v1481
  %v1499 = vmul.f32 %v1331, %v1483
  %v1508 = vrot.slane %v1492, 2
  %v1509 = vrot.slane %v1493, 1
  %v1510 = vsel %vm830, %v1509, %v1508
  %v1511 = vsel %vm833, %v1494, %v1510
  %v1512 = vrot.slane %v1495, 7
  %v1513 = vsel %vm836, %v1512, %v1511
  %v1514 = vrot.slane %v1496, 6
  %v1515 = vsel %vm839, %v1514, %v1513
  %v1516 = vrot.slane %v1497, 5
  %v1517 = vsel %vm842, %v1516, %v1515
  %v1518 = vrot.slane %v1498, 4
  %v1519 = vsel %vm845, %v1518, %v1517
  %v1520 = vrot.slane %v1499, 3
  %v1521 = vsel %vm848, %v1520, %v1519
  %1522 = vrot.lane.b32.xlu0 %v1521, 64
  %v1523 = vpop.permute.xlu0 %1522
  %v1524 = vsel %vm51, %v1523, 0
  %1526 = vmatprep.subr.mxu0 0.0
  %1527 = vmatpush1.msra.mxu0 %v528
  %1528 = vmatprep.subr.mxu0 0.0
  %1529 = vmatpush1.msra.mxu0 %v529
  %1530 = vmatprep.subr.mxu0 0.0
  %1531 = vmatpush1.msra.mxu0 %v530
  %1532 = vmatprep.subr.mxu0 0.0
  %1533 = vmatpush1.msra.mxu0 %v531
  %1534 = vmatprep.subr.mxu0 0.0
  %1535 = vmatpush1.msra.mxu0 0.0
  %1536 = vmatprep.subr.mxu0 0.0
  %1537 = vmatpush1.msra.mxu0 0.0
  %1538 = vmatprep.subr.mxu0 0.0
  %1539 = vmatpush1.msra.mxu0 0.0
  %1540 = vmatprep.subr.mxu0 0.0
  %1541 = vmatpush1.msra.mxu0 0.0
  %1542 = vmatprep.subr.mxu0 0.0
  %1543 = vmatpush1.msra.mxu0 0.0
  %1544 = vmatprep.subr.mxu0 0.0
  %1545 = vmatpush1.msra.mxu0 0.0
  %1546 = vmatprep.subr.mxu0 0.0
  %1547 = vmatpush1.msra.mxu0 0.0
  %1548 = vmatprep.subr.mxu0 0.0
  %1549 = vmatpush1.msra.mxu0 0.0
  %1550 = vmatprep.subr.mxu0 0.0
  %1551 = vmatpush1.msra.mxu0 0.0
  %1552 = vmatprep.subr.mxu0 0.0
  %1553 = vmatpush1.msra.mxu0 0.0
  %1554 = vmatprep.subr.mxu0 0.0
  %1555 = vmatpush1.msra.mxu0 0.0
  %1556 = vmatprep.subr.mxu0 0.0
  %1557 = vmatpush1.msra.mxu0 0.0
  %1558 = vmatprep.subr.mxu0 0.0
  %1559 = vmatpush1.msra.mxu0 0.0
  %1560 = vmatprep.subr.mxu0 0.0
  %1561 = vmatpush1.msra.mxu0 0.0
  %1562 = vmatprep.subr.mxu0 0.0
  %1563 = vmatpush1.msra.mxu0 0.0
  %1564 = vmatprep.subr.mxu0 0.0
  %1565 = vmatpush1.msra.mxu0 0.0
  %1566 = vmatprep.subr.mxu0 0.0
  %1567 = vmatpush1.msra.mxu0 0.0
  %1568 = vmatprep.subr.mxu0 0.0
  %1569 = vmatpush1.msra.mxu0 0.0
  %1570 = vmatprep.subr.mxu0 0.0
  %1571 = vmatpush1.msra.mxu0 0.0
  %1572 = vmatprep.subr.mxu0 0.0
  %1573 = vmatpush1.msra.mxu0 0.0
  %1574 = vmatprep.subr.mxu0 0.0
  %1575 = vmatpush1.msra.mxu0 0.0
  %1576 = vmatprep.subr.mxu0 0.0
  %1577 = vmatpush1.msra.mxu0 0.0
  %1578 = vmatprep.subr.mxu0 0.0
  %1579 = vmatpush1.msra.mxu0 0.0
  %1580 = vmatprep.subr.mxu0 0.0
  %1581 = vmatpush1.msra.mxu0 0.0
  %1582 = vmatprep.subr.mxu0 0.0
  %1583 = vmatpush1.msra.mxu0 0.0
  %1584 = vmatprep.subr.mxu0 0.0
  %1585 = vmatpush1.msra.mxu0 0.0
  %1586 = vmatprep.subr.mxu0 0.0
  %1587 = vmatpush1.msra.mxu0 0.0
  %1588 = vmatprep.subr.mxu0 0.0
  %1589 = vmatpush1.msra.mxu0 0.0
  %1590 = vmatprep.mubr.f32.mxu0 0.0
  %1591 = vmatmul.mubr.f32.gmra.mrb[0].mxu0 %v1524
  %v1592 = vpop.f32.mrb[0].mxu0
  %v1593 = vadd.f32 0.0, %v1592
  %v1594 = vpop.f32.mrb[0].mxu0
  %1595 = vdwg.mxu0
  %v1597 = vrot.slane %v1593, 5
  %v1598 = vrot.slane %v1593, 6
  %v1599 = vrot.slane %v1593, 7
  %v1600 = vrot.slane %v1593, 1
  %v1601 = vrot.slane %v1593, 2
  %v1602 = vrot.slane %v1593, 3
  %v1603 = vrot.slane %v1593, 4
  %v1612 = vadd.f32 %v520, %v1597
  %v1613 = vadd.f32 %v521, %v1598
  %v1614 = vadd.f32 %v522, %v1599
  %v1615 = vadd.f32 %v523, %v1593
  %v1616 = vadd.f32 %v524, %v1600
  %v1617 = vadd.f32 %v525, %v1601
  %v1618 = vadd.f32 %v526, %v1602
  %v1619 = vadd.f32 %v527, %v1603
  %v1620 = vxor.u32 %v1612, 2147483648
  %v1621 = vxor.u32 %v1613, 2147483648
  %v1622 = vxor.u32 %v1614, 2147483648
  %v1623 = vxor.u32 %v1615, 2147483648
  %v1624 = vxor.u32 %v1616, 2147483648
  %v1625 = vxor.u32 %v1617, 2147483648
  %v1626 = vxor.u32 %v1618, 2147483648
  %v1627 = vxor.u32 %v1619, 2147483648
  %v1628 = vmul.f32 %v1620, 1.442695
  %v1629 = vpow.pop %v1628
  %v1630 = vmul.f32 %v1621, 1.442695
  %v1631 = vpow.pop %v1630
  %v1632 = vmul.f32 %v1622, 1.442695
  %v1633 = vpow.pop %v1632
  %v1634 = vmul.f32 %v1623, 1.442695
  %v1635 = vpow.pop %v1634
  %v1636 = vmul.f32 %v1624, 1.442695
  %v1637 = vpow.pop %v1636
  %v1638 = vmul.f32 %v1625, 1.442695
  %v1639 = vpow.pop %v1638
  %v1640 = vmul.f32 %v1626, 1.442695
  %v1641 = vpow.pop %v1640
  %v1642 = vmul.f32 %v1627, 1.442695
  %v1643 = vpow.pop %v1642
  %v1644 = vadd.f32 %v1629, 1.0
  %v1645 = vadd.f32 %v1631, 1.0
  %v1646 = vadd.f32 %v1633, 1.0
  %v1647 = vadd.f32 %v1635, 1.0
  %v1648 = vadd.f32 %v1637, 1.0
  %v1649 = vadd.f32 %v1639, 1.0
  %v1650 = vadd.f32 %v1641, 1.0
  %v1651 = vadd.f32 %v1643, 1.0
  %v1652 = vrcp.pop %v1644
  %v1653 = vmul.f32 1.0, %v1652
  %v1654 = vrcp.pop %v1645
  %v1655 = vmul.f32 1.0, %v1654
  %v1656 = vrcp.pop %v1646
  %v1657 = vmul.f32 1.0, %v1656
  %v1658 = vrcp.pop %v1647
  %v1659 = vmul.f32 1.0, %v1658
  %v1660 = vrcp.pop %v1648
  %v1661 = vmul.f32 1.0, %v1660
  %v1662 = vrcp.pop %v1649
  %v1663 = vmul.f32 1.0, %v1662
  %v1664 = vrcp.pop %v1650
  %v1665 = vmul.f32 1.0, %v1664
  %v1666 = vrcp.pop %v1651
  %v1667 = vmul.f32 1.0, %v1666
  %v1668 = vtanh.pop %v1612
  %v1669 = vtanh.pop %v1613
  %v1670 = vtanh.pop %v1614
  %v1671 = vtanh.pop %v1615
  %v1672 = vtanh.pop %v1616
  %v1673 = vtanh.pop %v1617
  %v1674 = vtanh.pop %v1618
  %v1675 = vtanh.pop %v1619
  %v1684 = vrot.slane %v1444, 7
  %v1685 = vrot.slane %v1445, 7
  %v1686 = vrot.slane %v1446, 7
  %v1687 = vrot.slane %v1447, 7
  %v1688 = vrot.slane %v1448, 7
  %v1689 = vrot.slane %v1449, 7
  %v1690 = vrot.slane %v1450, 7
  %v1691 = vrot.slane %v1451, 7
  %v1700 = vmul.f32 %v1653, %v1684
  %v1701 = vmul.f32 %v1655, %v1685
  %v1702 = vmul.f32 %v1657, %v1686
  %v1703 = vmul.f32 %v1659, %v1687
  %v1704 = vmul.f32 %v1661, %v1688
  %v1705 = vmul.f32 %v1663, %v1689
  %v1706 = vmul.f32 %v1665, %v1690
  %v1707 = vmul.f32 %v1667, %v1691
  %1716 = vrot.lane.b32.xlu0 %v1668, 32
  %v1717 = vpop.permute.xlu0 %1716
  %1718 = vrot.lane.b32.xlu0 %v1669, 32
  %v1719 = vpop.permute.xlu0 %1718
  %1720 = vrot.lane.b32.xlu0 %v1670, 32
  %v1721 = vpop.permute.xlu0 %1720
  %1722 = vrot.lane.b32.xlu0 %v1671, 32
  %v1723 = vpop.permute.xlu0 %1722
  %1724 = vrot.lane.b32.xlu0 %v1672, 32
  %v1725 = vpop.permute.xlu0 %1724
  %1726 = vrot.lane.b32.xlu0 %v1673, 32
  %v1727 = vpop.permute.xlu0 %1726
  %1728 = vrot.lane.b32.xlu0 %v1674, 32
  %v1729 = vpop.permute.xlu0 %1728
  %1730 = vrot.lane.b32.xlu0 %v1675, 32
  %v1731 = vpop.permute.xlu0 %1730
  %v1740 = vmul.f32 %v1653, %v1717
  %v1741 = vmul.f32 %v1655, %v1719
  %v1742 = vmul.f32 %v1657, %v1721
  %v1743 = vmul.f32 %v1659, %v1723
  %v1744 = vmul.f32 %v1661, %v1725
  %v1745 = vmul.f32 %v1663, %v1727
  %v1746 = vmul.f32 %v1665, %v1729
  %v1747 = vmul.f32 %v1667, %v1731
  %1756 = vrot.lane.b32.xlu0 %v1740, 32
  %v1757 = vpop.permute.xlu0 %1756
  %1758 = vrot.lane.b32.xlu0 %v1741, 32
  %v1759 = vpop.permute.xlu0 %1758
  %1760 = vrot.lane.b32.xlu0 %v1742, 32
  %v1761 = vpop.permute.xlu0 %1760
  %1762 = vrot.lane.b32.xlu0 %v1743, 32
  %v1763 = vpop.permute.xlu0 %1762
  %1764 = vrot.lane.b32.xlu0 %v1744, 32
  %v1765 = vpop.permute.xlu0 %1764
  %1766 = vrot.lane.b32.xlu0 %v1745, 32
  %v1767 = vpop.permute.xlu0 %1766
  %1768 = vrot.lane.b32.xlu0 %v1746, 32
  %v1769 = vpop.permute.xlu0 %1768
  %1770 = vrot.lane.b32.xlu0 %v1747, 32
  %v1771 = vpop.permute.xlu0 %1770
  %v1780 = vadd.f32 %v1700, %v1757
  %v1781 = vadd.f32 %v1701, %v1759
  %v1782 = vadd.f32 %v1702, %v1761
  %v1783 = vadd.f32 %v1703, %v1763
  %v1784 = vadd.f32 %v1704, %v1765
  %v1785 = vadd.f32 %v1705, %v1767
  %v1786 = vadd.f32 %v1706, %v1769
  %v1787 = vadd.f32 %v1707, %v1771
  %v1788 = vtanh.pop %v1780
  %v1789 = vtanh.pop %v1781
  %v1790 = vtanh.pop %v1782
  %v1791 = vtanh.pop %v1783
  %v1792 = vtanh.pop %v1784
  %v1793 = vtanh.pop %v1785
  %v1794 = vtanh.pop %v1786
  %v1795 = vtanh.pop %v1787
  %1804 = vrot.lane.b32.xlu0 %v1788, 32
  %v1805 = vpop.permute.xlu0 %1804
  %1806 = vrot.lane.b32.xlu0 %v1789, 32
  %v1807 = vpop.permute.xlu0 %1806
  %1808 = vrot.lane.b32.xlu0 %v1790, 32
  %v1809 = vpop.permute.xlu0 %1808
  %1810 = vrot.lane.b32.xlu0 %v1791, 32
  %v1811 = vpop.permute.xlu0 %1810
  %1812 = vrot.lane.b32.xlu0 %v1792, 32
  %v1813 = vpop.permute.xlu0 %1812
  %1814 = vrot.lane.b32.xlu0 %v1793, 32
  %v1815 = vpop.permute.xlu0 %1814
  %1816 = vrot.lane.b32.xlu0 %v1794, 32
  %v1817 = vpop.permute.xlu0 %1816
  %1818 = vrot.lane.b32.xlu0 %v1795, 32
  %v1819 = vpop.permute.xlu0 %1818
  %v1828 = vmul.f32 %v1653, %v1805
  %v1829 = vmul.f32 %v1655, %v1807
  %v1830 = vmul.f32 %v1657, %v1809
  %v1831 = vmul.f32 %v1659, %v1811
  %v1832 = vmul.f32 %v1661, %v1813
  %v1833 = vmul.f32 %v1663, %v1815
  %v1834 = vmul.f32 %v1665, %v1817
  %v1835 = vmul.f32 %v1667, %v1819
  %v1844 = vrot.slane %v1828, 3
  %v1845 = vrot.slane %v1829, 2
  %v1846 = vsel %vm830, %v1845, %v1844
  %v1847 = vrot.slane %v1830, 1
  %v1848 = vsel %vm833, %v1847, %v1846
  %v1849 = vsel %vm836, %v1831, %v1848
  %v1850 = vrot.slane %v1832, 7
  %v1851 = vsel %vm839, %v1850, %v1849
  %v1852 = vrot.slane %v1833, 6
  %v1853 = vsel %vm842, %v1852, %v1851
  %v1854 = vrot.slane %v1834, 5
  %v1855 = vsel %vm845, %v1854, %v1853
  %v1856 = vrot.slane %v1835, 4
  %v1857 = vsel %vm848, %v1856, %v1855
  %1858 = vrot.lane.b32.xlu0 %v1857, 64
  %v1859 = vpop.permute.xlu0 %1858
  %v1860 = vsel %vm51, %v1859, 0
  %1862 = vmatprep.subr.mxu0 0.0
  %1863 = vmatpush1.msra.mxu0 %v528
  %1864 = vmatprep.subr.mxu0 0.0
  %1865 = vmatpush1.msra.mxu0 %v529
  %1866 = vmatprep.subr.mxu0 0.0
  %1867 = vmatpush1.msra.mxu0 %v530
  %1868 = vmatprep.subr.mxu0 0.0
  %1869 = vmatpush1.msra.mxu0 %v531
  %1870 = vmatprep.subr.mxu0 0.0
  %1871 = vmatpush1.msra.mxu0 0.0
  %1872 = vmatprep.subr.mxu0 0.0
  %1873 = vmatpush1.msra.mxu0 0.0
  %1874 = vmatprep.subr.mxu0 0.0
  %1875 = vmatpush1.msra.mxu0 0.0
  %1876 = vmatprep.subr.mxu0 0.0
  %1877 = vmatpush1.msra.mxu0 0.0
  %1878 = vmatprep.subr.mxu0 0.0
  %1879 = vmatpush1.msra.mxu0 0.0
  %1880 = vmatprep.subr.mxu0 0.0
  %1881 = vmatpush1.msra.mxu0 0.0
  %1882 = vmatprep.subr.mxu0 0.0
  %1883 = vmatpush1.msra.mxu0 0.0
  %1884 = vmatprep.subr.mxu0 0.0
  %1885 = vmatpush1.msra.mxu0 0.0
  %1886 = vmatprep.subr.mxu0 0.0
  %1887 = vmatpush1.msra.mxu0 0.0
  %1888 = vmatprep.subr.mxu0 0.0
  %1889 = vmatpush1.msra.mxu0 0.0
  %1890 = vmatprep.subr.mxu0 0.0
  %1891 = vmatpush1.msra.mxu0 0.0
  %1892 = vmatprep.subr.mxu0 0.0
  %1893 = vmatpush1.msra.mxu0 0.0
  %1894 = vmatprep.subr.mxu0 0.0
  %1895 = vmatpush1.msra.mxu0 0.0
  %1896 = vmatprep.subr.mxu0 0.0
  %1897 = vmatpush1.msra.mxu0 0.0
  %1898 = vmatprep.subr.mxu0 0.0
  %1899 = vmatpush1.msra.mxu0 0.0
  %1900 = vmatprep.subr.mxu0 0.0
  %1901 = vmatpush1.msra.mxu0 0.0
  %1902 = vmatprep.subr.mxu0 0.0
  %1903 = vmatpush1.msra.mxu0 0.0
  %1904 = vmatprep.subr.mxu0 0.0
  %1905 = vmatpush1.msra.mxu0 0.0
  %1906 = vmatprep.subr.mxu0 0.0
  %1907 = vmatpush1.msra.mxu0 0.0
  %1908 = vmatprep.subr.mxu0 0.0
  %1909 = vmatpush1.msra.mxu0 0.0
  %1910 = vmatprep.subr.mxu0 0.0
  %1911 = vmatpush1.msra.mxu0 0.0
  %1912 = vmatprep.subr.mxu0 0.0
  %1913 = vmatpush1.msra.mxu0 0.0
  %1914 = vmatprep.subr.mxu0 0.0
  %1915 = vmatpush1.msra.mxu0 0.0
  %1916 = vmatprep.subr.mxu0 0.0
  %1917 = vmatpush1.msra.mxu0 0.0
  %1918 = vmatprep.subr.mxu0 0.0
  %1919 = vmatpush1.msra.mxu0 0.0
  %1920 = vmatprep.subr.mxu0 0.0
  %1921 = vmatpush1.msra.mxu0 0.0
  %1922 = vmatprep.subr.mxu0 0.0
  %1923 = vmatpush1.msra.mxu0 0.0
  %1924 = vmatprep.subr.mxu0 0.0
  %1925 = vmatpush1.msra.mxu0 0.0
  %1926 = vmatprep.mubr.f32.mxu0 0.0
  %1927 = vmatmul.mubr.f32.gmra.mrb[0].mxu0 %v1860
  %v1928 = vpop.f32.mrb[0].mxu0
  %v1929 = vadd.f32 0.0, %v1928
  %v1930 = vpop.f32.mrb[0].mxu0
  %1931 = vdwg.mxu0
  %v1933 = vrot.slane %v1929, 4
  %v1934 = vrot.slane %v1929, 5
  %v1935 = vrot.slane %v1929, 6
  %v1936 = vrot.slane %v1929, 7
  %v1937 = vrot.slane %v1929, 1
  %v1938 = vrot.slane %v1929, 2
  %v1939 = vrot.slane %v1929, 3
  %v1948 = vadd.f32 %v520, %v1933
  %v1949 = vadd.f32 %v521, %v1934
  %v1950 = vadd.f32 %v522, %v1935
  %v1951 = vadd.f32 %v523, %v1936
  %v1952 = vadd.f32 %v524, %v1929
  %v1953 = vadd.f32 %v525, %v1937
  %v1954 = vadd.f32 %v526, %v1938
  %v1955 = vadd.f32 %v527, %v1939
  %v1956 = vxor.u32 %v1948, 2147483648
  %v1957 = vxor.u32 %v1949, 2147483648
  %v1958 = vxor.u32 %v1950, 2147483648
  %v1959 = vxor.u32 %v1951, 2147483648
  %v1960 = vxor.u32 %v1952, 2147483648
  %v1961 = vxor.u32 %v1953, 2147483648
  %v1962 = vxor.u32 %v1954, 2147483648
  %v1963 = vxor.u32 %v1955, 2147483648
  %v1964 = vmul.f32 %v1956, 1.442695
  %v1965 = vpow.pop %v1964
  %v1966 = vmul.f32 %v1957, 1.442695
  %v1967 = vpow.pop %v1966
  %v1968 = vmul.f32 %v1958, 1.442695
  %v1969 = vpow.pop %v1968
  %v1970 = vmul.f32 %v1959, 1.442695
  %v1971 = vpow.pop %v1970
  %v1972 = vmul.f32 %v1960, 1.442695
  %v1973 = vpow.pop %v1972
  %v1974 = vmul.f32 %v1961, 1.442695
  %v1975 = vpow.pop %v1974
  %v1976 = vmul.f32 %v1962, 1.442695
  %v1977 = vpow.pop %v1976
  %v1978 = vmul.f32 %v1963, 1.442695
  %v1979 = vpow.pop %v1978
  %v1980 = vadd.f32 %v1965, 1.0
  %v1981 = vadd.f32 %v1967, 1.0
  %v1982 = vadd.f32 %v1969, 1.0
  %v1983 = vadd.f32 %v1971, 1.0
  %v1984 = vadd.f32 %v1973, 1.0
  %v1985 = vadd.f32 %v1975, 1.0
  %v1986 = vadd.f32 %v1977, 1.0
  %v1987 = vadd.f32 %v1979, 1.0
  %v1988 = vrcp.pop %v1980
  %v1989 = vmul.f32 1.0, %v1988
  %v1990 = vrcp.pop %v1981
  %v1991 = vmul.f32 1.0, %v1990
  %v1992 = vrcp.pop %v1982
  %v1993 = vmul.f32 1.0, %v1992
  %v1994 = vrcp.pop %v1983
  %v1995 = vmul.f32 1.0, %v1994
  %v1996 = vrcp.pop %v1984
  %v1997 = vmul.f32 1.0, %v1996
  %v1998 = vrcp.pop %v1985
  %v1999 = vmul.f32 1.0, %v1998
  %v2000 = vrcp.pop %v1986
  %v2001 = vmul.f32 1.0, %v2000
  %v2002 = vrcp.pop %v1987
  %v2003 = vmul.f32 1.0, %v2002
  %v2004 = vtanh.pop %v1948
  %v2005 = vtanh.pop %v1949
  %v2006 = vtanh.pop %v1950
  %v2007 = vtanh.pop %v1951
  %v2008 = vtanh.pop %v1952
  %v2009 = vtanh.pop %v1953
  %v2010 = vtanh.pop %v1954
  %v2011 = vtanh.pop %v1955
  %v2020 = vrot.slane %v1780, 7
  %v2021 = vrot.slane %v1781, 7
  %v2022 = vrot.slane %v1782, 7
  %v2023 = vrot.slane %v1783, 7
  %v2024 = vrot.slane %v1784, 7
  %v2025 = vrot.slane %v1785, 7
  %v2026 = vrot.slane %v1786, 7
  %v2027 = vrot.slane %v1787, 7
  %v2036 = vmul.f32 %v1989, %v2020
  %v2037 = vmul.f32 %v1991, %v2021
  %v2038 = vmul.f32 %v1993, %v2022
  %v2039 = vmul.f32 %v1995, %v2023
  %v2040 = vmul.f32 %v1997, %v2024
  %v2041 = vmul.f32 %v1999, %v2025
  %v2042 = vmul.f32 %v2001, %v2026
  %v2043 = vmul.f32 %v2003, %v2027
  %2052 = vrot.lane.b32.xlu0 %v2004, 32
  %v2053 = vpop.permute.xlu0 %2052
  %2054 = vrot.lane.b32.xlu0 %v2005, 32
  %v2055 = vpop.permute.xlu0 %2054
  %2056 = vrot.lane.b32.xlu0 %v2006, 32
  %v2057 = vpop.permute.xlu0 %2056
  %2058 = vrot.lane.b32.xlu0 %v2007, 32
  %v2059 = vpop.permute.xlu0 %2058
  %2060 = vrot.lane.b32.xlu0 %v2008, 32
  %v2061 = vpop.permute.xlu0 %2060
  %2062 = vrot.lane.b32.xlu0 %v2009, 32
  %v2063 = vpop.permute.xlu0 %2062
  %2064 = vrot.lane.b32.xlu0 %v2010, 32
  %v2065 = vpop.permute.xlu0 %2064
  %2066 = vrot.lane.b32.xlu0 %v2011, 32
  %v2067 = vpop.permute.xlu0 %2066
  %v2076 = vmul.f32 %v1989, %v2053
  %v2077 = vmul.f32 %v1991, %v2055
  %v2078 = vmul.f32 %v1993, %v2057
  %v2079 = vmul.f32 %v1995, %v2059
  %v2080 = vmul.f32 %v1997, %v2061
  %v2081 = vmul.f32 %v1999, %v2063
  %v2082 = vmul.f32 %v2001, %v2065
  %v2083 = vmul.f32 %v2003, %v2067
  %2092 = vrot.lane.b32.xlu0 %v2076, 32
  %v2093 = vpop.permute.xlu0 %2092
  %2094 = vrot.lane.b32.xlu0 %v2077, 32
  %v2095 = vpop.permute.xlu0 %2094
  %2096 = vrot.lane.b32.xlu0 %v2078, 32
  %v2097 = vpop.permute.xlu0 %2096
  %2098 = vrot.lane.b32.xlu0 %v2079, 32
  %v2099 = vpop.permute.xlu0 %2098
  %2100 = vrot.lane.b32.xlu0 %v2080, 32
  %v2101 = vpop.permute.xlu0 %2100
  %2102 = vrot.lane.b32.xlu0 %v2081, 32
  %v2103 = vpop.permute.xlu0 %2102
  %2104 = vrot.lane.b32.xlu0 %v2082, 32
  %v2105 = vpop.permute.xlu0 %2104
  %2106 = vrot.lane.b32.xlu0 %v2083, 32
  %v2107 = vpop.permute.xlu0 %2106
  %v2116 = vadd.f32 %v2036, %v2093
  %v2117 = vadd.f32 %v2037, %v2095
  %v2118 = vadd.f32 %v2038, %v2097
  %v2119 = vadd.f32 %v2039, %v2099
  %v2120 = vadd.f32 %v2040, %v2101
  %v2121 = vadd.f32 %v2041, %v2103
  %v2122 = vadd.f32 %v2042, %v2105
  %v2123 = vadd.f32 %v2043, %v2107
  %v2124 = vtanh.pop %v2116
  %v2125 = vtanh.pop %v2117
  %v2126 = vtanh.pop %v2118
  %v2127 = vtanh.pop %v2119
  %v2128 = vtanh.pop %v2120
  %v2129 = vtanh.pop %v2121
  %v2130 = vtanh.pop %v2122
  %v2131 = vtanh.pop %v2123
  %2140 = vrot.lane.b32.xlu0 %v2124, 32
  %v2141 = vpop.permute.xlu0 %2140
  %2142 = vrot.lane.b32.xlu0 %v2125, 32
  %v2143 = vpop.permute.xlu0 %2142
  %2144 = vrot.lane.b32.xlu0 %v2126, 32
  %v2145 = vpop.permute.xlu0 %2144
  %2146 = vrot.lane.b32.xlu0 %v2127, 32
  %v2147 = vpop.permute.xlu0 %2146
  %2148 = vrot.lane.b32.xlu0 %v2128, 32
  %v2149 = vpop.permute.xlu0 %2148
  %2150 = vrot.lane.b32.xlu0 %v2129, 32
  %v2151 = vpop.permute.xlu0 %2150
  %2152 = vrot.lane.b32.xlu0 %v2130, 32
  %v2153 = vpop.permute.xlu0 %2152
  %2154 = vrot.lane.b32.xlu0 %v2131, 32
  %v2155 = vpop.permute.xlu0 %2154
  %v2164 = vmul.f32 %v1989, %v2141
  %v2165 = vmul.f32 %v1991, %v2143
  %v2166 = vmul.f32 %v1993, %v2145
  %v2167 = vmul.f32 %v1995, %v2147
  %v2168 = vmul.f32 %v1997, %v2149
  %v2169 = vmul.f32 %v1999, %v2151
  %v2170 = vmul.f32 %v2001, %v2153
  %v2171 = vmul.f32 %v2003, %v2155
  %v2180 = vrot.slane %v2164, 4
  %v2181 = vrot.slane %v2165, 3
  %v2182 = vsel %vm830, %v2181, %v2180
  %v2183 = vrot.slane %v2166, 2
  %v2184 = vsel %vm833, %v2183, %v2182
  %v2185 = vrot.slane %v2167, 1
  %v2186 = vsel %vm836, %v2185, %v2184
  %v2187 = vsel %vm839, %v2168, %v2186
  %v2188 = vrot.slane %v2169, 7
  %v2189 = vsel %vm842, %v2188, %v2187
  %v2190 = vrot.slane %v2170, 6
  %v2191 = vsel %vm845, %v2190, %v2189
  %v2192 = vrot.slane %v2171, 5
  %v2193 = vsel %vm848, %v2192, %v2191
  %2194 = vrot.lane.b32.xlu0 %v2193, 64
  %v2195 = vpop.permute.xlu0 %2194
  %v2196 = vsel %vm51, %v2195, 0
  %2198 = vmatprep.subr.mxu0 0.0
  %2199 = vmatpush1.msra.mxu0 %v528
  %2200 = vmatprep.subr.mxu0 0.0
  %2201 = vmatpush1.msra.mxu0 %v529
  %2202 = vmatprep.subr.mxu0 0.0
  %2203 = vmatpush1.msra.mxu0 %v530
  %2204 = vmatprep.subr.mxu0 0.0
  %2205 = vmatpush1.msra.mxu0 %v531
  %2206 = vmatprep.subr.mxu0 0.0
  %2207 = vmatpush1.msra.mxu0 0.0
  %2208 = vmatprep.subr.mxu0 0.0
  %2209 = vmatpush1.msra.mxu0 0.0
  %2210 = vmatprep.subr.mxu0 0.0
  %2211 = vmatpush1.msra.mxu0 0.0
  %2212 = vmatprep.subr.mxu0 0.0
  %2213 = vmatpush1.msra.mxu0 0.0
  %2214 = vmatprep.subr.mxu0 0.0
  %2215 = vmatpush1.msra.mxu0 0.0
  %2216 = vmatprep.subr.mxu0 0.0
  %2217 = vmatpush1.msra.mxu0 0.0
  %2218 = vmatprep.subr.mxu0 0.0
  %2219 = vmatpush1.msra.mxu0 0.0
  %2220 = vmatprep.subr.mxu0 0.0
  %2221 = vmatpush1.msra.mxu0 0.0
  %2222 = vmatprep.subr.mxu0 0.0
  %2223 = vmatpush1.msra.mxu0 0.0
  %2224 = vmatprep.subr.mxu0 0.0
  %2225 = vmatpush1.msra.mxu0 0.0
  %2226 = vmatprep.subr.mxu0 0.0
  %2227 = vmatpush1.msra.mxu0 0.0
  %2228 = vmatprep.subr.mxu0 0.0
  %2229 = vmatpush1.msra.mxu0 0.0
  %2230 = vmatprep.subr.mxu0 0.0
  %2231 = vmatpush1.msra.mxu0 0.0
  %2232 = vmatprep.subr.mxu0 0.0
  %2233 = vmatpush1.msra.mxu0 0.0
  %2234 = vmatprep.subr.mxu0 0.0
  %2235 = vmatpush1.msra.mxu0 0.0
  %2236 = vmatprep.subr.mxu0 0.0
  %2237 = vmatpush1.msra.mxu0 0.0
  %2238 = vmatprep.subr.mxu0 0.0
  %2239 = vmatpush1.msra.mxu0 0.0
  %2240 = vmatprep.subr.mxu0 0.0
  %2241 = vmatpush1.msra.mxu0 0.0
  %2242 = vmatprep.subr.mxu0 0.0
  %2243 = vmatpush1.msra.mxu0 0.0
  %2244 = vmatprep.subr.mxu0 0.0
  %2245 = vmatpush1.msra.mxu0 0.0
  %2246 = vmatprep.subr.mxu0 0.0
  %2247 = vmatpush1.msra.mxu0 0.0
  %2248 = vmatprep.subr.mxu0 0.0
  %2249 = vmatpush1.msra.mxu0 0.0
  %2250 = vmatprep.subr.mxu0 0.0
  %2251 = vmatpush1.msra.mxu0 0.0
  %2252 = vmatprep.subr.mxu0 0.0
  %2253 = vmatpush1.msra.mxu0 0.0
  %2254 = vmatprep.subr.mxu0 0.0
  %2255 = vmatpush1.msra.mxu0 0.0
  %2256 = vmatprep.subr.mxu0 0.0
  %2257 = vmatpush1.msra.mxu0 0.0
  %2258 = vmatprep.subr.mxu0 0.0
  %2259 = vmatpush1.msra.mxu0 0.0
  %2260 = vmatprep.subr.mxu0 0.0
  %2261 = vmatpush1.msra.mxu0 0.0
  %2262 = vmatprep.mubr.f32.mxu0 0.0
  %2263 = vmatmul.mubr.f32.gmra.mrb[0].mxu0 %v2196
  %v2264 = vpop.f32.mrb[0].mxu0
  %v2265 = vadd.f32 0.0, %v2264
  %v2266 = vpop.f32.mrb[0].mxu0
  %2267 = vdwg.mxu0
  %v2269 = vrot.slane %v2265, 3
  %v2270 = vrot.slane %v2265, 4
  %v2271 = vrot.slane %v2265, 5
  %v2272 = vrot.slane %v2265, 6
  %v2273 = vrot.slane %v2265, 7
  %v2274 = vrot.slane %v2265, 1
  %v2275 = vrot.slane %v2265, 2
  %v2284 = vadd.f32 %v520, %v2269
  %v2285 = vadd.f32 %v521, %v2270
  %v2286 = vadd.f32 %v522, %v2271
  %v2287 = vadd.f32 %v523, %v2272
  %v2288 = vadd.f32 %v524, %v2273
  %v2289 = vadd.f32 %v525, %v2265
  %v2290 = vadd.f32 %v526, %v2274
  %v2291 = vadd.f32 %v527, %v2275
  %v2292 = vxor.u32 %v2284, 2147483648
  %v2293 = vxor.u32 %v2285, 2147483648
  %v2294 = vxor.u32 %v2286, 2147483648
  %v2295 = vxor.u32 %v2287, 2147483648
  %v2296 = vxor.u32 %v2288, 2147483648
  %v2297 = vxor.u32 %v2289, 2147483648
  %v2298 = vxor.u32 %v2290, 2147483648
  %v2299 = vxor.u32 %v2291, 2147483648
  %v2300 = vmul.f32 %v2292, 1.442695
  %v2301 = vpow.pop %v2300
  %v2302 = vmul.f32 %v2293, 1.442695
  %v2303 = vpow.pop %v2302
  %v2304 = vmul.f32 %v2294, 1.442695
  %v2305 = vpow.pop %v2304
  %v2306 = vmul.f32 %v2295, 1.442695
  %v2307 = vpow.pop %v2306
  %v2308 = vmul.f32 %v2296, 1.442695
  %v2309 = vpow.pop %v2308
  %v2310 = vmul.f32 %v2297, 1.442695
  %v2311 = vpow.pop %v2310
  %v2312 = vmul.f32 %v2298, 1.442695
  %v2313 = vpow.pop %v2312
  %v2314 = vmul.f32 %v2299, 1.442695
  %v2315 = vpow.pop %v2314
  %v2316 = vadd.f32 %v2301, 1.0
  %v2317 = vadd.f32 %v2303, 1.0
  %v2318 = vadd.f32 %v2305, 1.0
  %v2319 = vadd.f32 %v2307, 1.0
  %v2320 = vadd.f32 %v2309, 1.0
  %v2321 = vadd.f32 %v2311, 1.0
  %v2322 = vadd.f32 %v2313, 1.0
  %v2323 = vadd.f32 %v2315, 1.0
  %v2324 = vrcp.pop %v2316
  %v2325 = vmul.f32 1.0, %v2324
  %v2326 = vrcp.pop %v2317
  %v2327 = vmul.f32 1.0, %v2326
  %v2328 = vrcp.pop %v2318
  %v2329 = vmul.f32 1.0, %v2328
  %v2330 = vrcp.pop %v2319
  %v2331 = vmul.f32 1.0, %v2330
  %v2332 = vrcp.pop %v2320
  %v2333 = vmul.f32 1.0, %v2332
  %v2334 = vrcp.pop %v2321
  %v2335 = vmul.f32 1.0, %v2334
  %v2336 = vrcp.pop %v2322
  %v2337 = vmul.f32 1.0, %v2336
  %v2338 = vrcp.pop %v2323
  %v2339 = vmul.f32 1.0, %v2338
  %v2340 = vtanh.pop %v2284
  %v2341 = vtanh.pop %v2285
  %v2342 = vtanh.pop %v2286
  %v2343 = vtanh.pop %v2287
  %v2344 = vtanh.pop %v2288
  %v2345 = vtanh.pop %v2289
  %v2346 = vtanh.pop %v2290
  %v2347 = vtanh.pop %v2291
  %v2356 = vrot.slane %v2116, 7
  %v2357 = vrot.slane %v2117, 7
  %v2358 = vrot.slane %v2118, 7
  %v2359 = vrot.slane %v2119, 7
  %v2360 = vrot.slane %v2120, 7
  %v2361 = vrot.slane %v2121, 7
  %v2362 = vrot.slane %v2122, 7
  %v2363 = vrot.slane %v2123, 7
  %v2372 = vmul.f32 %v2325, %v2356
  %v2373 = vmul.f32 %v2327, %v2357
  %v2374 = vmul.f32 %v2329, %v2358
  %v2375 = vmul.f32 %v2331, %v2359
  %v2376 = vmul.f32 %v2333, %v2360
  %v2377 = vmul.f32 %v2335, %v2361
  %v2378 = vmul.f32 %v2337, %v2362
  %v2379 = vmul.f32 %v2339, %v2363
  %2388 = vrot.lane.b32.xlu0 %v2340, 32
  %v2389 = vpop.permute.xlu0 %2388
  %2390 = vrot.lane.b32.xlu0 %v2341, 32
  %v2391 = vpop.permute.xlu0 %2390
  %2392 = vrot.lane.b32.xlu0 %v2342, 32
  %v2393 = vpop.permute.xlu0 %2392
  %2394 = vrot.lane.b32.xlu0 %v2343, 32
  %v2395 = vpop.permute.xlu0 %2394
  %2396 = vrot.lane.b32.xlu0 %v2344, 32
  %v2397 = vpop.permute.xlu0 %2396
  %2398 = vrot.lane.b32.xlu0 %v2345, 32
  %v2399 = vpop.permute.xlu0 %2398
  %2400 = vrot.lane.b32.xlu0 %v2346, 32
  %v2401 = vpop.permute.xlu0 %2400
  %2402 = vrot.lane.b32.xlu0 %v2347, 32
  %v2403 = vpop.permute.xlu0 %2402
  %v2412 = vmul.f32 %v2325, %v2389
  %v2413 = vmul.f32 %v2327, %v2391
  %v2414 = vmul.f32 %v2329, %v2393
  %v2415 = vmul.f32 %v2331, %v2395
  %v2416 = vmul.f32 %v2333, %v2397
  %v2417 = vmul.f32 %v2335, %v2399
  %v2418 = vmul.f32 %v2337, %v2401
  %v2419 = vmul.f32 %v2339, %v2403
  %2428 = vrot.lane.b32.xlu0 %v2412, 32
  %v2429 = vpop.permute.xlu0 %2428
  %2430 = vrot.lane.b32.xlu0 %v2413, 32
  %v2431 = vpop.permute.xlu0 %2430
  %2432 = vrot.lane.b32.xlu0 %v2414, 32
  %v2433 = vpop.permute.xlu0 %2432
  %2434 = vrot.lane.b32.xlu0 %v2415, 32
  %v2435 = vpop.permute.xlu0 %2434
  %2436 = vrot.lane.b32.xlu0 %v2416, 32
  %v2437 = vpop.permute.xlu0 %2436
  %2438 = vrot.lane.b32.xlu0 %v2417, 32
  %v2439 = vpop.permute.xlu0 %2438
  %2440 = vrot.lane.b32.xlu0 %v2418, 32
  %v2441 = vpop.permute.xlu0 %2440
  %2442 = vrot.lane.b32.xlu0 %v2419, 32
  %v2443 = vpop.permute.xlu0 %2442
  %v2452 = vadd.f32 %v2372, %v2429
  %v2453 = vadd.f32 %v2373, %v2431
  %v2454 = vadd.f32 %v2374, %v2433
  %v2455 = vadd.f32 %v2375, %v2435
  %v2456 = vadd.f32 %v2376, %v2437
  %v2457 = vadd.f32 %v2377, %v2439
  %v2458 = vadd.f32 %v2378, %v2441
  %v2459 = vadd.f32 %v2379, %v2443
  %v2460 = vtanh.pop %v2452
  %v2461 = vtanh.pop %v2453
  %v2462 = vtanh.pop %v2454
  %v2463 = vtanh.pop %v2455
  %v2464 = vtanh.pop %v2456
  %v2465 = vtanh.pop %v2457
  %v2466 = vtanh.pop %v2458
  %v2467 = vtanh.pop %v2459
  %2476 = vrot.lane.b32.xlu0 %v2460, 32
  %v2477 = vpop.permute.xlu0 %2476
  %2478 = vrot.lane.b32.xlu0 %v2461, 32
  %v2479 = vpop.permute.xlu0 %2478
  %2480 = vrot.lane.b32.xlu0 %v2462, 32
  %v2481 = vpop.permute.xlu0 %2480
  %2482 = vrot.lane.b32.xlu0 %v2463, 32
  %v2483 = vpop.permute.xlu0 %2482
  %2484 = vrot.lane.b32.xlu0 %v2464, 32
  %v2485 = vpop.permute.xlu0 %2484
  %2486 = vrot.lane.b32.xlu0 %v2465, 32
  %v2487 = vpop.permute.xlu0 %2486
  %2488 = vrot.lane.b32.xlu0 %v2466, 32
  %v2489 = vpop.permute.xlu0 %2488
  %2490 = vrot.lane.b32.xlu0 %v2467, 32
  %v2491 = vpop.permute.xlu0 %2490
  %v2500 = vmul.f32 %v2325, %v2477
  %v2501 = vmul.f32 %v2327, %v2479
  %v2502 = vmul.f32 %v2329, %v2481
  %v2503 = vmul.f32 %v2331, %v2483
  %v2504 = vmul.f32 %v2333, %v2485
  %v2505 = vmul.f32 %v2335, %v2487
  %v2506 = vmul.f32 %v2337, %v2489
  %v2507 = vmul.f32 %v2339, %v2491
  %v2516 = vrot.slane %v2500, 5
  %v2517 = vrot.slane %v2501, 4
  %v2518 = vsel %vm830, %v2517, %v2516
  %v2519 = vrot.slane %v2502, 3
  %v2520 = vsel %vm833, %v2519, %v2518
  %v2521 = vrot.slane %v2503, 2
  %v2522 = vsel %vm836, %v2521, %v2520
  %v2523 = vrot.slane %v2504, 1
  %v2524 = vsel %vm839, %v2523, %v2522
  %v2525 = vsel %vm842, %v2505, %v2524
  %v2526 = vrot.slane %v2506, 7
  %v2527 = vsel %vm845, %v2526, %v2525
  %v2528 = vrot.slane %v2507, 6
  %v2529 = vsel %vm848, %v2528, %v2527
  %2530 = vrot.lane.b32.xlu0 %v2529, 64
  %v2531 = vpop.permute.xlu0 %2530
  %v2532 = vsel %vm51, %v2531, 0
  %2534 = vmatprep.subr.mxu0 0.0
  %2535 = vmatpush1.msra.mxu0 %v528
  %2536 = vmatprep.subr.mxu0 0.0
  %2537 = vmatpush1.msra.mxu0 %v529
  %2538 = vmatprep.subr.mxu0 0.0
  %2539 = vmatpush1.msra.mxu0 %v530
  %2540 = vmatprep.subr.mxu0 0.0
  %2541 = vmatpush1.msra.mxu0 %v531
  %2542 = vmatprep.subr.mxu0 0.0
  %2543 = vmatpush1.msra.mxu0 0.0
  %2544 = vmatprep.subr.mxu0 0.0
  %2545 = vmatpush1.msra.mxu0 0.0
  %2546 = vmatprep.subr.mxu0 0.0
  %2547 = vmatpush1.msra.mxu0 0.0
  %2548 = vmatprep.subr.mxu0 0.0
  %2549 = vmatpush1.msra.mxu0 0.0
  %2550 = vmatprep.subr.mxu0 0.0
  %2551 = vmatpush1.msra.mxu0 0.0
  %2552 = vmatprep.subr.mxu0 0.0
  %2553 = vmatpush1.msra.mxu0 0.0
  %2554 = vmatprep.subr.mxu0 0.0
  %2555 = vmatpush1.msra.mxu0 0.0
  %2556 = vmatprep.subr.mxu0 0.0
  %2557 = vmatpush1.msra.mxu0 0.0
  %2558 = vmatprep.subr.mxu0 0.0
  %2559 = vmatpush1.msra.mxu0 0.0
  %2560 = vmatprep.subr.mxu0 0.0
  %2561 = vmatpush1.msra.mxu0 0.0
  %2562 = vmatprep.subr.mxu0 0.0
  %2563 = vmatpush1.msra.mxu0 0.0
  %2564 = vmatprep.subr.mxu0 0.0
  %2565 = vmatpush1.msra.mxu0 0.0
  %2566 = vmatprep.subr.mxu0 0.0
  %2567 = vmatpush1.msra.mxu0 0.0
  %2568 = vmatprep.subr.mxu0 0.0
  %2569 = vmatpush1.msra.mxu0 0.0
  %2570 = vmatprep.subr.mxu0 0.0
  %2571 = vmatpush1.msra.mxu0 0.0
  %2572 = vmatprep.subr.mxu0 0.0
  %2573 = vmatpush1.msra.mxu0 0.0
  %2574 = vmatprep.subr.mxu0 0.0
  %2575 = vmatpush1.msra.mxu0 0.0
  %2576 = vmatprep.subr.mxu0 0.0
  %2577 = vmatpush1.msra.mxu0 0.0
  %2578 = vmatprep.subr.mxu0 0.0
  %2579 = vmatpush1.msra.mxu0 0.0
  %2580 = vmatprep.subr.mxu0 0.0
  %2581 = vmatpush1.msra.mxu0 0.0
  %2582 = vmatprep.subr.mxu0 0.0
  %2583 = vmatpush1.msra.mxu0 0.0
  %2584 = vmatprep.subr.mxu0 0.0
  %2585 = vmatpush1.msra.mxu0 0.0
  %2586 = vmatprep.subr.mxu0 0.0
  %2587 = vmatpush1.msra.mxu0 0.0
  %2588 = vmatprep.subr.mxu0 0.0
  %2589 = vmatpush1.msra.mxu0 0.0
  %2590 = vmatprep.subr.mxu0 0.0
  %2591 = vmatpush1.msra.mxu0 0.0
  %2592 = vmatprep.subr.mxu0 0.0
  %2593 = vmatpush1.msra.mxu0 0.0
  %2594 = vmatprep.subr.mxu0 0.0
  %2595 = vmatpush1.msra.mxu0 0.0
  %2596 = vmatprep.subr.mxu0 0.0
  %2597 = vmatpush1.msra.mxu0 0.0
  %2598 = vmatprep.mubr.f32.mxu0 0.0
  %2599 = vmatmul.mubr.f32.gmra.mrb[0].mxu0 %v2532
  %v2600 = vpop.f32.mrb[0].mxu0
  %v2601 = vadd.f32 0.0, %v2600
  %v2602 = vpop.f32.mrb[0].mxu0
  %2603 = vdwg.mxu0
  %v2605 = vrot.slane %v2601, 2
  %v2606 = vrot.slane %v2601, 3
  %v2607 = vrot.slane %v2601, 4
  %v2608 = vrot.slane %v2601, 5
  %v2609 = vrot.slane %v2601, 6
  %v2610 = vrot.slane %v2601, 7
  %v2611 = vrot.slane %v2601, 1
  %v2620 = vadd.f32 %v520, %v2605
  %v2621 = vadd.f32 %v521, %v2606
  %v2622 = vadd.f32 %v522, %v2607
  %v2623 = vadd.f32 %v523, %v2608
  %v2624 = vadd.f32 %v524, %v2609
  %v2625 = vadd.f32 %v525, %v2610
  %v2626 = vadd.f32 %v526, %v2601
  %v2627 = vadd.f32 %v527, %v2611
  %v2628 = vxor.u32 %v2620, 2147483648
  %v2629 = vxor.u32 %v2621, 2147483648
  %v2630 = vxor.u32 %v2622, 2147483648
  %v2631 = vxor.u32 %v2623, 2147483648
  %v2632 = vxor.u32 %v2624, 2147483648
  %v2633 = vxor.u32 %v2625, 2147483648
  %v2634 = vxor.u32 %v2626, 2147483648
  %v2635 = vxor.u32 %v2627, 2147483648
  %v2636 = vmul.f32 %v2628, 1.442695
  %v2637 = vpow.pop %v2636
  %v2638 = vmul.f32 %v2629, 1.442695
  %v2639 = vpow.pop %v2638
  %v2640 = vmul.f32 %v2630, 1.442695
  %v2641 = vpow.pop %v2640
  %v2642 = vmul.f32 %v2631, 1.442695
  %v2643 = vpow.pop %v2642
  %v2644 = vmul.f32 %v2632, 1.442695
  %v2645 = vpow.pop %v2644
  %v2646 = vmul.f32 %v2633, 1.442695
  %v2647 = vpow.pop %v2646
  %v2648 = vmul.f32 %v2634, 1.442695
  %v2649 = vpow.pop %v2648
  %v2650 = vmul.f32 %v2635, 1.442695
  %v2651 = vpow.pop %v2650
  %v2652 = vadd.f32 %v2637, 1.0
  %v2653 = vadd.f32 %v2639, 1.0
  %v2654 = vadd.f32 %v2641, 1.0
  %v2655 = vadd.f32 %v2643, 1.0
  %v2656 = vadd.f32 %v2645, 1.0
  %v2657 = vadd.f32 %v2647, 1.0
  %v2658 = vadd.f32 %v2649, 1.0
  %v2659 = vadd.f32 %v2651, 1.0
  %v2660 = vrcp.pop %v2652
  %v2661 = vmul.f32 1.0, %v2660
  %v2662 = vrcp.pop %v2653
  %v2663 = vmul.f32 1.0, %v2662
  %v2664 = vrcp.pop %v2654
  %v2665 = vmul.f32 1.0, %v2664
  %v2666 = vrcp.pop %v2655
  %v2667 = vmul.f32 1.0, %v2666
  %v2668 = vrcp.pop %v2656
  %v2669 = vmul.f32 1.0, %v2668
  %v2670 = vrcp.pop %v2657
  %v2671 = vmul.f32 1.0, %v2670
  %v2672 = vrcp.pop %v2658
  %v2673 = vmul.f32 1.0, %v2672
  %v2674 = vrcp.pop %v2659
  %v2675 = vmul.f32 1.0, %v2674
  %v2676 = vtanh.pop %v2620
  %v2677 = vtanh.pop %v2621
  %v2678 = vtanh.pop %v2622
  %v2679 = vtanh.pop %v2623
  %v2680 = vtanh.pop %v2624
  %v2681 = vtanh.pop %v2625
  %v2682 = vtanh.pop %v2626
  %v2683 = vtanh.pop %v2627
  %v2692 = vrot.slane %v2452, 7
  %v2693 = vrot.slane %v2453, 7
  %v2694 = vrot.slane %v2454, 7
  %v2695 = vrot.slane %v2455, 7
  %v2696 = vrot.slane %v2456, 7
  %v2697 = vrot.slane %v2457, 7
  %v2698 = vrot.slane %v2458, 7
  %v2699 = vrot.slane %v2459, 7
  %v2708 = vmul.f32 %v2661, %v2692
  %v2709 = vmul.f32 %v2663, %v2693
  %v2710 = vmul.f32 %v2665, %v2694
  %v2711 = vmul.f32 %v2667, %v2695
  %v2712 = vmul.f32 %v2669, %v2696
  %v2713 = vmul.f32 %v2671, %v2697
  %v2714 = vmul.f32 %v2673, %v2698
  %v2715 = vmul.f32 %v2675, %v2699
  %2724 = vrot.lane.b32.xlu0 %v2676, 32
  %v2725 = vpop.permute.xlu0 %2724
  %2726 = vrot.lane.b32.xlu0 %v2677, 32
  %v2727 = vpop.permute.xlu0 %2726
  %2728 = vrot.lane.b32.xlu0 %v2678, 32
  %v2729 = vpop.permute.xlu0 %2728
  %2730 = vrot.lane.b32.xlu0 %v2679, 32
  %v2731 = vpop.permute.xlu0 %2730
  %2732 = vrot.lane.b32.xlu0 %v2680, 32
  %v2733 = vpop.permute.xlu0 %2732
  %2734 = vrot.lane.b32.xlu0 %v2681, 32
  %v2735 = vpop.permute.xlu0 %2734
  %2736 = vrot.lane.b32.xlu0 %v2682, 32
  %v2737 = vpop.permute.xlu0 %2736
  %2738 = vrot.lane.b32.xlu0 %v2683, 32
  %v2739 = vpop.permute.xlu0 %2738
  %v2748 = vmul.f32 %v2661, %v2725
  %v2749 = vmul.f32 %v2663, %v2727
  %v2750 = vmul.f32 %v2665, %v2729
  %v2751 = vmul.f32 %v2667, %v2731
  %v2752 = vmul.f32 %v2669, %v2733
  %v2753 = vmul.f32 %v2671, %v2735
  %v2754 = vmul.f32 %v2673, %v2737
  %v2755 = vmul.f32 %v2675, %v2739
  %2764 = vrot.lane.b32.xlu0 %v2748, 32
  %v2765 = vpop.permute.xlu0 %2764
  %2766 = vrot.lane.b32.xlu0 %v2749, 32
  %v2767 = vpop.permute.xlu0 %2766
  %2768 = vrot.lane.b32.xlu0 %v2750, 32
  %v2769 = vpop.permute.xlu0 %2768
  %2770 = vrot.lane.b32.xlu0 %v2751, 32
  %v2771 = vpop.permute.xlu0 %2770
  %2772 = vrot.lane.b32.xlu0 %v2752, 32
  %v2773 = vpop.permute.xlu0 %2772
  %2774 = vrot.lane.b32.xlu0 %v2753, 32
  %v2775 = vpop.permute.xlu0 %2774
  %2776 = vrot.lane.b32.xlu0 %v2754, 32
  %v2777 = vpop.permute.xlu0 %2776
  %2778 = vrot.lane.b32.xlu0 %v2755, 32
  %v2779 = vpop.permute.xlu0 %2778
  %v2788 = vadd.f32 %v2708, %v2765
  %v2789 = vadd.f32 %v2709, %v2767
  %v2790 = vadd.f32 %v2710, %v2769
  %v2791 = vadd.f32 %v2711, %v2771
  %v2792 = vadd.f32 %v2712, %v2773
  %v2793 = vadd.f32 %v2713, %v2775
  %v2794 = vadd.f32 %v2714, %v2777
  %v2795 = vadd.f32 %v2715, %v2779
  %v2796 = vtanh.pop %v2788
  %v2797 = vtanh.pop %v2789
  %v2798 = vtanh.pop %v2790
  %v2799 = vtanh.pop %v2791
  %v2800 = vtanh.pop %v2792
  %v2801 = vtanh.pop %v2793
  %v2802 = vtanh.pop %v2794
  %v2803 = vtanh.pop %v2795
  %2812 = vrot.lane.b32.xlu0 %v2796, 32
  %v2813 = vpop.permute.xlu0 %2812
  %2814 = vrot.lane.b32.xlu0 %v2797, 32
  %v2815 = vpop.permute.xlu0 %2814
  %2816 = vrot.lane.b32.xlu0 %v2798, 32
  %v2817 = vpop.permute.xlu0 %2816
  %2818 = vrot.lane.b32.xlu0 %v2799, 32
  %v2819 = vpop.permute.xlu0 %2818
  %2820 = vrot.lane.b32.xlu0 %v2800, 32
  %v2821 = vpop.permute.xlu0 %2820
  %2822 = vrot.lane.b32.xlu0 %v2801, 32
  %v2823 = vpop.permute.xlu0 %2822
  %2824 = vrot.lane.b32.xlu0 %v2802, 32
  %v2825 = vpop.permute.xlu0 %2824
  %2826 = vrot.lane.b32.xlu0 %v2803, 32
  %v2827 = vpop.permute.xlu0 %2826
  %v2836 = vmul.f32 %v2661, %v2813
  %v2837 = vmul.f32 %v2663, %v2815
  %v2838 = vmul.f32 %v2665, %v2817
  %v2839 = vmul.f32 %v2667, %v2819
  %v2840 = vmul.f32 %v2669, %v2821
  %v2841 = vmul.f32 %v2671, %v2823
  %v2842 = vmul.f32 %v2673, %v2825
  %v2843 = vmul.f32 %v2675, %v2827
  %v2852 = vrot.slane %v2836, 6
  %v2853 = vrot.slane %v2837, 5
  %v2854 = vsel %vm830, %v2853, %v2852
  %v2855 = vrot.slane %v2838, 4
  %v2856 = vsel %vm833, %v2855, %v2854
  %v2857 = vrot.slane %v2839, 3
  %v2858 = vsel %vm836, %v2857, %v2856
  %v2859 = vrot.slane %v2840, 2
  %v2860 = vsel %vm839, %v2859, %v2858
  %v2861 = vrot.slane %v2841, 1
  %v2862 = vsel %vm842, %v2861, %v2860
  %v2863 = vsel %vm845, %v2842, %v2862
  %v2864 = vrot.slane %v2843, 7
  %v2865 = vsel %vm848, %v2864, %v2863
  %2866 = vrot.lane.b32.xlu0 %v2865, 64
  %v2867 = vpop.permute.xlu0 %2866
  %v2868 = vsel %vm51, %v2867, 0
  %2870 = vmatprep.subr.mxu0 0.0
  %2871 = vmatpush1.msra.mxu0 %v528
  %2872 = vmatprep.subr.mxu0 0.0
  %2873 = vmatpush1.msra.mxu0 %v529
  %2874 = vmatprep.subr.mxu0 0.0
  %2875 = vmatpush1.msra.mxu0 %v530
  %2876 = vmatprep.subr.mxu0 0.0
  %2877 = vmatpush1.msra.mxu0 %v531
  %2878 = vmatprep.subr.mxu0 0.0
  %2879 = vmatpush1.msra.mxu0 0.0
  %2880 = vmatprep.subr.mxu0 0.0
  %2881 = vmatpush1.msra.mxu0 0.0
  %2882 = vmatprep.subr.mxu0 0.0
  %2883 = vmatpush1.msra.mxu0 0.0
  %2884 = vmatprep.subr.mxu0 0.0
  %2885 = vmatpush1.msra.mxu0 0.0
  %2886 = vmatprep.subr.mxu0 0.0
  %2887 = vmatpush1.msra.mxu0 0.0
  %2888 = vmatprep.subr.mxu0 0.0
  %2889 = vmatpush1.msra.mxu0 0.0
  %2890 = vmatprep.subr.mxu0 0.0
  %2891 = vmatpush1.msra.mxu0 0.0
  %2892 = vmatprep.subr.mxu0 0.0
  %2893 = vmatpush1.msra.mxu0 0.0
  %2894 = vmatprep.subr.mxu0 0.0
  %2895 = vmatpush1.msra.mxu0 0.0
  %2896 = vmatprep.subr.mxu0 0.0
  %2897 = vmatpush1.msra.mxu0 0.0
  %2898 = vmatprep.subr.mxu0 0.0
  %2899 = vmatpush1.msra.mxu0 0.0
  %2900 = vmatprep.subr.mxu0 0.0
  %2901 = vmatpush1.msra.mxu0 0.0
  %2902 = vmatprep.subr.mxu0 0.0
  %2903 = vmatpush1.msra.mxu0 0.0
  %2904 = vmatprep.subr.mxu0 0.0
  %2905 = vmatpush1.msra.mxu0 0.0
  %2906 = vmatprep.subr.mxu0 0.0
  %2907 = vmatpush1.msra.mxu0 0.0
  %2908 = vmatprep.subr.mxu0 0.0
  %2909 = vmatpush1.msra.mxu0 0.0
  %2910 = vmatprep.subr.mxu0 0.0
  %2911 = vmatpush1.msra.mxu0 0.0
  %2912 = vmatprep.subr.mxu0 0.0
  %2913 = vmatpush1.msra.mxu0 0.0
  %2914 = vmatprep.subr.mxu0 0.0
  %2915 = vmatpush1.msra.mxu0 0.0
  %2916 = vmatprep.subr.mxu0 0.0
  %2917 = vmatpush1.msra.mxu0 0.0
  %2918 = vmatprep.subr.mxu0 0.0
  %2919 = vmatpush1.msra.mxu0 0.0
  %2920 = vmatprep.subr.mxu0 0.0
  %2921 = vmatpush1.msra.mxu0 0.0
  %2922 = vmatprep.subr.mxu0 0.0
  %2923 = vmatpush1.msra.mxu0 0.0
  %2924 = vmatprep.subr.mxu0 0.0
  %2925 = vmatpush1.msra.mxu0 0.0
  %2926 = vmatprep.subr.mxu0 0.0
  %2927 = vmatpush1.msra.mxu0 0.0
  %2928 = vmatprep.subr.mxu0 0.0
  %2929 = vmatpush1.msra.mxu0 0.0
  %2930 = vmatprep.subr.mxu0 0.0
  %2931 = vmatpush1.msra.mxu0 0.0
  %2932 = vmatprep.subr.mxu0 0.0
  %2933 = vmatpush1.msra.mxu0 0.0
  %2934 = vmatprep.mubr.f32.mxu0 0.0
  %2935 = vmatmul.mubr.f32.gmra.mrb[0].mxu0 %v2868
  %v2936 = vpop.f32.mrb[0].mxu0
  %v2937 = vadd.f32 0.0, %v2936
  %v2938 = vpop.f32.mrb[0].mxu0
  %2939 = vdwg.mxu0
  %v2941 = vrot.slane %v2937, 1
  %v2942 = vrot.slane %v2937, 2
  %v2943 = vrot.slane %v2937, 3
  %v2944 = vrot.slane %v2937, 4
  %v2945 = vrot.slane %v2937, 5
  %v2946 = vrot.slane %v2937, 6
  %v2947 = vrot.slane %v2937, 7
  %v2956 = vadd.f32 %v520, %v2941
  %v2957 = vadd.f32 %v521, %v2942
  %v2958 = vadd.f32 %v522, %v2943
  %v2959 = vadd.f32 %v523, %v2944
  %v2960 = vadd.f32 %v524, %v2945
  %v2961 = vadd.f32 %v525, %v2946
  %v2962 = vadd.f32 %v526, %v2947
  %v2963 = vadd.f32 %v527, %v2937
  %v2964 = vxor.u32 %v2956, 2147483648
  %v2965 = vxor.u32 %v2957, 2147483648
  %v2966 = vxor.u32 %v2958, 2147483648
  %v2967 = vxor.u32 %v2959, 2147483648
  %v2968 = vxor.u32 %v2960, 2147483648
  %v2969 = vxor.u32 %v2961, 2147483648
  %v2970 = vxor.u32 %v2962, 2147483648
  %v2971 = vxor.u32 %v2963, 2147483648
  %v2972 = vmul.f32 %v2964, 1.442695
  %v2973 = vpow.pop %v2972
  %v2974 = vmul.f32 %v2965, 1.442695
  %v2975 = vpow.pop %v2974
  %v2976 = vmul.f32 %v2966, 1.442695
  %v2977 = vpow.pop %v2976
  %v2978 = vmul.f32 %v2967, 1.442695
  %v2979 = vpow.pop %v2978
  %v2980 = vmul.f32 %v2968, 1.442695
  %v2981 = vpow.pop %v2980
  %v2982 = vmul.f32 %v2969, 1.442695
  %v2983 = vpow.pop %v2982
  %v2984 = vmul.f32 %v2970, 1.442695
  %v2985 = vpow.pop %v2984
  %v2986 = vmul.f32 %v2971, 1.442695
  %v2987 = vpow.pop %v2986
  %v2988 = vadd.f32 %v2973, 1.0
  %v2989 = vadd.f32 %v2975, 1.0
  %v2990 = vadd.f32 %v2977, 1.0
  %v2991 = vadd.f32 %v2979, 1.0
  %v2992 = vadd.f32 %v2981, 1.0
  %v2993 = vadd.f32 %v2983, 1.0
  %v2994 = vadd.f32 %v2985, 1.0
  %v2995 = vadd.f32 %v2987, 1.0
  %v2996 = vrcp.pop %v2988
  %v2997 = vmul.f32 1.0, %v2996
  %v2998 = vrcp.pop %v2989
  %v2999 = vmul.f32 1.0, %v2998
  %v3000 = vrcp.pop %v2990
  %v3001 = vmul.f32 1.0, %v3000
  %v3002 = vrcp.pop %v2991
  %v3003 = vmul.f32 1.0, %v3002
  %v3004 = vrcp.pop %v2992
  %v3005 = vmul.f32 1.0, %v3004
  %v3006 = vrcp.pop %v2993
  %v3007 = vmul.f32 1.0, %v3006
  %v3008 = vrcp.pop %v2994
  %v3009 = vmul.f32 1.0, %v3008
  %v3010 = vrcp.pop %v2995
  %v3011 = vmul.f32 1.0, %v3010
  %v3012 = vtanh.pop %v2956
  %v3013 = vtanh.pop %v2957
  %v3014 = vtanh.pop %v2958
  %v3015 = vtanh.pop %v2959
  %v3016 = vtanh.pop %v2960
  %v3017 = vtanh.pop %v2961
  %v3018 = vtanh.pop %v2962
  %v3019 = vtanh.pop %v2963
  %v3028 = vrot.slane %v2788, 7
  %v3029 = vrot.slane %v2789, 7
  %v3030 = vrot.slane %v2790, 7
  %v3031 = vrot.slane %v2791, 7
  %v3032 = vrot.slane %v2792, 7
  %v3033 = vrot.slane %v2793, 7
  %v3034 = vrot.slane %v2794, 7
  %v3035 = vrot.slane %v2795, 7
  %v3044 = vmul.f32 %v2997, %v3028
  %v3045 = vmul.f32 %v2999, %v3029
  %v3046 = vmul.f32 %v3001, %v3030
  %v3047 = vmul.f32 %v3003, %v3031
  %v3048 = vmul.f32 %v3005, %v3032
  %v3049 = vmul.f32 %v3007, %v3033
  %v3050 = vmul.f32 %v3009, %v3034
  %v3051 = vmul.f32 %v3011, %v3035
  %3060 = vrot.lane.b32.xlu0 %v3012, 32
  %v3061 = vpop.permute.xlu0 %3060
  %3062 = vrot.lane.b32.xlu0 %v3013, 32
  %v3063 = vpop.permute.xlu0 %3062
  %3064 = vrot.lane.b32.xlu0 %v3014, 32
  %v3065 = vpop.permute.xlu0 %3064
  %3066 = vrot.lane.b32.xlu0 %v3015, 32
  %v3067 = vpop.permute.xlu0 %3066
  %3068 = vrot.lane.b32.xlu0 %v3016, 32
  %v3069 = vpop.permute.xlu0 %3068
  %3070 = vrot.lane.b32.xlu0 %v3017, 32
  %v3071 = vpop.permute.xlu0 %3070
  %3072 = vrot.lane.b32.xlu0 %v3018, 32
  %v3073 = vpop.permute.xlu0 %3072
  %3074 = vrot.lane.b32.xlu0 %v3019, 32
  %v3075 = vpop.permute.xlu0 %3074
  %v3084 = vmul.f32 %v2997, %v3061
  %v3085 = vmul.f32 %v2999, %v3063
  %v3086 = vmul.f32 %v3001, %v3065
  %v3087 = vmul.f32 %v3003, %v3067
  %v3088 = vmul.f32 %v3005, %v3069
  %v3089 = vmul.f32 %v3007, %v3071
  %v3090 = vmul.f32 %v3009, %v3073
  %v3091 = vmul.f32 %v3011, %v3075
  %3100 = vrot.lane.b32.xlu0 %v3084, 32
  %v3101 = vpop.permute.xlu0 %3100
  %3102 = vrot.lane.b32.xlu0 %v3085, 32
  %v3103 = vpop.permute.xlu0 %3102
  %3104 = vrot.lane.b32.xlu0 %v3086, 32
  %v3105 = vpop.permute.xlu0 %3104
  %3106 = vrot.lane.b32.xlu0 %v3087, 32
  %v3107 = vpop.permute.xlu0 %3106
  %3108 = vrot.lane.b32.xlu0 %v3088, 32
  %v3109 = vpop.permute.xlu0 %3108
  %3110 = vrot.lane.b32.xlu0 %v3089, 32
  %v3111 = vpop.permute.xlu0 %3110
  %3112 = vrot.lane.b32.xlu0 %v3090, 32
  %v3113 = vpop.permute.xlu0 %3112
  %3114 = vrot.lane.b32.xlu0 %v3091, 32
  %v3115 = vpop.permute.xlu0 %3114
  %v3124 = vadd.f32 %v3044, %v3101
  %v3125 = vadd.f32 %v3045, %v3103
  %v3126 = vadd.f32 %v3046, %v3105
  %v3127 = vadd.f32 %v3047, %v3107
  %v3128 = vadd.f32 %v3048, %v3109
  %v3129 = vadd.f32 %v3049, %v3111
  %v3130 = vadd.f32 %v3050, %v3113
  %v3131 = vadd.f32 %v3051, %v3115
  %v3132 = vtanh.pop %v3124
  %v3133 = vtanh.pop %v3125
  %v3134 = vtanh.pop %v3126
  %v3135 = vtanh.pop %v3127
  %v3136 = vtanh.pop %v3128
  %v3137 = vtanh.pop %v3129
  %v3138 = vtanh.pop %v3130
  %v3139 = vtanh.pop %v3131
  %3148 = vrot.lane.b32.xlu0 %v3132, 32
  %v3149 = vpop.permute.xlu0 %3148
  %3150 = vrot.lane.b32.xlu0 %v3133, 32
  %v3151 = vpop.permute.xlu0 %3150
  %3152 = vrot.lane.b32.xlu0 %v3134, 32
  %v3153 = vpop.permute.xlu0 %3152
  %3154 = vrot.lane.b32.xlu0 %v3135, 32
  %v3155 = vpop.permute.xlu0 %3154
  %3156 = vrot.lane.b32.xlu0 %v3136, 32
  %v3157 = vpop.permute.xlu0 %3156
  %3158 = vrot.lane.b32.xlu0 %v3137, 32
  %v3159 = vpop.permute.xlu0 %3158
  %3160 = vrot.lane.b32.xlu0 %v3138, 32
  %v3161 = vpop.permute.xlu0 %3160
  %3162 = vrot.lane.b32.xlu0 %v3139, 32
  %v3163 = vpop.permute.xlu0 %3162
  %v3172 = vmul.f32 %v2997, %v3149
  %v3173 = vmul.f32 %v2999, %v3151
  %v3174 = vmul.f32 %v3001, %v3153
  %v3175 = vmul.f32 %v3003, %v3155
  %v3176 = vmul.f32 %v3005, %v3157
  %v3177 = vmul.f32 %v3007, %v3159
  %v3178 = vmul.f32 %v3009, %v3161
  %v3179 = vmul.f32 %v3011, %v3163
  %v3188 = vrot.slane %v3172, 7
  %v3189 = vrot.slane %v3173, 6
  %v3190 = vsel %vm830, %v3189, %v3188
  %v3191 = vrot.slane %v3174, 5
  %v3192 = vsel %vm833, %v3191, %v3190
  %v3193 = vrot.slane %v3175, 4
  %v3194 = vsel %vm836, %v3193, %v3192
  %v3195 = vrot.slane %v3176, 3
  %v3196 = vsel %vm839, %v3195, %v3194
  %v3197 = vrot.slane %v3177, 2
  %v3198 = vsel %vm842, %v3197, %v3196
  %v3199 = vrot.slane %v3178, 1
  %v3200 = vsel %vm845, %v3199, %v3198
  %v3201 = vsel %vm848, %v3179, %v3200
  %v3202 = vld [vmem:[%s10] sm:$0xff]
  %v3203 = vld [vmem:[%s10 + $0x8] sm:$0xff]
  %v3204 = vld [vmem:[%s10 + $0x10] sm:$0xff]
  %v3205 = vld [vmem:[%s10 + $0x18] sm:$0xff]
  %v3206 = vld [vmem:[%s11] sm:$0x1]
  %v3208 = vlaneseq
  %v3209 = vshrl.u32 %v3208, 7
  %v3210 = vsub.s32 0, %v3209
  %v3211 = vrot.slane %v3206, %v3210
  %3213 = vrot.lane.b32.xlu0 %v3201, 64
  %v3214 = vpop.permute.xlu0 %3213
  %v3215 = vsel %vm51, %v3214, 0
  %3217 = vmatprep.subr.mxu0 0.0
  %3218 = vmatpush1.msra.mxu0 %v3202
  %3219 = vmatprep.subr.mxu0 0.0
  %3220 = vmatpush1.msra.mxu0 %v3203
  %3221 = vmatprep.subr.mxu0 0.0
  %3222 = vmatpush1.msra.mxu0 %v3204
  %3223 = vmatprep.subr.mxu0 0.0
  %3224 = vmatpush1.msra.mxu0 %v3205
  %3225 = vmatprep.subr.mxu0 0.0
  %3226 = vmatpush1.msra.mxu0 0.0
  %3227 = vmatprep.subr.mxu0 0.0
  %3228 = vmatpush1.msra.mxu0 0.0
  %3229 = vmatprep.subr.mxu0 0.0
  %3230 = vmatpush1.msra.mxu0 0.0
  %3231 = vmatprep.subr.mxu0 0.0
  %3232 = vmatpush1.msra.mxu0 0.0
  %3233 = vmatprep.subr.mxu0 0.0
  %3234 = vmatpush1.msra.mxu0 0.0
  %3235 = vmatprep.subr.mxu0 0.0
  %3236 = vmatpush1.msra.mxu0 0.0
  %3237 = vmatprep.subr.mxu0 0.0
  %3238 = vmatpush1.msra.mxu0 0.0
  %3239 = vmatprep.subr.mxu0 0.0
  %3240 = vmatpush1.msra.mxu0 0.0
  %3241 = vmatprep.subr.mxu0 0.0
  %3242 = vmatpush1.msra.mxu0 0.0
  %3243 = vmatprep.subr.mxu0 0.0
  %3244 = vmatpush1.msra.mxu0 0.0
  %3245 = vmatprep.subr.mxu0 0.0
  %3246 = vmatpush1.msra.mxu0 0.0
  %3247 = vmatprep.subr.mxu0 0.0
  %3248 = vmatpush1.msra.mxu0 0.0
  %3249 = vmatprep.subr.mxu0 0.0
  %3250 = vmatpush1.msra.mxu0 0.0
  %3251 = vmatprep.subr.mxu0 0.0
  %3252 = vmatpush1.msra.mxu0 0.0
  %3253 = vmatprep.subr.mxu0 0.0
  %3254 = vmatpush1.msra.mxu0 0.0
  %3255 = vmatprep.subr.mxu0 0.0
  %3256 = vmatpush1.msra.mxu0 0.0
  %3257 = vmatprep.subr.mxu0 0.0
  %3258 = vmatpush1.msra.mxu0 0.0
  %3259 = vmatprep.subr.mxu0 0.0
  %3260 = vmatpush1.msra.mxu0 0.0
  %3261 = vmatprep.subr.mxu0 0.0
  %3262 = vmatpush1.msra.mxu0 0.0
  %3263 = vmatprep.subr.mxu0 0.0
  %3264 = vmatpush1.msra.mxu0 0.0
  %3265 = vmatprep.subr.mxu0 0.0
  %3266 = vmatpush1.msra.mxu0 0.0
  %3267 = vmatprep.subr.mxu0 0.0
  %3268 = vmatpush1.msra.mxu0 0.0
  %3269 = vmatprep.subr.mxu0 0.0
  %3270 = vmatpush1.msra.mxu0 0.0
  %3271 = vmatprep.subr.mxu0 0.0
  %3272 = vmatpush1.msra.mxu0 0.0
  %3273 = vmatprep.subr.mxu0 0.0
  %3274 = vmatpush1.msra.mxu0 0.0
  %3275 = vmatprep.subr.mxu0 0.0
  %3276 = vmatpush1.msra.mxu0 0.0
  %3277 = vmatprep.subr.mxu0 0.0
  %3278 = vmatpush1.msra.mxu0 0.0
  %3279 = vmatprep.subr.mxu0 0.0
  %3280 = vmatpush1.msra.mxu0 0.0
  %3281 = vmatprep.mubr.f32.mxu0 0.0
  %3282 = vmatmul.mubr.f32.gmra.mrb[0].mxu0 %v852
  %v3283 = vpop.f32.mrb[0].mxu0
  %v3284 = vadd.f32 %v3211, %v3283
  %v3285 = vpop.f32.mrb[0].mxu0
  %3286 = vmatprep.mubr.f32.mxu0 0.0
  %3287 = vmatmul.mubr.f32.gmra.mrb[0].mxu0 %v1188
  %v3288 = vpop.f32.mrb[0].mxu0
  %v3289 = vadd.f32 %v3211, %v3288
  %v3290 = vpop.f32.mrb[0].mxu0
  %3291 = vmatprep.mubr.f32.mxu0 0.0
  %3292 = vmatmul.mubr.f32.gmra.mrb[0].mxu0 %v1524
  %v3293 = vpop.f32.mrb[0].mxu0
  %v3294 = vadd.f32 %v3211, %v3293
  %v3295 = vpop.f32.mrb[0].mxu0
  %3296 = vmatprep.mubr.f32.mxu0 0.0
  %3297 = vmatmul.mubr.f32.gmra.mrb[0].mxu0 %v1860
  %v3298 = vpop.f32.mrb[0].mxu0
  %v3299 = vadd.f32 %v3211, %v3298
  %v3300 = vpop.f32.mrb[0].mxu0
  %3301 = vmatprep.mubr.f32.mxu0 0.0
  %3302 = vmatmul.mubr.f32.gmra.mrb[0].mxu0 %v2196
  %v3303 = vpop.f32.mrb[0].mxu0
  %v3304 = vadd.f32 %v3211, %v3303
  %v3305 = vpop.f32.mrb[0].mxu0
  %3306 = vmatprep.mubr.f32.mxu0 0.0
  %3307 = vmatmul.mubr.f32.gmra.mrb[0].mxu0 %v2532
  %v3308 = vpop.f32.mrb[0].mxu0
  %v3309 = vadd.f32 %v3211, %v3308
  %v3310 = vpop.f32.mrb[0].mxu0
  %3311 = vmatprep.mubr.f32.mxu0 0.0
  %3312 = vmatmul.mubr.f32.gmra.mrb[0].mxu0 %v2868
  %v3313 = vpop.f32.mrb[0].mxu0
  %v3314 = vadd.f32 %v3211, %v3313
  %v3315 = vpop.f32.mrb[0].mxu0
  %3316 = vmatprep.mubr.f32.mxu0 0.0
  %3317 = vmatmul.mubr.f32.gmra.mrb[0].mxu0 %v3215
  %v3318 = vpop.f32.mrb[0].mxu0
  %v3319 = vadd.f32 %v3211, %v3318
  %v3320 = vpop.f32.mrb[0].mxu0
  %3321 = vdwg.mxu0
  %v3322 = vlaneseq
  %v3323 = vand.u32 %v3322, 127
  %vm3324 = vcmp.lt.s32.totalorder %v3323, 0
  %v3325 = vsub.s32 0, %v3323
  %v3326 = vsel %vm3324, %v3325, %v3323
  %v3327 = vshrl.u32 %v3326, 1
  %v3328 = vand.u32 %v3326, 1
  %v3329 = vsub.s32 0, %v3328
  %v3330 = vsel %vm3324, %v3329, %v3328
  %vm3331 = vcmp.ne.s32.totalorder %v3330, 0
  %vm3332 = vcmp.lt.s32.totalorder %v3330, 0
  %vm3333 = vmand %vm3332, %vm3331
  %v3334 = vadd.s32 %v3330, 2
  %v3335 = vsel %vm3333, %v3334, %v3330
  %vm3336 = vcmp.eq.s32.totalorder %v3335, 0
  %v3337 = vmul.f32 %v3284, 2.0
  %v3338 = vmul.f32 %v3289, 2.0
  %v3339 = vmul.f32 %v3294, 2.0
  %v3340 = vmul.f32 %v3299, 2.0
  %v3341 = vmul.f32 %v3304, 2.0
  %v3342 = vmul.f32 %v3309, 2.0
  %v3343 = vmul.f32 %v3314, 2.0
  %v3344 = vmul.f32 %v3319, 2.0
  %v3345 = vsel %vm3336, %v3337, %v3284
  %v3346 = vsel %vm3336, %v3338, %v3289
  %v3347 = vsel %vm3336, %v3339, %v3294
  %v3348 = vsel %vm3336, %v3340, %v3299
  %v3349 = vsel %vm3336, %v3341, %v3304
  %v3350 = vsel %vm3336, %v3342, %v3309
  %v3351 = vsel %vm3336, %v3343, %v3314
  %v3352 = vsel %vm3336, %v3344, %v3319
  %v3353 = vxor.u32 %v3345, 2147483648
  %v3354 = vxor.u32 %v3346, 2147483648
  %v3355 = vxor.u32 %v3347, 2147483648
  %v3356 = vxor.u32 %v3348, 2147483648
  %v3357 = vxor.u32 %v3349, 2147483648
  %v3358 = vxor.u32 %v3350, 2147483648
  %v3359 = vxor.u32 %v3351, 2147483648
  %v3360 = vxor.u32 %v3352, 2147483648
  %v3361 = vmul.f32 %v3353, 1.442695
  %v3362 = vpow.pop %v3361
  %v3363 = vmul.f32 %v3354, 1.442695
  %v3364 = vpow.pop %v3363
  %v3365 = vmul.f32 %v3355, 1.442695
  %v3366 = vpow.pop %v3365
  %v3367 = vmul.f32 %v3356, 1.442695
  %v3368 = vpow.pop %v3367
  %v3369 = vmul.f32 %v3357, 1.442695
  %v3370 = vpow.pop %v3369
  %v3371 = vmul.f32 %v3358, 1.442695
  %v3372 = vpow.pop %v3371
  %v3373 = vmul.f32 %v3359, 1.442695
  %v3374 = vpow.pop %v3373
  %v3375 = vmul.f32 %v3360, 1.442695
  %v3376 = vpow.pop %v3375
  %v3377 = vadd.f32 %v3362, 1.0
  %v3378 = vadd.f32 %v3364, 1.0
  %v3379 = vadd.f32 %v3366, 1.0
  %v3380 = vadd.f32 %v3368, 1.0
  %v3381 = vadd.f32 %v3370, 1.0
  %v3382 = vadd.f32 %v3372, 1.0
  %v3383 = vadd.f32 %v3374, 1.0
  %v3384 = vadd.f32 %v3376, 1.0
  %v3385 = vrcp.pop %v3377
  %v3386 = vmul.f32 1.0, %v3385
  %v3387 = vrcp.pop %v3378
  %v3388 = vmul.f32 1.0, %v3387
  %v3389 = vrcp.pop %v3379
  %v3390 = vmul.f32 1.0, %v3389
  %v3391 = vrcp.pop %v3380
  %v3392 = vmul.f32 1.0, %v3391
  %v3393 = vrcp.pop %v3381
  %v3394 = vmul.f32 1.0, %v3393
  %v3395 = vrcp.pop %v3382
  %v3396 = vmul.f32 1.0, %v3395
  %v3397 = vrcp.pop %v3383
  %v3398 = vmul.f32 1.0, %v3397
  %v3399 = vrcp.pop %v3384
  %v3400 = vmul.f32 1.0, %v3399
  %v3401 = vmul.f32 %v3386, 2.0
  %v3402 = vmul.f32 %v3388, 2.0
  %v3403 = vmul.f32 %v3390, 2.0
  %v3404 = vmul.f32 %v3392, 2.0
  %v3405 = vmul.f32 %v3394, 2.0
  %v3406 = vmul.f32 %v3396, 2.0
  %v3407 = vmul.f32 %v3398, 2.0
  %v3408 = vmul.f32 %v3400, 2.0
  %v3409 = vsub.f32 %v3401, 1.0
  %v3410 = vsub.f32 %v3402, 1.0
  %v3411 = vsub.f32 %v3403, 1.0
  %v3412 = vsub.f32 %v3404, 1.0
  %v3413 = vsub.f32 %v3405, 1.0
  %v3414 = vsub.f32 %v3406, 1.0
  %v3415 = vsub.f32 %v3407, 1.0
  %v3416 = vsub.f32 %v3408, 1.0
  %v3417 = vsel %vm3336, %v3409, %v3386
  %v3418 = vsel %vm3336, %v3410, %v3388
  %v3419 = vsel %vm3336, %v3411, %v3390
  %v3420 = vsel %vm3336, %v3412, %v3392
  %v3421 = vsel %vm3336, %v3413, %v3394
  %v3422 = vsel %vm3336, %v3414, %v3396
  %v3423 = vsel %vm3336, %v3415, %v3398
  %v3424 = vsel %vm3336, %v3416, %v3400
  %3425 = vst.msk [vmem:[%s12] sm:$0xff] %vm300, %v3417
  %3426 = vst.msk [vmem:[%s12 + $0x8] sm:$0xff] %vm300, %v3418
  %3427 = vst.msk [vmem:[%s12 + $0x10] sm:$0xff] %vm300, %v3419
  %3428 = vst.msk [vmem:[%s12 + $0x18] sm:$0xff] %vm300, %v3420
  %3429 = vst.msk [vmem:[%s12 + $0x20] sm:$0xff] %vm300, %v3421
  %3430 = vst.msk [vmem:[%s12 + $0x28] sm:$0xff] %vm300, %v3422
  %3431 = vst.msk [vmem:[%s12 + $0x30] sm:$0xff] %vm300, %v3423
  %3432 = vst.msk [vmem:[%s12 + $0x38] sm:$0xff] %vm300, %v3424
  // Predicated region
  $region50: #{modified_lstm_forward.1} parent=0 // pred_check
    _
  $region51: #{modified_lstm_forward.1} parent=0 // pred_check_branch
    %3434 = sbr.rel (0) target = $region53
  $region52: #{modified_lstm_forward.1} parent=0 // pred_region
    _
  $region53: #{modified_lstm_forward.1} parent=0 // pred_fallthru
    _
  // Predicated region
  $region54: #{modified_lstm_forward.1} parent=0 // pred_check
    _
  $region55: #{modified_lstm_forward.1} parent=0 // pred_check_branch
    %3436 = sbr.rel (0) target = $region57
  $region56: #{modified_lstm_forward.1} parent=0 // pred_region
    _
  $region57: #{modified_lstm_forward.1} parent=0 // pred_fallthru
    _

</llo_original>
